<compile_context>
chip_gen: v6e
topology: v6e:2x2x1
jax: 0.10.0
libtpu: 0.0.40
codegen_flags: <defaults>
</compile_context>

<pallas_src>
import numpy as np
import jax
import jax.numpy as jnp
from jax.experimental import pallas as pl
from jax.experimental.pallas import tpu as pltpu


# ---------------------------------------------------------------------------
# Fused bidirectional LSTM kernel: grid = (time_block,), directions batched.
# ---------------------------------------------------------------------------
def _make_bilstm_kernel(Tt, B_pad, H, T_pad):
    H4 = 4 * H

    def kernel(lens_ref, xf_ref, xr_ref, w_ref, u_ref, b_ref,
               out_f_ref, out_r_ref,
               hf_ref, cf_ref, hr_ref, cr_ref, xwf_ref, xwr_ref):
        tb = pl.program_id(0)

        @pl.when(tb == 0)
        def _init():
            hf_ref[...] = jnp.zeros_like(hf_ref)
            cf_ref[...] = jnp.zeros_like(cf_ref)
            hr_ref[...] = jnp.zeros_like(hr_ref)
            cr_ref[...] = jnp.zeros_like(cr_ref)

        # --- hoisted input projection (off the serial h-chain) -------------
        # one lane-dense (Tt*B, E) @ (E, 4H) matmul + bias per direction.
        xwf_ref[...] = (jnp.dot(xf_ref[...], w_ref[0],
                                preferred_element_type=jnp.float32) + b_ref[0])
        xwr_ref[...] = (jnp.dot(xr_ref[...], w_ref[1],
                                preferred_element_type=jnp.float32) + b_ref[1])

        u_f = u_ref[0]                       # (H, 4H)  recurrent weights
        u_r = u_ref[1]

        lens = lens_ref[...]                 # (B_pad, 1) int32
        rstart = T_pad - lens                # reverse rows valid for u >= rstart
        t0 = tb * Tt

        # Loop-carried state stays in vregs within the block.
        hf = hf_ref[...]
        cf = cf_ref[...]
        hr = hr_ref[...]
        cr = cr_ref[...]

        def cell(h_prev, c_prev, u, xw_s, m):
            # single 128-lane recurrent matmul; gate order i, f, g, o.
            z = jnp.dot(h_prev, u, preferred_element_type=jnp.float32) + xw_s
            i_g = jax.nn.sigmoid(z[:, 0 * H:1 * H])
            f_g = jax.nn.sigmoid(z[:, 1 * H:2 * H])
            g_g = jnp.tanh(z[:, 2 * H:3 * H])
            o_g = jax.nn.sigmoid(z[:, 3 * H:4 * H])
            c_new = f_g * c_prev + i_g * g_g
            h_new = o_g * jnp.tanh(c_new)
            c_keep = jnp.where(m, c_new, c_prev)
            h_keep = jnp.where(m, h_new, h_prev)
            h_out = jnp.where(m, h_new, 0.0)   # padded positions -> 0
            return h_keep, c_keep, h_out

        for s in range(Tt):                   # static unroll, Tt <= 32
            u_t = t0 + s                      # virtual step counter
            m_f = u_t < lens                  # fwd half processes time u_t
            m_r = u_t >= rstart               # rev half processes T_pad-1-u_t
            xw_f = xwf_ref[pl.ds(s * B_pad, B_pad), :]
            xw_r = xwr_ref[pl.ds((Tt - 1 - s) * B_pad, B_pad), :]

            hf, cf, of = cell(hf, cf, u_f, xw_f, m_f)
            hr, cr, o_r = cell(hr, cr, u_r, xw_r, m_r)

            out_f_ref[pl.ds(s * B_pad, B_pad), :] = of
            out_r_ref[pl.ds((Tt - 1 - s) * B_pad, B_pad), :] = o_r

        hf_ref[...] = hf
        cf_ref[...] = cf
        hr_ref[...] = hr
        cr_ref[...] = cr

    return kernel


# ---------------------------------------------------------------------------
# Module wrapper
# ---------------------------------------------------------------------------
def encodertags_forward(tag_id, flengths, params, time_block=8):
    """tag_id: (B, T) int32; flengths: (B,) host lengths.
    Returns (B, max(flengths), 2H) float32 (bidirectional outputs)."""
    tag_id = jnp.asarray(tag_id, jnp.int32)
    B, T = tag_id.shape
    lens_np = np.asarray(flengths, np.int32)

    embed = jnp.asarray(params["embed"], jnp.float32)
    E = embed.shape[1]
    H = int(np.asarray(params["w_hh_f"]).shape[1])
    H4 = 4 * H

    # Pad batch to a sublane-dense multiple of 8, time to a multiple of Tt.
    B_pad = -(-B // 8) * 8
    Tt = int(max(1, min(time_block, T, 32)))
    T_pad = -(-T // Tt) * Tt
    nT = T_pad // Tt

    # Embedding gather in time-major layout, pre-grouped into (nT, Tt*B_pad, E)
    # (contiguity-preserving reshape) so the kernel needs no in-kernel reshape.
    tag_tm = jnp.zeros((T_pad, B_pad), jnp.int32).at[:T, :B].set(tag_id.T)
    x = jnp.take(embed, tag_tm, axis=0)                  # (T_pad, B_pad, E)
    x_blk = x.reshape(nT, Tt * B_pad, E)

    lens2d = jnp.zeros((B_pad, 1), jnp.int32).at[:B, 0].set(jnp.asarray(lens_np))

    # Fold Linear (no bias) into the LSTM input weights; PyTorch gate order
    # i, f, g, o along the 4H axis is preserved (matches kernel lane slices).
    wl = jnp.asarray(params["w_lin"], jnp.float32)       # (E, E); y = x @ wl.T

    def direction(d):
        wih = jnp.asarray(params[f"w_ih_{d}"], jnp.float32)     # (4H, E)
        whh = jnp.asarray(params[f"w_hh_{d}"], jnp.float32)     # (4H, H)
        bias = (jnp.asarray(params[f"b_ih_{d}"], jnp.float32)
                + jnp.asarray(params[f"b_hh_{d}"], jnp.float32))  # (4H,)
        w_eff = wl.T @ wih.T                                      # (E, 4H)
        u_eff = whh.T                                             # (H, 4H)
        return w_eff, u_eff, bias.reshape(1, H4)

    wf, uf, bf = direction("f")
    wr, ur, br = direction("r")
    w_all = jnp.stack([wf, wr])                          # (2, E, 4H)
    u_all = jnp.stack([uf, ur])                          # (2, H, 4H)
    b_all = jnp.stack([bf, br])                          # (2, 1, 4H)

    kernel = _make_bilstm_kernel(Tt, B_pad, H, T_pad)

    out_f, out_r = pl.pallas_call(
        kernel,
        out_shape=(jax.ShapeDtypeStruct((nT, Tt * B_pad, H), jnp.float32),
                   jax.ShapeDtypeStruct((nT, Tt * B_pad, H), jnp.float32)),
        grid=(nT,),
        in_specs=[
            pl.BlockSpec((B_pad, 1), lambda tb: (0, 0)),                        # lens
            pl.BlockSpec((None, Tt * B_pad, E), lambda tb: (tb, 0, 0)),         # x (fwd order)
            pl.BlockSpec((None, Tt * B_pad, E), lambda tb: (nT - 1 - tb, 0, 0)),  # x (rev order)
            pl.BlockSpec((2, E, H4), lambda tb: (0, 0, 0)),                     # W_eff
            pl.BlockSpec((2, H, H4), lambda tb: (0, 0, 0)),                     # U (recurrent)
            pl.BlockSpec((2, 1, H4), lambda tb: (0, 0, 0)),                     # bias
        ],
        out_specs=(
            pl.BlockSpec((None, Tt * B_pad, H), lambda tb: (tb, 0, 0)),
            pl.BlockSpec((None, Tt * B_pad, H), lambda tb: (nT - 1 - tb, 0, 0)),
        ),
        scratch_shapes=[
            pltpu.VMEM((B_pad, H), jnp.float32),          # h fwd
            pltpu.VMEM((B_pad, H), jnp.float32),          # c fwd
            pltpu.VMEM((B_pad, H), jnp.float32),          # h rev
            pltpu.VMEM((B_pad, H), jnp.float32),          # c rev
            pltpu.VMEM((Tt * B_pad, H4), jnp.float32),    # hoisted xW+b (fwd)
            pltpu.VMEM((Tt * B_pad, H4), jnp.float32),    # hoisted xW+b (rev)
        ],
        compiler_params=pltpu.CompilerParams(
            dimension_semantics=("arbitrary",)),
    )(lens2d, x_blk, x_blk, w_all, u_all, b_all)

    # (nT, Tt*B_pad, H) -> (B, max_len, 2H); concat order [fwd, rev] matches
    # PyTorch bidirectional output layout; padded positions are already zero.
    out_f = out_f.reshape(T_pad, B_pad, H)
    out_r = out_r.reshape(T_pad, B_pad, H)
    res = jnp.concatenate([out_f, out_r], axis=-1)       # (T_pad, B_pad, 2H)
    res = jnp.transpose(res, (1, 0, 2))                  # (B_pad, T_pad, 2H)
    max_len = int(np.max(lens_np))                       # pad_packed trims
    return res[:B, :max_len]


# ---------------------------------------------------------------------------
# Pure numpy reference (same math as PyTorch packed bi-LSTM) for verification.
# ---------------------------------------------------------------------------
def _sigmoid(x):
    return 1.0 / (1.0 + np.exp(-x))


def ref_forward(tag_id, flengths, params):
    tag_id = np.asarray(tag_id)
    emb = np.asarray(params["embed"])[tag_id]            # (B, T, E)
    x = emb @ np.asarray(params["w_lin"]).T              # (B, T, E)
    B, T, _ = x.shape
    H = np.asarray(params["w_hh_f"]).shape[1]
    out = np.zeros((B, T, 2 * H), np.float32)
    for di, (d, rev) in enumerate((("f", False), ("r", True))):
        wih = np.asarray(params[f"w_ih_{d}"])
        whh = np.asarray(params[f"w_hh_{d}"])
        b = np.asarray(params[f"b_ih_{d}"]) + np.asarray(params[f"b_hh_{d}"])
        for bb in range(B):
            h = np.zeros(H, np.float32)
            c = np.zeros(H, np.float32)
            L = int(flengths[bb])
            ts = range(L - 1, -1, -1) if rev else range(L)
            for t in ts:
                g = wih @ x[bb, t] + whh @ h + b
                i = _sigmoid(g[:H]); f = _sigmoid(g[H:2 * H])
                gg = np.tanh(g[2 * H:3 * H]); o = _sigmoid(g[3 * H:])
                c = f * c + i * gg
                h = o * np.tanh(c)
                out[bb, t, di * H:(di + 1) * H] = h
    return out[:, : int(np.max(flengths))]


# ---------------------------------------------------------------------------
if __name__ == "__main__":
    # Small config implied by the module: embed=hid=32, num_layers=1, birnn=True.
    VOCAB, E, H = 50, 32, 32
    B, T = 2, 8

    key = jax.random.PRNGKey(0)
    ks = jax.random.split(key, 12)
    u = lambda k, shape: jax.random.uniform(
        k, shape, jnp.float32, minval=-0.08, maxval=0.08
    )
    params = {
        "embed": u(ks[0], (VOCAB, E)),
        "w_lin": u(ks[1], (E, E)),            # nn.Linear(vid_dim, embed, bias=False)
        "w_ih_f": u(ks[2], (4 * H, E)),
        "w_hh_f": u(ks[3], (4 * H, H)),
        "b_ih_f": jnp.zeros((4 * H,), jnp.float32),
        "b_hh_f": jnp.zeros((4 * H,), jnp.float32),
        "w_ih_r": u(ks[4], (4 * H, E)),
        "w_hh_r": u(ks[5], (4 * H, H)),
        "b_ih_r": jnp.zeros((4 * H,), jnp.float32),
        "b_hh_r": jnp.zeros((4 * H,), jnp.float32),
    }

    tag_id = jax.random.randint(ks[6], (B, T), 0, VOCAB, dtype=jnp.int32)
    flengths = np.array([T, 5], dtype=np.int32)   # variable lengths

    out = encodertags_forward(tag_id, flengths, params)
    out = jax.block_until_ready(out)

    ref = ref_forward(np.asarray(tag_id), flengths, params)
    np.testing.assert_allclose(np.asarray(out), ref, atol=3e-5, rtol=3e-5)
    assert out.shape == (B, int(np.max(flengths)), 2 * H)

    print("KERNEL_OK")
</pallas_src>

<mosaic_0001>
module attributes {stable_mosaic.version = 11 : i64} {
  func.func @kernel(%arg0: i32, %arg1: memref<8x1xi32, #tpu.memory_space<vmem>>, %arg2: memref<1x64x32xf32, #tpu.memory_space<vmem>>, %arg3: memref<1x64x32xf32, #tpu.memory_space<vmem>>, %arg4: memref<2x32x128xf32, #tpu.memory_space<vmem>>, %arg5: memref<2x32x128xf32, #tpu.memory_space<vmem>>, %arg6: memref<2x1x128xf32, #tpu.memory_space<vmem>>, %arg7: memref<1x64x32xf32, #tpu.memory_space<vmem>>, %arg8: memref<1x64x32xf32, #tpu.memory_space<vmem>>, %arg9: memref<8x32xf32, #tpu.memory_space<vmem>>, %arg10: memref<8x32xf32, #tpu.memory_space<vmem>>, %arg11: memref<8x32xf32, #tpu.memory_space<vmem>>, %arg12: memref<8x32xf32, #tpu.memory_space<vmem>>, %arg13: memref<64x128xf32, #tpu.memory_space<vmem>>, %arg14: memref<64x128xf32, #tpu.memory_space<vmem>>) attributes {dimension_semantics = [#tpu.dimension_semantics<arbitrary>], iteration_bounds = array<i64: 1>, scalar_prefetch = 0 : i64, scratch_operands = 6 : i64, tpu.core_type = #tpu.core_type<tc>, window_params = [{pipeline_mode = #tpu.pipeline_mode<synchronous>, transform_indices = @transform_0, window_bounds = array<i64: 8, 1>}, {transform_indices = @transform_1, window_bounds = array<i64: 1, 64, 32>}, {transform_indices = @transform_2, window_bounds = array<i64: 1, 64, 32>}, {pipeline_mode = #tpu.pipeline_mode<synchronous>, transform_indices = @transform_3, window_bounds = array<i64: 2, 32, 128>}, {pipeline_mode = #tpu.pipeline_mode<synchronous>, transform_indices = @transform_4, window_bounds = array<i64: 2, 32, 128>}, {pipeline_mode = #tpu.pipeline_mode<synchronous>, transform_indices = @transform_5, window_bounds = array<i64: 2, 1, 128>}, {transform_indices = @transform_6, window_bounds = array<i64: 1, 64, 32>}, {transform_indices = @transform_7, window_bounds = array<i64: 1, 64, 32>}]} {
    %c0_i32 = arith.constant 0 : i32
    %0 = arith.cmpi eq, %arg0, %c0_i32 : i32
    %1 = arith.extui %0 : i1 to i32
    %c0_i32_0 = arith.constant 0 : i32
    %2 = arith.cmpi ne, %1, %c0_i32_0 : i32
    scf.if %2 {
      %cst_201 = arith.constant 0.000000e+00 : f32
      %735 = vector.broadcast %cst_201 : f32 to vector<8x32xf32>
      %c0_202 = arith.constant 0 : index
      %c0_203 = arith.constant 0 : index
      %736 = vector.load %arg9[%c0_202, %c0_203] : memref<8x32xf32, #tpu.memory_space<vmem>>, vector<8x32xf32>
      tpu.vector_store %arg9[%c0_202, %c0_203], %735 {strides = array<i32>} : memref<8x32xf32, #tpu.memory_space<vmem>>, vector<8x32xf32>,
      %cst_204 = arith.constant 0.000000e+00 : f32
      %737 = vector.broadcast %cst_204 : f32 to vector<8x32xf32>
      %c0_205 = arith.constant 0 : index
      %c0_206 = arith.constant 0 : index
      %738 = vector.load %arg10[%c0_205, %c0_206] : memref<8x32xf32, #tpu.memory_space<vmem>>, vector<8x32xf32>
      tpu.vector_store %arg10[%c0_205, %c0_206], %737 {strides = array<i32>} : memref<8x32xf32, #tpu.memory_space<vmem>>, vector<8x32xf32>,
      %cst_207 = arith.constant 0.000000e+00 : f32
      %739 = vector.broadcast %cst_207 : f32 to vector<8x32xf32>
      %c0_208 = arith.constant 0 : index
      %c0_209 = arith.constant 0 : index
      %740 = vector.load %arg11[%c0_208, %c0_209] : memref<8x32xf32, #tpu.memory_space<vmem>>, vector<8x32xf32>
      tpu.vector_store %arg11[%c0_208, %c0_209], %739 {strides = array<i32>} : memref<8x32xf32, #tpu.memory_space<vmem>>, vector<8x32xf32>,
      %cst_210 = arith.constant 0.000000e+00 : f32
      %741 = vector.broadcast %cst_210 : f32 to vector<8x32xf32>
      %c0_211 = arith.constant 0 : index
      %c0_212 = arith.constant 0 : index
      %742 = vector.load %arg12[%c0_211, %c0_212] : memref<8x32xf32, #tpu.memory_space<vmem>>, vector<8x32xf32>
      tpu.vector_store %arg12[%c0_211, %c0_212], %741 {strides = array<i32>} : memref<8x32xf32, #tpu.memory_space<vmem>>, vector<8x32xf32>,
    } else {
    }
    %c0 = arith.constant 0 : index
    %c0_1 = arith.constant 0 : index
    %c0_2 = arith.constant 0 : index
    %3 = vector.load %arg2[%c0, %c0_1, %c0_2] : memref<1x64x32xf32, #tpu.memory_space<vmem>>, vector<1x64x32xf32>
    %4 = vector.shape_cast %3 : vector<1x64x32xf32> to vector<64x32xf32>
    %c0_3 = arith.constant 0 : index
    %c0_4 = arith.constant 0 : index
    %c0_5 = arith.constant 0 : index
    %5 = vector.load %arg4[%c0_3, %c0_4, %c0_5] : memref<2x32x128xf32, #tpu.memory_space<vmem>>, vector<1x32x128xf32>
    %6 = vector.shape_cast %5 : vector<1x32x128xf32> to vector<32x128xf32>
    %cst = arith.constant dense<0.000000e+00> : vector<64x128xf32>
    %7 = tpu.matmul %4, %6, %cst {dimension_numbers = #tpu.dot_dimension_numbers<[1], [0], [0], [1], [0, 0, 1, 1], [], []>} : vector<64x32xf32>, vector<32x128xf32>, vector<64x128xf32> -> vector<64x128xf32>
    %c0_6 = arith.constant 0 : index
    %c0_7 = arith.constant 0 : index
    %c0_8 = arith.constant 0 : index
    %8 = vector.load %arg6[%c0_6, %c0_7, %c0_8] : memref<2x1x128xf32, #tpu.memory_space<vmem>>, vector<1x1x128xf32>
    %9 = vector.shape_cast %8 : vector<1x1x128xf32> to vector<1x128xf32>
    %10 = vector.broadcast %9 : vector<1x128xf32> to vector<64x128xf32>
    %11 = arith.addf %7, %10 : vector<64x128xf32>
    %c0_9 = arith.constant 0 : index
    %c0_10 = arith.constant 0 : index
    %12 = vector.load %arg13[%c0_9, %c0_10] : memref<64x128xf32, #tpu.memory_space<vmem>>, vector<64x128xf32>
    tpu.vector_store %arg13[%c0_9, %c0_10], %11 {strides = array<i32>} : memref<64x128xf32, #tpu.memory_space<vmem>>, vector<64x128xf32>,
    %c0_11 = arith.constant 0 : index
    %c0_12 = arith.constant 0 : index
    %c0_13 = arith.constant 0 : index
    %13 = vector.load %arg3[%c0_11, %c0_12, %c0_13] : memref<1x64x32xf32, #tpu.memory_space<vmem>>, vector<1x64x32xf32>
    %14 = vector.shape_cast %13 : vector<1x64x32xf32> to vector<64x32xf32>
    %c1 = arith.constant 1 : index
    %c0_14 = arith.constant 0 : index
    %c0_15 = arith.constant 0 : index
    %15 = vector.load %arg4[%c1, %c0_14, %c0_15] : memref<2x32x128xf32, #tpu.memory_space<vmem>>, vector<1x32x128xf32>
    %16 = vector.shape_cast %15 : vector<1x32x128xf32> to vector<32x128xf32>
    %cst_16 = arith.constant dense<0.000000e+00> : vector<64x128xf32>
    %17 = tpu.matmul %14, %16, %cst_16 {dimension_numbers = #tpu.dot_dimension_numbers<[1], [0], [0], [1], [0, 0, 1, 1], [], []>} : vector<64x32xf32>, vector<32x128xf32>, vector<64x128xf32> -> vector<64x128xf32>
    %c1_17 = arith.constant 1 : index
    %c0_18 = arith.constant 0 : index
    %c0_19 = arith.constant 0 : index
    %18 = vector.load %arg6[%c1_17, %c0_18, %c0_19] : memref<2x1x128xf32, #tpu.memory_space<vmem>>, vector<1x1x128xf32>
    %19 = vector.shape_cast %18 : vector<1x1x128xf32> to vector<1x128xf32>
    %20 = vector.broadcast %19 : vector<1x128xf32> to vector<64x128xf32>
    %21 = arith.addf %17, %20 : vector<64x128xf32>
    %c0_20 = arith.constant 0 : index
    %c0_21 = arith.constant 0 : index
    %22 = vector.load %arg14[%c0_20, %c0_21] : memref<64x128xf32, #tpu.memory_space<vmem>>, vector<64x128xf32>
    tpu.vector_store %arg14[%c0_20, %c0_21], %21 {strides = array<i32>} : memref<64x128xf32, #tpu.memory_space<vmem>>, vector<64x128xf32>,
    %c0_22 = arith.constant 0 : index
    %c0_23 = arith.constant 0 : index
    %c0_24 = arith.constant 0 : index
    %23 = vector.load %arg5[%c0_22, %c0_23, %c0_24] : memref<2x32x128xf32, #tpu.memory_space<vmem>>, vector<1x32x128xf32>
    %24 = vector.shape_cast %23 : vector<1x32x128xf32> to vector<32x128xf32>
    %c1_25 = arith.constant 1 : index
    %c0_26 = arith.constant 0 : index
    %c0_27 = arith.constant 0 : index
    %25 = vector.load %arg5[%c1_25, %c0_26, %c0_27] : memref<2x32x128xf32, #tpu.memory_space<vmem>>, vector<1x32x128xf32>
    %26 = vector.shape_cast %25 : vector<1x32x128xf32> to vector<32x128xf32>
    %c0_28 = arith.constant 0 : index
    %c0_29 = arith.constant 0 : index
    %27 = vector.load %arg1[%c0_28, %c0_29] : memref<8x1xi32, #tpu.memory_space<vmem>>, vector<8x1xi32>
    %c8_i32 = arith.constant 8 : i32
    %28 = vector.broadcast %c8_i32 : i32 to vector<8x1xi32>
    %29 = arith.subi %28, %27 : vector<8x1xi32>
    %c8_i32_30 = arith.constant 8 : i32
    %30 = arith.muli %arg0, %c8_i32_30 : i32
    %c0_31 = arith.constant 0 : index
    %c0_32 = arith.constant 0 : index
    %31 = vector.load %arg9[%c0_31, %c0_32] : memref<8x32xf32, #tpu.memory_space<vmem>>, vector<8x32xf32>
    %c0_33 = arith.constant 0 : index
    %c0_34 = arith.constant 0 : index
    %32 = vector.load %arg10[%c0_33, %c0_34] : memref<8x32xf32, #tpu.memory_space<vmem>>, vector<8x32xf32>
    %c0_35 = arith.constant 0 : index
    %c0_36 = arith.constant 0 : index
    %33 = vector.load %arg11[%c0_35, %c0_36] : memref<8x32xf32, #tpu.memory_space<vmem>>, vector<8x32xf32>
    %c0_37 = arith.constant 0 : index
    %c0_38 = arith.constant 0 : index
    %34 = vector.load %arg12[%c0_37, %c0_38] : memref<8x32xf32, #tpu.memory_space<vmem>>, vector<8x32xf32>
    %c0_i32_39 = arith.constant 0 : i32
    %35 = arith.addi %30, %c0_i32_39 : i32
    %36 = vector.broadcast %35 : i32 to vector<8x1xi32>
    %37 = arith.cmpi slt, %36, %27 : vector<8x1xi32>
    %38 = vector.broadcast %35 : i32 to vector<8x1xi32>
    %39 = arith.cmpi sge, %38, %29 : vector<8x1xi32>
    %c0_40 = arith.constant 0 : index
    %c0_41 = arith.constant 0 : index
    %40 = vector.load %arg13[%c0_40, %c0_41] : memref<64x128xf32, #tpu.memory_space<vmem>>, vector<8x128xf32>
    %c56 = arith.constant 56 : index
    %c0_42 = arith.constant 0 : index
    %41 = vector.load %arg14[%c56, %c0_42] : memref<64x128xf32, #tpu.memory_space<vmem>>, vector<8x128xf32>
    %cst_43 = arith.constant dense<0.000000e+00> : vector<8x128xf32>
    %42 = tpu.matmul %31, %24, %cst_43 {dimension_numbers = #tpu.dot_dimension_numbers<[1], [0], [0], [1], [0, 0, 1, 1], [], []>} : vector<8x32xf32>, vector<32x128xf32>, vector<8x128xf32> -> vector<8x128xf32>
    %43 = arith.addf %42, %40 : vector<8x128xf32>
    %44 = vector.extract_strided_slice %43 {offsets = [0, 0], sizes = [8, 32], strides = [1, 1]} : vector<8x128xf32> to vector<8x32xf32>
    %45 = arith.negf %44 : vector<8x32xf32>
    %46 = math.exp %45 : vector<8x32xf32>
    %cst_44 = arith.constant 1.000000e+00 : f32
    %47 = vector.broadcast %cst_44 : f32 to vector<8x32xf32>
    %48 = arith.addf %47, %46 : vector<8x32xf32>
    %49 = arith.divf %47, %48 : vector<8x32xf32>
    %50 = vector.extract_strided_slice %43 {offsets = [0, 32], sizes = [8, 32], strides = [1, 1]} : vector<8x128xf32> to vector<8x32xf32>
    %51 = arith.negf %50 : vector<8x32xf32>
    %52 = math.exp %51 : vector<8x32xf32>
    %cst_45 = arith.constant 1.000000e+00 : f32
    %53 = vector.broadcast %cst_45 : f32 to vector<8x32xf32>
    %54 = arith.addf %53, %52 : vector<8x32xf32>
    %55 = arith.divf %53, %54 : vector<8x32xf32>
    %56 = vector.extract_strided_slice %43 {offsets = [0, 64], sizes = [8, 32], strides = [1, 1]} : vector<8x128xf32> to vector<8x32xf32>
    %57 = math.tanh %56 : vector<8x32xf32>
    %58 = vector.extract_strided_slice %43 {offsets = [0, 96], sizes = [8, 32], strides = [1, 1]} : vector<8x128xf32> to vector<8x32xf32>
    %59 = arith.negf %58 : vector<8x32xf32>
    %60 = math.exp %59 : vector<8x32xf32>
    %cst_46 = arith.constant 1.000000e+00 : f32
    %61 = vector.broadcast %cst_46 : f32 to vector<8x32xf32>
    %62 = arith.addf %61, %60 : vector<8x32xf32>
    %63 = arith.divf %61, %62 : vector<8x32xf32>
    %64 = arith.mulf %55, %32 : vector<8x32xf32>
    %65 = arith.mulf %49, %57 : vector<8x32xf32>
    %66 = arith.addf %64, %65 : vector<8x32xf32>
    %67 = math.tanh %66 : vector<8x32xf32>
    %68 = arith.mulf %63, %67 : vector<8x32xf32>
    %69 = vector.shape_cast %37 : vector<8x1xi1> to vector<8x1xi1>
    %70 = vector.broadcast %69 : vector<8x1xi1> to vector<8x32xi1>
    %71 = arith.select %70, %66, %32 : vector<8x32xi1>, vector<8x32xf32>
    %72 = vector.shape_cast %37 : vector<8x1xi1> to vector<8x1xi1>
    %73 = vector.broadcast %72 : vector<8x1xi1> to vector<8x32xi1>
    %74 = arith.select %73, %68, %31 : vector<8x32xi1>, vector<8x32xf32>
    %cst_47 = arith.constant 0.000000e+00 : f32
    %75 = vector.shape_cast %37 : vector<8x1xi1> to vector<8x1xi1>
    %76 = vector.broadcast %75 : vector<8x1xi1> to vector<8x32xi1>
    %77 = vector.broadcast %cst_47 : f32 to vector<8x32xf32>
    %78 = arith.select %76, %68, %77 : vector<8x32xi1>, vector<8x32xf32>
    %cst_48 = arith.constant dense<0.000000e+00> : vector<8x128xf32>
    %79 = tpu.matmul %33, %26, %cst_48 {dimension_numbers = #tpu.dot_dimension_numbers<[1], [0], [0], [1], [0, 0, 1, 1], [], []>} : vector<8x32xf32>, vector<32x128xf32>, vector<8x128xf32> -> vector<8x128xf32>
    %80 = arith.addf %79, %41 : vector<8x128xf32>
    %81 = vector.extract_strided_slice %80 {offsets = [0, 0], sizes = [8, 32], strides = [1, 1]} : vector<8x128xf32> to vector<8x32xf32>
    %82 = arith.negf %81 : vector<8x32xf32>
    %83 = math.exp %82 : vector<8x32xf32>
    %cst_49 = arith.constant 1.000000e+00 : f32
    %84 = vector.broadcast %cst_49 : f32 to vector<8x32xf32>
    %85 = arith.addf %84, %83 : vector<8x32xf32>
    %86 = arith.divf %84, %85 : vector<8x32xf32>
    %87 = vector.extract_strided_slice %80 {offsets = [0, 32], sizes = [8, 32], strides = [1, 1]} : vector<8x128xf32> to vector<8x32xf32>
    %88 = arith.negf %87 : vector<8x32xf32>
    %89 = math.exp %88 : vector<8x32xf32>
    %cst_50 = arith.constant 1.000000e+00 : f32
    %90 = vector.broadcast %cst_50 : f32 to vector<8x32xf32>
    %91 = arith.addf %90, %89 : vector<8x32xf32>
    %92 = arith.divf %90, %91 : vector<8x32xf32>
    %93 = vector.extract_strided_slice %80 {offsets = [0, 64], sizes = [8, 32], strides = [1, 1]} : vector<8x128xf32> to vector<8x32xf32>
    %94 = math.tanh %93 : vector<8x32xf32>
    %95 = vector.extract_strided_slice %80 {offsets = [0, 96], sizes = [8, 32], strides = [1, 1]} : vector<8x128xf32> to vector<8x32xf32>
    %96 = arith.negf %95 : vector<8x32xf32>
    %97 = math.exp %96 : vector<8x32xf32>
    %cst_51 = arith.constant 1.000000e+00 : f32
    %98 = vector.broadcast %cst_51 : f32 to vector<8x32xf32>
    %99 = arith.addf %98, %97 : vector<8x32xf32>
    %100 = arith.divf %98, %99 : vector<8x32xf32>
    %101 = arith.mulf %92, %34 : vector<8x32xf32>
    %102 = arith.mulf %86, %94 : vector<8x32xf32>
    %103 = arith.addf %101, %102 : vector<8x32xf32>
    %104 = math.tanh %103 : vector<8x32xf32>
    %105 = arith.mulf %100, %104 : vector<8x32xf32>
    %106 = vector.shape_cast %39 : vector<8x1xi1> to vector<8x1xi1>
    %107 = vector.broadcast %106 : vector<8x1xi1> to vector<8x32xi1>
    %108 = arith.select %107, %103, %34 : vector<8x32xi1>, vector<8x32xf32>
    %109 = vector.shape_cast %39 : vector<8x1xi1> to vector<8x1xi1>
    %110 = vector.broadcast %109 : vector<8x1xi1> to vector<8x32xi1>
    %111 = arith.select %110, %105, %33 : vector<8x32xi1>, vector<8x32xf32>
    %cst_52 = arith.constant 0.000000e+00 : f32
    %112 = vector.shape_cast %39 : vector<8x1xi1> to vector<8x1xi1>
    %113 = vector.broadcast %112 : vector<8x1xi1> to vector<8x32xi1>
    %114 = vector.broadcast %cst_52 : f32 to vector<8x32xf32>
    %115 = arith.select %113, %105, %114 : vector<8x32xi1>, vector<8x32xf32>
    %c0_53 = arith.constant 0 : index
    %c0_54 = arith.constant 0 : index
    %c0_55 = arith.constant 0 : index
    %116 = vector.load %arg7[%c0_53, %c0_54, %c0_55] : memref<1x64x32xf32, #tpu.memory_space<vmem>>, vector<1x8x32xf32>
    %117 = vector.shape_cast %116 : vector<1x8x32xf32> to vector<8x32xf32>
    %118 = vector.shape_cast %78 : vector<8x32xf32> to vector<1x8x32xf32>
    tpu.vector_store %arg7[%c0_53, %c0_54, %c0_55], %118 {strides = array<i32>} : memref<1x64x32xf32, #tpu.memory_space<vmem>>, vector<1x8x32xf32>,
    %c0_56 = arith.constant 0 : index
    %c56_57 = arith.constant 56 : index
    %c0_58 = arith.constant 0 : index
    %119 = vector.load %arg8[%c0_56, %c56_57, %c0_58] : memref<1x64x32xf32, #tpu.memory_space<vmem>>, vector<1x8x32xf32>
    %120 = vector.shape_cast %119 : vector<1x8x32xf32> to vector<8x32xf32>
    %121 = vector.shape_cast %115 : vector<8x32xf32> to vector<1x8x32xf32>
    tpu.vector_store %arg8[%c0_56, %c56_57, %c0_58], %121 {strides = array<i32>} : memref<1x64x32xf32, #tpu.memory_space<vmem>>, vector<1x8x32xf32>,
    %c1_i32 = arith.constant 1 : i32
    %122 = arith.addi %30, %c1_i32 : i32
    %123 = vector.broadcast %122 : i32 to vector<8x1xi32>
    %124 = arith.cmpi slt, %123, %27 : vector<8x1xi32>
    %125 = vector.broadcast %122 : i32 to vector<8x1xi32>
    %126 = arith.cmpi sge, %125, %29 : vector<8x1xi32>
    %c8 = arith.constant 8 : index
    %c0_59 = arith.constant 0 : index
    %127 = vector.load %arg13[%c8, %c0_59] : memref<64x128xf32, #tpu.memory_space<vmem>>, vector<8x128xf32>
    %c48 = arith.constant 48 : index
    %c0_60 = arith.constant 0 : index
    %128 = vector.load %arg14[%c48, %c0_60] : memref<64x128xf32, #tpu.memory_space<vmem>>, vector<8x128xf32>
    %cst_61 = arith.constant dense<0.000000e+00> : vector<8x128xf32>
    %129 = tpu.matmul %74, %24, %cst_61 {dimension_numbers = #tpu.dot_dimension_numbers<[1], [0], [0], [1], [0, 0, 1, 1], [], []>} : vector<8x32xf32>, vector<32x128xf32>, vector<8x128xf32> -> vector<8x128xf32>
    %130 = arith.addf %129, %127 : vector<8x128xf32>
    %131 = vector.extract_strided_slice %130 {offsets = [0, 0], sizes = [8, 32], strides = [1, 1]} : vector<8x128xf32> to vector<8x32xf32>
    %132 = arith.negf %131 : vector<8x32xf32>
    %133 = math.exp %132 : vector<8x32xf32>
    %cst_62 = arith.constant 1.000000e+00 : f32
    %134 = vector.broadcast %cst_62 : f32 to vector<8x32xf32>
    %135 = arith.addf %134, %133 : vector<8x32xf32>
    %136 = arith.divf %134, %135 : vector<8x32xf32>
    %137 = vector.extract_strided_slice %130 {offsets = [0, 32], sizes = [8, 32], strides = [1, 1]} : vector<8x128xf32> to vector<8x32xf32>
    %138 = arith.negf %137 : vector<8x32xf32>
    %139 = math.exp %138 : vector<8x32xf32>
    %cst_63 = arith.constant 1.000000e+00 : f32
    %140 = vector.broadcast %cst_63 : f32 to vector<8x32xf32>
    %141 = arith.addf %140, %139 : vector<8x32xf32>
    %142 = arith.divf %140, %141 : vector<8x32xf32>
    %143 = vector.extract_strided_slice %130 {offsets = [0, 64], sizes = [8, 32], strides = [1, 1]} : vector<8x128xf32> to vector<8x32xf32>
    %144 = math.tanh %143 : vector<8x32xf32>
    %145 = vector.extract_strided_slice %130 {offsets = [0, 96], sizes = [8, 32], strides = [1, 1]} : vector<8x128xf32> to vector<8x32xf32>
    %146 = arith.negf %145 : vector<8x32xf32>
    %147 = math.exp %146 : vector<8x32xf32>
    %cst_64 = arith.constant 1.000000e+00 : f32
    %148 = vector.broadcast %cst_64 : f32 to vector<8x32xf32>
    %149 = arith.addf %148, %147 : vector<8x32xf32>
    %150 = arith.divf %148, %149 : vector<8x32xf32>
    %151 = arith.mulf %142, %71 : vector<8x32xf32>
    %152 = arith.mulf %136, %144 : vector<8x32xf32>
    %153 = arith.addf %151, %152 : vector<8x32xf32>
    %154 = math.tanh %153 : vector<8x32xf32>
    %155 = arith.mulf %150, %154 : vector<8x32xf32>
    %156 = vector.shape_cast %124 : vector<8x1xi1> to vector<8x1xi1>
    %157 = vector.broadcast %156 : vector<8x1xi1> to vector<8x32xi1>
    %158 = arith.select %157, %153, %71 : vector<8x32xi1>, vector<8x32xf32>
    %159 = vector.shape_cast %124 : vector<8x1xi1> to vector<8x1xi1>
    %160 = vector.broadcast %159 : vector<8x1xi1> to vector<8x32xi1>
    %161 = arith.select %160, %155, %74 : vector<8x32xi1>, vector<8x32xf32>
    %cst_65 = arith.constant 0.000000e+00 : f32
    %162 = vector.shape_cast %124 : vector<8x1xi1> to vector<8x1xi1>
    %163 = vector.broadcast %162 : vector<8x1xi1> to vector<8x32xi1>
    %164 = vector.broadcast %cst_65 : f32 to vector<8x32xf32>
    %165 = arith.select %163, %155, %164 : vector<8x32xi1>, vector<8x32xf32>
    %cst_66 = arith.constant dense<0.000000e+00> : vector<8x128xf32>
    %166 = tpu.matmul %111, %26, %cst_66 {dimension_numbers = #tpu.dot_dimension_numbers<[1], [0], [0], [1], [0, 0, 1, 1], [], []>} : vector<8x32xf32>, vector<32x128xf32>, vector<8x128xf32> -> vector<8x128xf32>
    %167 = arith.addf %166, %128 : vector<8x128xf32>
    %168 = vector.extract_strided_slice %167 {offsets = [0, 0], sizes = [8, 32], strides = [1, 1]} : vector<8x128xf32> to vector<8x32xf32>
    %169 = arith.negf %168 : vector<8x32xf32>
    %170 = math.exp %169 : vector<8x32xf32>
    %cst_67 = arith.constant 1.000000e+00 : f32
    %171 = vector.broadcast %cst_67 : f32 to vector<8x32xf32>
    %172 = arith.addf %171, %170 : vector<8x32xf32>
    %173 = arith.divf %171, %172 : vector<8x32xf32>
    %174 = vector.extract_strided_slice %167 {offsets = [0, 32], sizes = [8, 32], strides = [1, 1]} : vector<8x128xf32> to vector<8x32xf32>
    %175 = arith.negf %174 : vector<8x32xf32>
    %176 = math.exp %175 : vector<8x32xf32>
    %cst_68 = arith.constant 1.000000e+00 : f32
    %177 = vector.broadcast %cst_68 : f32 to vector<8x32xf32>
    %178 = arith.addf %177, %176 : vector<8x32xf32>
    %179 = arith.divf %177, %178 : vector<8x32xf32>
    %180 = vector.extract_strided_slice %167 {offsets = [0, 64], sizes = [8, 32], strides = [1, 1]} : vector<8x128xf32> to vector<8x32xf32>
    %181 = math.tanh %180 : vector<8x32xf32>
    %182 = vector.extract_strided_slice %167 {offsets = [0, 96], sizes = [8, 32], strides = [1, 1]} : vector<8x128xf32> to vector<8x32xf32>
    %183 = arith.negf %182 : vector<8x32xf32>
    %184 = math.exp %183 : vector<8x32xf32>
    %cst_69 = arith.constant 1.000000e+00 : f32
    %185 = vector.broadcast %cst_69 : f32 to vector<8x32xf32>
    %186 = arith.addf %185, %184 : vector<8x32xf32>
    %187 = arith.divf %185, %186 : vector<8x32xf32>
    %188 = arith.mulf %179, %108 : vector<8x32xf32>
    %189 = arith.mulf %173, %181 : vector<8x32xf32>
    %190 = arith.addf %188, %189 : vector<8x32xf32>
    %191 = math.tanh %190 : vector<8x32xf32>
    %192 = arith.mulf %187, %191 : vector<8x32xf32>
    %193 = vector.shape_cast %126 : vector<8x1xi1> to vector<8x1xi1>
    %194 = vector.broadcast %193 : vector<8x1xi1> to vector<8x32xi1>
    %195 = arith.select %194, %190, %108 : vector<8x32xi1>, vector<8x32xf32>
    %196 = vector.shape_cast %126 : vector<8x1xi1> to vector<8x1xi1>
    %197 = vector.broadcast %196 : vector<8x1xi1> to vector<8x32xi1>
    %198 = arith.select %197, %192, %111 : vector<8x32xi1>, vector<8x32xf32>
    %cst_70 = arith.constant 0.000000e+00 : f32
    %199 = vector.shape_cast %126 : vector<8x1xi1> to vector<8x1xi1>
    %200 = vector.broadcast %199 : vector<8x1xi1> to vector<8x32xi1>
    %201 = vector.broadcast %cst_70 : f32 to vector<8x32xf32>
    %202 = arith.select %200, %192, %201 : vector<8x32xi1>, vector<8x32xf32>
    %c0_71 = arith.constant 0 : index
    %c8_72 = arith.constant 8 : index
    %c0_73 = arith.constant 0 : index
    %203 = vector.load %arg7[%c0_71, %c8_72, %c0_73] : memref<1x64x32xf32, #tpu.memory_space<vmem>>, vector<1x8x32xf32>
    %204 = vector.shape_cast %203 : vector<1x8x32xf32> to vector<8x32xf32>
    %205 = vector.shape_cast %165 : vector<8x32xf32> to vector<1x8x32xf32>
    tpu.vector_store %arg7[%c0_71, %c8_72, %c0_73], %205 {strides = array<i32>} : memref<1x64x32xf32, #tpu.memory_space<vmem>>, vector<1x8x32xf32>,
    %c0_74 = arith.constant 0 : index
    %c48_75 = arith.constant 48 : index
    %c0_76 = arith.constant 0 : index
    %206 = vector.load %arg8[%c0_74, %c48_75, %c0_76] : memref<1x64x32xf32, #tpu.memory_space<vmem>>, vector<1x8x32xf32>
    %207 = vector.shape_cast %206 : vector<1x8x32xf32> to vector<8x32xf32>
    %208 = vector.shape_cast %202 : vector<8x32xf32> to vector<1x8x32xf32>
    tpu.vector_store %arg8[%c0_74, %c48_75, %c0_76], %208 {strides = array<i32>} : memref<1x64x32xf32, #tpu.memory_space<vmem>>, vector<1x8x32xf32>,
    %c2_i32 = arith.constant 2 : i32
    %209 = arith.addi %30, %c2_i32 : i32
    %210 = vector.broadcast %209 : i32 to vector<8x1xi32>
    %211 = arith.cmpi slt, %210, %27 : vector<8x1xi32>
    %212 = vector.broadcast %209 : i32 to vector<8x1xi32>
    %213 = arith.cmpi sge, %212, %29 : vector<8x1xi32>
    %c16 = arith.constant 16 : index
    %c0_77 = arith.constant 0 : index
    %214 = vector.load %arg13[%c16, %c0_77] : memref<64x128xf32, #tpu.memory_space<vmem>>, vector<8x128xf32>
    %c40 = arith.constant 40 : index
    %c0_78 = arith.constant 0 : index
    %215 = vector.load %arg14[%c40, %c0_78] : memref<64x128xf32, #tpu.memory_space<vmem>>, vector<8x128xf32>
    %cst_79 = arith.constant dense<0.000000e+00> : vector<8x128xf32>
    %216 = tpu.matmul %161, %24, %cst_79 {dimension_numbers = #tpu.dot_dimension_numbers<[1], [0], [0], [1], [0, 0, 1, 1], [], []>} : vector<8x32xf32>, vector<32x128xf32>, vector<8x128xf32> -> vector<8x128xf32>
    %217 = arith.addf %216, %214 : vector<8x128xf32>
    %218 = vector.extract_strided_slice %217 {offsets = [0, 0], sizes = [8, 32], strides = [1, 1]} : vector<8x128xf32> to vector<8x32xf32>
    %219 = arith.negf %218 : vector<8x32xf32>
    %220 = math.exp %219 : vector<8x32xf32>
    %cst_80 = arith.constant 1.000000e+00 : f32
    %221 = vector.broadcast %cst_80 : f32 to vector<8x32xf32>
    %222 = arith.addf %221, %220 : vector<8x32xf32>
    %223 = arith.divf %221, %222 : vector<8x32xf32>
    %224 = vector.extract_strided_slice %217 {offsets = [0, 32], sizes = [8, 32], strides = [1, 1]} : vector<8x128xf32> to vector<8x32xf32>
    %225 = arith.negf %224 : vector<8x32xf32>
    %226 = math.exp %225 : vector<8x32xf32>
    %cst_81 = arith.constant 1.000000e+00 : f32
    %227 = vector.broadcast %cst_81 : f32 to vector<8x32xf32>
    %228 = arith.addf %227, %226 : vector<8x32xf32>
    %229 = arith.divf %227, %228 : vector<8x32xf32>
    %230 = vector.extract_strided_slice %217 {offsets = [0, 64], sizes = [8, 32], strides = [1, 1]} : vector<8x128xf32> to vector<8x32xf32>
    %231 = math.tanh %230 : vector<8x32xf32>
    %232 = vector.extract_strided_slice %217 {offsets = [0, 96], sizes = [8, 32], strides = [1, 1]} : vector<8x128xf32> to vector<8x32xf32>
    %233 = arith.negf %232 : vector<8x32xf32>
    %234 = math.exp %233 : vector<8x32xf32>
    %cst_82 = arith.constant 1.000000e+00 : f32
    %235 = vector.broadcast %cst_82 : f32 to vector<8x32xf32>
    %236 = arith.addf %235, %234 : vector<8x32xf32>
    %237 = arith.divf %235, %236 : vector<8x32xf32>
    %238 = arith.mulf %229, %158 : vector<8x32xf32>
    %239 = arith.mulf %223, %231 : vector<8x32xf32>
    %240 = arith.addf %238, %239 : vector<8x32xf32>
    %241 = math.tanh %240 : vector<8x32xf32>
    %242 = arith.mulf %237, %241 : vector<8x32xf32>
    %243 = vector.shape_cast %211 : vector<8x1xi1> to vector<8x1xi1>
    %244 = vector.broadcast %243 : vector<8x1xi1> to vector<8x32xi1>
    %245 = arith.select %244, %240, %158 : vector<8x32xi1>, vector<8x32xf32>
    %246 = vector.shape_cast %211 : vector<8x1xi1> to vector<8x1xi1>
    %247 = vector.broadcast %246 : vector<8x1xi1> to vector<8x32xi1>
    %248 = arith.select %247, %242, %161 : vector<8x32xi1>, vector<8x32xf32>
    %cst_83 = arith.constant 0.000000e+00 : f32
    %249 = vector.shape_cast %211 : vector<8x1xi1> to vector<8x1xi1>
    %250 = vector.broadcast %249 : vector<8x1xi1> to vector<8x32xi1>
    %251 = vector.broadcast %cst_83 : f32 to vector<8x32xf32>
    %252 = arith.select %250, %242, %251 : vector<8x32xi1>, vector<8x32xf32>
    %cst_84 = arith.constant dense<0.000000e+00> : vector<8x128xf32>
    %253 = tpu.matmul %198, %26, %cst_84 {dimension_numbers = #tpu.dot_dimension_numbers<[1], [0], [0], [1], [0, 0, 1, 1], [], []>} : vector<8x32xf32>, vector<32x128xf32>, vector<8x128xf32> -> vector<8x128xf32>
    %254 = arith.addf %253, %215 : vector<8x128xf32>
    %255 = vector.extract_strided_slice %254 {offsets = [0, 0], sizes = [8, 32], strides = [1, 1]} : vector<8x128xf32> to vector<8x32xf32>
    %256 = arith.negf %255 : vector<8x32xf32>
    %257 = math.exp %256 : vector<8x32xf32>
    %cst_85 = arith.constant 1.000000e+00 : f32
    %258 = vector.broadcast %cst_85 : f32 to vector<8x32xf32>
    %259 = arith.addf %258, %257 : vector<8x32xf32>
    %260 = arith.divf %258, %259 : vector<8x32xf32>
    %261 = vector.extract_strided_slice %254 {offsets = [0, 32], sizes = [8, 32], strides = [1, 1]} : vector<8x128xf32> to vector<8x32xf32>
    %262 = arith.negf %261 : vector<8x32xf32>
    %263 = math.exp %262 : vector<8x32xf32>
    %cst_86 = arith.constant 1.000000e+00 : f32
    %264 = vector.broadcast %cst_86 : f32 to vector<8x32xf32>
    %265 = arith.addf %264, %263 : vector<8x32xf32>
    %266 = arith.divf %264, %265 : vector<8x32xf32>
    %267 = vector.extract_strided_slice %254 {offsets = [0, 64], sizes = [8, 32], strides = [1, 1]} : vector<8x128xf32> to vector<8x32xf32>
    %268 = math.tanh %267 : vector<8x32xf32>
    %269 = vector.extract_strided_slice %254 {offsets = [0, 96], sizes = [8, 32], strides = [1, 1]} : vector<8x128xf32> to vector<8x32xf32>
    %270 = arith.negf %269 : vector<8x32xf32>
    %271 = math.exp %270 : vector<8x32xf32>
    %cst_87 = arith.constant 1.000000e+00 : f32
    %272 = vector.broadcast %cst_87 : f32 to vector<8x32xf32>
    %273 = arith.addf %272, %271 : vector<8x32xf32>
    %274 = arith.divf %272, %273 : vector<8x32xf32>
    %275 = arith.mulf %266, %195 : vector<8x32xf32>
    %276 = arith.mulf %260, %268 : vector<8x32xf32>
    %277 = arith.addf %275, %276 : vector<8x32xf32>
    %278 = math.tanh %277 : vector<8x32xf32>
    %279 = arith.mulf %274, %278 : vector<8x32xf32>
    %280 = vector.shape_cast %213 : vector<8x1xi1> to vector<8x1xi1>
    %281 = vector.broadcast %280 : vector<8x1xi1> to vector<8x32xi1>
    %282 = arith.select %281, %277, %195 : vector<8x32xi1>, vector<8x32xf32>
    %283 = vector.shape_cast %213 : vector<8x1xi1> to vector<8x1xi1>
    %284 = vector.broadcast %283 : vector<8x1xi1> to vector<8x32xi1>
    %285 = arith.select %284, %279, %198 : vector<8x32xi1>, vector<8x32xf32>
    %cst_88 = arith.constant 0.000000e+00 : f32
    %286 = vector.shape_cast %213 : vector<8x1xi1> to vector<8x1xi1>
    %287 = vector.broadcast %286 : vector<8x1xi1> to vector<8x32xi1>
    %288 = vector.broadcast %cst_88 : f32 to vector<8x32xf32>
    %289 = arith.select %287, %279, %288 : vector<8x32xi1>, vector<8x32xf32>
    %c0_89 = arith.constant 0 : index
    %c16_90 = arith.constant 16 : index
    %c0_91 = arith.constant 0 : index
    %290 = vector.load %arg7[%c0_89, %c16_90, %c0_91] : memref<1x64x32xf32, #tpu.memory_space<vmem>>, vector<1x8x32xf32>
    %291 = vector.shape_cast %290 : vector<1x8x32xf32> to vector<8x32xf32>
    %292 = vector.shape_cast %252 : vector<8x32xf32> to vector<1x8x32xf32>
    tpu.vector_store %arg7[%c0_89, %c16_90, %c0_91], %292 {strides = array<i32>} : memref<1x64x32xf32, #tpu.memory_space<vmem>>, vector<1x8x32xf32>,
    %c0_92 = arith.constant 0 : index
    %c40_93 = arith.constant 40 : index
    %c0_94 = arith.constant 0 : index
    %293 = vector.load %arg8[%c0_92, %c40_93, %c0_94] : memref<1x64x32xf32, #tpu.memory_space<vmem>>, vector<1x8x32xf32>
    %294 = vector.shape_cast %293 : vector<1x8x32xf32> to vector<8x32xf32>
    %295 = vector.shape_cast %289 : vector<8x32xf32> to vector<1x8x32xf32>
    tpu.vector_store %arg8[%c0_92, %c40_93, %c0_94], %295 {strides = array<i32>} : memref<1x64x32xf32, #tpu.memory_space<vmem>>, vector<1x8x32xf32>,
    %c3_i32 = arith.constant 3 : i32
    %296 = arith.addi %30, %c3_i32 : i32
    %297 = vector.broadcast %296 : i32 to vector<8x1xi32>
    %298 = arith.cmpi slt, %297, %27 : vector<8x1xi32>
    %299 = vector.broadcast %296 : i32 to vector<8x1xi32>
    %300 = arith.cmpi sge, %299, %29 : vector<8x1xi32>
    %c24 = arith.constant 24 : index
    %c0_95 = arith.constant 0 : index
    %301 = vector.load %arg13[%c24, %c0_95] : memref<64x128xf32, #tpu.memory_space<vmem>>, vector<8x128xf32>
    %c32 = arith.constant 32 : index
    %c0_96 = arith.constant 0 : index
    %302 = vector.load %arg14[%c32, %c0_96] : memref<64x128xf32, #tpu.memory_space<vmem>>, vector<8x128xf32>
    %cst_97 = arith.constant dense<0.000000e+00> : vector<8x128xf32>
    %303 = tpu.matmul %248, %24, %cst_97 {dimension_numbers = #tpu.dot_dimension_numbers<[1], [0], [0], [1], [0, 0, 1, 1], [], []>} : vector<8x32xf32>, vector<32x128xf32>, vector<8x128xf32> -> vector<8x128xf32>
    %304 = arith.addf %303, %301 : vector<8x128xf32>
    %305 = vector.extract_strided_slice %304 {offsets = [0, 0], sizes = [8, 32], strides = [1, 1]} : vector<8x128xf32> to vector<8x32xf32>
    %306 = arith.negf %305 : vector<8x32xf32>
    %307 = math.exp %306 : vector<8x32xf32>
    %cst_98 = arith.constant 1.000000e+00 : f32
    %308 = vector.broadcast %cst_98 : f32 to vector<8x32xf32>
    %309 = arith.addf %308, %307 : vector<8x32xf32>
    %310 = arith.divf %308, %309 : vector<8x32xf32>
    %311 = vector.extract_strided_slice %304 {offsets = [0, 32], sizes = [8, 32], strides = [1, 1]} : vector<8x128xf32> to vector<8x32xf32>
    %312 = arith.negf %311 : vector<8x32xf32>
    %313 = math.exp %312 : vector<8x32xf32>
    %cst_99 = arith.constant 1.000000e+00 : f32
    %314 = vector.broadcast %cst_99 : f32 to vector<8x32xf32>
    %315 = arith.addf %314, %313 : vector<8x32xf32>
    %316 = arith.divf %314, %315 : vector<8x32xf32>
    %317 = vector.extract_strided_slice %304 {offsets = [0, 64], sizes = [8, 32], strides = [1, 1]} : vector<8x128xf32> to vector<8x32xf32>
    %318 = math.tanh %317 : vector<8x32xf32>
    %319 = vector.extract_strided_slice %304 {offsets = [0, 96], sizes = [8, 32], strides = [1, 1]} : vector<8x128xf32> to vector<8x32xf32>
    %320 = arith.negf %319 : vector<8x32xf32>
    %321 = math.exp %320 : vector<8x32xf32>
    %cst_100 = arith.constant 1.000000e+00 : f32
    %322 = vector.broadcast %cst_100 : f32 to vector<8x32xf32>
    %323 = arith.addf %322, %321 : vector<8x32xf32>
    %324 = arith.divf %322, %323 : vector<8x32xf32>
    %325 = arith.mulf %316, %245 : vector<8x32xf32>
    %326 = arith.mulf %310, %318 : vector<8x32xf32>
    %327 = arith.addf %325, %326 : vector<8x32xf32>
    %328 = math.tanh %327 : vector<8x32xf32>
    %329 = arith.mulf %324, %328 : vector<8x32xf32>
    %330 = vector.shape_cast %298 : vector<8x1xi1> to vector<8x1xi1>
    %331 = vector.broadcast %330 : vector<8x1xi1> to vector<8x32xi1>
    %332 = arith.select %331, %327, %245 : vector<8x32xi1>, vector<8x32xf32>
    %333 = vector.shape_cast %298 : vector<8x1xi1> to vector<8x1xi1>
    %334 = vector.broadcast %333 : vector<8x1xi1> to vector<8x32xi1>
    %335 = arith.select %334, %329, %248 : vector<8x32xi1>, vector<8x32xf32>
    %cst_101 = arith.constant 0.000000e+00 : f32
    %336 = vector.shape_cast %298 : vector<8x1xi1> to vector<8x1xi1>
    %337 = vector.broadcast %336 : vector<8x1xi1> to vector<8x32xi1>
    %338 = vector.broadcast %cst_101 : f32 to vector<8x32xf32>
    %339 = arith.select %337, %329, %338 : vector<8x32xi1>, vector<8x32xf32>
    %cst_102 = arith.constant dense<0.000000e+00> : vector<8x128xf32>
    %340 = tpu.matmul %285, %26, %cst_102 {dimension_numbers = #tpu.dot_dimension_numbers<[1], [0], [0], [1], [0, 0, 1, 1], [], []>} : vector<8x32xf32>, vector<32x128xf32>, vector<8x128xf32> -> vector<8x128xf32>
    %341 = arith.addf %340, %302 : vector<8x128xf32>
    %342 = vector.extract_strided_slice %341 {offsets = [0, 0], sizes = [8, 32], strides = [1, 1]} : vector<8x128xf32> to vector<8x32xf32>
    %343 = arith.negf %342 : vector<8x32xf32>
    %344 = math.exp %343 : vector<8x32xf32>
    %cst_103 = arith.constant 1.000000e+00 : f32
    %345 = vector.broadcast %cst_103 : f32 to vector<8x32xf32>
    %346 = arith.addf %345, %344 : vector<8x32xf32>
    %347 = arith.divf %345, %346 : vector<8x32xf32>
    %348 = vector.extract_strided_slice %341 {offsets = [0, 32], sizes = [8, 32], strides = [1, 1]} : vector<8x128xf32> to vector<8x32xf32>
    %349 = arith.negf %348 : vector<8x32xf32>
    %350 = math.exp %349 : vector<8x32xf32>
    %cst_104 = arith.constant 1.000000e+00 : f32
    %351 = vector.broadcast %cst_104 : f32 to vector<8x32xf32>
    %352 = arith.addf %351, %350 : vector<8x32xf32>
    %353 = arith.divf %351, %352 : vector<8x32xf32>
    %354 = vector.extract_strided_slice %341 {offsets = [0, 64], sizes = [8, 32], strides = [1, 1]} : vector<8x128xf32> to vector<8x32xf32>
    %355 = math.tanh %354 : vector<8x32xf32>
    %356 = vector.extract_strided_slice %341 {offsets = [0, 96], sizes = [8, 32], strides = [1, 1]} : vector<8x128xf32> to vector<8x32xf32>
    %357 = arith.negf %356 : vector<8x32xf32>
    %358 = math.exp %357 : vector<8x32xf32>
    %cst_105 = arith.constant 1.000000e+00 : f32
    %359 = vector.broadcast %cst_105 : f32 to vector<8x32xf32>
    %360 = arith.addf %359, %358 : vector<8x32xf32>
    %361 = arith.divf %359, %360 : vector<8x32xf32>
    %362 = arith.mulf %353, %282 : vector<8x32xf32>
    %363 = arith.mulf %347, %355 : vector<8x32xf32>
    %364 = arith.addf %362, %363 : vector<8x32xf32>
    %365 = math.tanh %364 : vector<8x32xf32>
    %366 = arith.mulf %361, %365 : vector<8x32xf32>
    %367 = vector.shape_cast %300 : vector<8x1xi1> to vector<8x1xi1>
    %368 = vector.broadcast %367 : vector<8x1xi1> to vector<8x32xi1>
    %369 = arith.select %368, %364, %282 : vector<8x32xi1>, vector<8x32xf32>
    %370 = vector.shape_cast %300 : vector<8x1xi1> to vector<8x1xi1>
    %371 = vector.broadcast %370 : vector<8x1xi1> to vector<8x32xi1>
    %372 = arith.select %371, %366, %285 : vector<8x32xi1>, vector<8x32xf32>
    %cst_106 = arith.constant 0.000000e+00 : f32
    %373 = vector.shape_cast %300 : vector<8x1xi1> to vector<8x1xi1>
    %374 = vector.broadcast %373 : vector<8x1xi1> to vector<8x32xi1>
    %375 = vector.broadcast %cst_106 : f32 to vector<8x32xf32>
    %376 = arith.select %374, %366, %375 : vector<8x32xi1>, vector<8x32xf32>
    %c0_107 = arith.constant 0 : index
    %c24_108 = arith.constant 24 : index
    %c0_109 = arith.constant 0 : index
    %377 = vector.load %arg7[%c0_107, %c24_108, %c0_109] : memref<1x64x32xf32, #tpu.memory_space<vmem>>, vector<1x8x32xf32>
    %378 = vector.shape_cast %377 : vector<1x8x32xf32> to vector<8x32xf32>
    %379 = vector.shape_cast %339 : vector<8x32xf32> to vector<1x8x32xf32>
    tpu.vector_store %arg7[%c0_107, %c24_108, %c0_109], %379 {strides = array<i32>} : memref<1x64x32xf32, #tpu.memory_space<vmem>>, vector<1x8x32xf32>,
    %c0_110 = arith.constant 0 : index
    %c32_111 = arith.constant 32 : index
    %c0_112 = arith.constant 0 : index
    %380 = vector.load %arg8[%c0_110, %c32_111, %c0_112] : memref<1x64x32xf32, #tpu.memory_space<vmem>>, vector<1x8x32xf32>
    %381 = vector.shape_cast %380 : vector<1x8x32xf32> to vector<8x32xf32>
    %382 = vector.shape_cast %376 : vector<8x32xf32> to vector<1x8x32xf32>
    tpu.vector_store %arg8[%c0_110, %c32_111, %c0_112], %382 {strides = array<i32>} : memref<1x64x32xf32, #tpu.memory_space<vmem>>, vector<1x8x32xf32>,
    %c4_i32 = arith.constant 4 : i32
    %383 = arith.addi %30, %c4_i32 : i32
    %384 = vector.broadcast %383 : i32 to vector<8x1xi32>
    %385 = arith.cmpi slt, %384, %27 : vector<8x1xi32>
    %386 = vector.broadcast %383 : i32 to vector<8x1xi32>
    %387 = arith.cmpi sge, %386, %29 : vector<8x1xi32>
    %c32_113 = arith.constant 32 : index
    %c0_114 = arith.constant 0 : index
    %388 = vector.load %arg13[%c32_113, %c0_114] : memref<64x128xf32, #tpu.memory_space<vmem>>, vector<8x128xf32>
    %c24_115 = arith.constant 24 : index
    %c0_116 = arith.constant 0 : index
    %389 = vector.load %arg14[%c24_115, %c0_116] : memref<64x128xf32, #tpu.memory_space<vmem>>, vector<8x128xf32>
    %cst_117 = arith.constant dense<0.000000e+00> : vector<8x128xf32>
    %390 = tpu.matmul %335, %24, %cst_117 {dimension_numbers = #tpu.dot_dimension_numbers<[1], [0], [0], [1], [0, 0, 1, 1], [], []>} : vector<8x32xf32>, vector<32x128xf32>, vector<8x128xf32> -> vector<8x128xf32>
    %391 = arith.addf %390, %388 : vector<8x128xf32>
    %392 = vector.extract_strided_slice %391 {offsets = [0, 0], sizes = [8, 32], strides = [1, 1]} : vector<8x128xf32> to vector<8x32xf32>
    %393 = arith.negf %392 : vector<8x32xf32>
    %394 = math.exp %393 : vector<8x32xf32>
    %cst_118 = arith.constant 1.000000e+00 : f32
    %395 = vector.broadcast %cst_118 : f32 to vector<8x32xf32>
    %396 = arith.addf %395, %394 : vector<8x32xf32>
    %397 = arith.divf %395, %396 : vector<8x32xf32>
    %398 = vector.extract_strided_slice %391 {offsets = [0, 32], sizes = [8, 32], strides = [1, 1]} : vector<8x128xf32> to vector<8x32xf32>
    %399 = arith.negf %398 : vector<8x32xf32>
    %400 = math.exp %399 : vector<8x32xf32>
    %cst_119 = arith.constant 1.000000e+00 : f32
    %401 = vector.broadcast %cst_119 : f32 to vector<8x32xf32>
    %402 = arith.addf %401, %400 : vector<8x32xf32>
    %403 = arith.divf %401, %402 : vector<8x32xf32>
    %404 = vector.extract_strided_slice %391 {offsets = [0, 64], sizes = [8, 32], strides = [1, 1]} : vector<8x128xf32> to vector<8x32xf32>
    %405 = math.tanh %404 : vector<8x32xf32>
    %406 = vector.extract_strided_slice %391 {offsets = [0, 96], sizes = [8, 32], strides = [1, 1]} : vector<8x128xf32> to vector<8x32xf32>
    %407 = arith.negf %406 : vector<8x32xf32>
    %408 = math.exp %407 : vector<8x32xf32>
    %cst_120 = arith.constant 1.000000e+00 : f32
    %409 = vector.broadcast %cst_120 : f32 to vector<8x32xf32>
    %410 = arith.addf %409, %408 : vector<8x32xf32>
    %411 = arith.divf %409, %410 : vector<8x32xf32>
    %412 = arith.mulf %403, %332 : vector<8x32xf32>
    %413 = arith.mulf %397, %405 : vector<8x32xf32>
    %414 = arith.addf %412, %413 : vector<8x32xf32>
    %415 = math.tanh %414 : vector<8x32xf32>
    %416 = arith.mulf %411, %415 : vector<8x32xf32>
    %417 = vector.shape_cast %385 : vector<8x1xi1> to vector<8x1xi1>
    %418 = vector.broadcast %417 : vector<8x1xi1> to vector<8x32xi1>
    %419 = arith.select %418, %414, %332 : vector<8x32xi1>, vector<8x32xf32>
    %420 = vector.shape_cast %385 : vector<8x1xi1> to vector<8x1xi1>
    %421 = vector.broadcast %420 : vector<8x1xi1> to vector<8x32xi1>
    %422 = arith.select %421, %416, %335 : vector<8x32xi1>, vector<8x32xf32>
    %cst_121 = arith.constant 0.000000e+00 : f32
    %423 = vector.shape_cast %385 : vector<8x1xi1> to vector<8x1xi1>
    %424 = vector.broadcast %423 : vector<8x1xi1> to vector<8x32xi1>
    %425 = vector.broadcast %cst_121 : f32 to vector<8x32xf32>
    %426 = arith.select %424, %416, %425 : vector<8x32xi1>, vector<8x32xf32>
    %cst_122 = arith.constant dense<0.000000e+00> : vector<8x128xf32>
    %427 = tpu.matmul %372, %26, %cst_122 {dimension_numbers = #tpu.dot_dimension_numbers<[1], [0], [0], [1], [0, 0, 1, 1], [], []>} : vector<8x32xf32>, vector<32x128xf32>, vector<8x128xf32> -> vector<8x128xf32>
    %428 = arith.addf %427, %389 : vector<8x128xf32>
    %429 = vector.extract_strided_slice %428 {offsets = [0, 0], sizes = [8, 32], strides = [1, 1]} : vector<8x128xf32> to vector<8x32xf32>
    %430 = arith.negf %429 : vector<8x32xf32>
    %431 = math.exp %430 : vector<8x32xf32>
    %cst_123 = arith.constant 1.000000e+00 : f32
    %432 = vector.broadcast %cst_123 : f32 to vector<8x32xf32>
    %433 = arith.addf %432, %431 : vector<8x32xf32>
    %434 = arith.divf %432, %433 : vector<8x32xf32>
    %435 = vector.extract_strided_slice %428 {offsets = [0, 32], sizes = [8, 32], strides = [1, 1]} : vector<8x128xf32> to vector<8x32xf32>
    %436 = arith.negf %435 : vector<8x32xf32>
    %437 = math.exp %436 : vector<8x32xf32>
    %cst_124 = arith.constant 1.000000e+00 : f32
    %438 = vector.broadcast %cst_124 : f32 to vector<8x32xf32>
    %439 = arith.addf %438, %437 : vector<8x32xf32>
    %440 = arith.divf %438, %439 : vector<8x32xf32>
    %441 = vector.extract_strided_slice %428 {offsets = [0, 64], sizes = [8, 32], strides = [1, 1]} : vector<8x128xf32> to vector<8x32xf32>
    %442 = math.tanh %441 : vector<8x32xf32>
    %443 = vector.extract_strided_slice %428 {offsets = [0, 96], sizes = [8, 32], strides = [1, 1]} : vector<8x128xf32> to vector<8x32xf32>
    %444 = arith.negf %443 : vector<8x32xf32>
    %445 = math.exp %444 : vector<8x32xf32>
    %cst_125 = arith.constant 1.000000e+00 : f32
    %446 = vector.broadcast %cst_125 : f32 to vector<8x32xf32>
    %447 = arith.addf %446, %445 : vector<8x32xf32>
    %448 = arith.divf %446, %447 : vector<8x32xf32>
    %449 = arith.mulf %440, %369 : vector<8x32xf32>
    %450 = arith.mulf %434, %442 : vector<8x32xf32>
    %451 = arith.addf %449, %450 : vector<8x32xf32>
    %452 = math.tanh %451 : vector<8x32xf32>
    %453 = arith.mulf %448, %452 : vector<8x32xf32>
    %454 = vector.shape_cast %387 : vector<8x1xi1> to vector<8x1xi1>
    %455 = vector.broadcast %454 : vector<8x1xi1> to vector<8x32xi1>
    %456 = arith.select %455, %451, %369 : vector<8x32xi1>, vector<8x32xf32>
    %457 = vector.shape_cast %387 : vector<8x1xi1> to vector<8x1xi1>
    %458 = vector.broadcast %457 : vector<8x1xi1> to vector<8x32xi1>
    %459 = arith.select %458, %453, %372 : vector<8x32xi1>, vector<8x32xf32>
    %cst_126 = arith.constant 0.000000e+00 : f32
    %460 = vector.shape_cast %387 : vector<8x1xi1> to vector<8x1xi1>
    %461 = vector.broadcast %460 : vector<8x1xi1> to vector<8x32xi1>
    %462 = vector.broadcast %cst_126 : f32 to vector<8x32xf32>
    %463 = arith.select %461, %453, %462 : vector<8x32xi1>, vector<8x32xf32>
    %c0_127 = arith.constant 0 : index
    %c32_128 = arith.constant 32 : index
    %c0_129 = arith.constant 0 : index
    %464 = vector.load %arg7[%c0_127, %c32_128, %c0_129] : memref<1x64x32xf32, #tpu.memory_space<vmem>>, vector<1x8x32xf32>
    %465 = vector.shape_cast %464 : vector<1x8x32xf32> to vector<8x32xf32>
    %466 = vector.shape_cast %426 : vector<8x32xf32> to vector<1x8x32xf32>
    tpu.vector_store %arg7[%c0_127, %c32_128, %c0_129], %466 {strides = array<i32>} : memref<1x64x32xf32, #tpu.memory_space<vmem>>, vector<1x8x32xf32>,
    %c0_130 = arith.constant 0 : index
    %c24_131 = arith.constant 24 : index
    %c0_132 = arith.constant 0 : index
    %467 = vector.load %arg8[%c0_130, %c24_131, %c0_132] : memref<1x64x32xf32, #tpu.memory_space<vmem>>, vector<1x8x32xf32>
    %468 = vector.shape_cast %467 : vector<1x8x32xf32> to vector<8x32xf32>
    %469 = vector.shape_cast %463 : vector<8x32xf32> to vector<1x8x32xf32>
    tpu.vector_store %arg8[%c0_130, %c24_131, %c0_132], %469 {strides = array<i32>} : memref<1x64x32xf32, #tpu.memory_space<vmem>>, vector<1x8x32xf32>,
    %c5_i32 = arith.constant 5 : i32
    %470 = arith.addi %30, %c5_i32 : i32
    %471 = vector.broadcast %470 : i32 to vector<8x1xi32>
    %472 = arith.cmpi slt, %471, %27 : vector<8x1xi32>
    %473 = vector.broadcast %470 : i32 to vector<8x1xi32>
    %474 = arith.cmpi sge, %473, %29 : vector<8x1xi32>
    %c40_133 = arith.constant 40 : index
    %c0_134 = arith.constant 0 : index
    %475 = vector.load %arg13[%c40_133, %c0_134] : memref<64x128xf32, #tpu.memory_space<vmem>>, vector<8x128xf32>
    %c16_135 = arith.constant 16 : index
    %c0_136 = arith.constant 0 : index
    %476 = vector.load %arg14[%c16_135, %c0_136] : memref<64x128xf32, #tpu.memory_space<vmem>>, vector<8x128xf32>
    %cst_137 = arith.constant dense<0.000000e+00> : vector<8x128xf32>
    %477 = tpu.matmul %422, %24, %cst_137 {dimension_numbers = #tpu.dot_dimension_numbers<[1], [0], [0], [1], [0, 0, 1, 1], [], []>} : vector<8x32xf32>, vector<32x128xf32>, vector<8x128xf32> -> vector<8x128xf32>
    %478 = arith.addf %477, %475 : vector<8x128xf32>
    %479 = vector.extract_strided_slice %478 {offsets = [0, 0], sizes = [8, 32], strides = [1, 1]} : vector<8x128xf32> to vector<8x32xf32>
    %480 = arith.negf %479 : vector<8x32xf32>
    %481 = math.exp %480 : vector<8x32xf32>
    %cst_138 = arith.constant 1.000000e+00 : f32
    %482 = vector.broadcast %cst_138 : f32 to vector<8x32xf32>
    %483 = arith.addf %482, %481 : vector<8x32xf32>
    %484 = arith.divf %482, %483 : vector<8x32xf32>
    %485 = vector.extract_strided_slice %478 {offsets = [0, 32], sizes = [8, 32], strides = [1, 1]} : vector<8x128xf32> to vector<8x32xf32>
    %486 = arith.negf %485 : vector<8x32xf32>
    %487 = math.exp %486 : vector<8x32xf32>
    %cst_139 = arith.constant 1.000000e+00 : f32
    %488 = vector.broadcast %cst_139 : f32 to vector<8x32xf32>
    %489 = arith.addf %488, %487 : vector<8x32xf32>
    %490 = arith.divf %488, %489 : vector<8x32xf32>
    %491 = vector.extract_strided_slice %478 {offsets = [0, 64], sizes = [8, 32], strides = [1, 1]} : vector<8x128xf32> to vector<8x32xf32>
    %492 = math.tanh %491 : vector<8x32xf32>
    %493 = vector.extract_strided_slice %478 {offsets = [0, 96], sizes = [8, 32], strides = [1, 1]} : vector<8x128xf32> to vector<8x32xf32>
    %494 = arith.negf %493 : vector<8x32xf32>
    %495 = math.exp %494 : vector<8x32xf32>
    %cst_140 = arith.constant 1.000000e+00 : f32
    %496 = vector.broadcast %cst_140 : f32 to vector<8x32xf32>
    %497 = arith.addf %496, %495 : vector<8x32xf32>
    %498 = arith.divf %496, %497 : vector<8x32xf32>
    %499 = arith.mulf %490, %419 : vector<8x32xf32>
    %500 = arith.mulf %484, %492 : vector<8x32xf32>
    %501 = arith.addf %499, %500 : vector<8x32xf32>
    %502 = math.tanh %501 : vector<8x32xf32>
    %503 = arith.mulf %498, %502 : vector<8x32xf32>
    %504 = vector.shape_cast %472 : vector<8x1xi1> to vector<8x1xi1>
    %505 = vector.broadcast %504 : vector<8x1xi1> to vector<8x32xi1>
    %506 = arith.select %505, %501, %419 : vector<8x32xi1>, vector<8x32xf32>
    %507 = vector.shape_cast %472 : vector<8x1xi1> to vector<8x1xi1>
    %508 = vector.broadcast %507 : vector<8x1xi1> to vector<8x32xi1>
    %509 = arith.select %508, %503, %422 : vector<8x32xi1>, vector<8x32xf32>
    %cst_141 = arith.constant 0.000000e+00 : f32
    %510 = vector.shape_cast %472 : vector<8x1xi1> to vector<8x1xi1>
    %511 = vector.broadcast %510 : vector<8x1xi1> to vector<8x32xi1>
    %512 = vector.broadcast %cst_141 : f32 to vector<8x32xf32>
    %513 = arith.select %511, %503, %512 : vector<8x32xi1>, vector<8x32xf32>
    %cst_142 = arith.constant dense<0.000000e+00> : vector<8x128xf32>
    %514 = tpu.matmul %459, %26, %cst_142 {dimension_numbers = #tpu.dot_dimension_numbers<[1], [0], [0], [1], [0, 0, 1, 1], [], []>} : vector<8x32xf32>, vector<32x128xf32>, vector<8x128xf32> -> vector<8x128xf32>
    %515 = arith.addf %514, %476 : vector<8x128xf32>
    %516 = vector.extract_strided_slice %515 {offsets = [0, 0], sizes = [8, 32], strides = [1, 1]} : vector<8x128xf32> to vector<8x32xf32>
    %517 = arith.negf %516 : vector<8x32xf32>
    %518 = math.exp %517 : vector<8x32xf32>
    %cst_143 = arith.constant 1.000000e+00 : f32
    %519 = vector.broadcast %cst_143 : f32 to vector<8x32xf32>
    %520 = arith.addf %519, %518 : vector<8x32xf32>
    %521 = arith.divf %519, %520 : vector<8x32xf32>
    %522 = vector.extract_strided_slice %515 {offsets = [0, 32], sizes = [8, 32], strides = [1, 1]} : vector<8x128xf32> to vector<8x32xf32>
    %523 = arith.negf %522 : vector<8x32xf32>
    %524 = math.exp %523 : vector<8x32xf32>
    %cst_144 = arith.constant 1.000000e+00 : f32
    %525 = vector.broadcast %cst_144 : f32 to vector<8x32xf32>
    %526 = arith.addf %525, %524 : vector<8x32xf32>
    %527 = arith.divf %525, %526 : vector<8x32xf32>
    %528 = vector.extract_strided_slice %515 {offsets = [0, 64], sizes = [8, 32], strides = [1, 1]} : vector<8x128xf32> to vector<8x32xf32>
    %529 = math.tanh %528 : vector<8x32xf32>
    %530 = vector.extract_strided_slice %515 {offsets = [0, 96], sizes = [8, 32], strides = [1, 1]} : vector<8x128xf32> to vector<8x32xf32>
    %531 = arith.negf %530 : vector<8x32xf32>
    %532 = math.exp %531 : vector<8x32xf32>
    %cst_145 = arith.constant 1.000000e+00 : f32
    %533 = vector.broadcast %cst_145 : f32 to vector<8x32xf32>
    %534 = arith.addf %533, %532 : vector<8x32xf32>
    %535 = arith.divf %533, %534 : vector<8x32xf32>
    %536 = arith.mulf %527, %456 : vector<8x32xf32>
    %537 = arith.mulf %521, %529 : vector<8x32xf32>
    %538 = arith.addf %536, %537 : vector<8x32xf32>
    %539 = math.tanh %538 : vector<8x32xf32>
    %540 = arith.mulf %535, %539 : vector<8x32xf32>
    %541 = vector.shape_cast %474 : vector<8x1xi1> to vector<8x1xi1>
    %542 = vector.broadcast %541 : vector<8x1xi1> to vector<8x32xi1>
    %543 = arith.select %542, %538, %456 : vector<8x32xi1>, vector<8x32xf32>
    %544 = vector.shape_cast %474 : vector<8x1xi1> to vector<8x1xi1>
    %545 = vector.broadcast %544 : vector<8x1xi1> to vector<8x32xi1>
    %546 = arith.select %545, %540, %459 : vector<8x32xi1>, vector<8x32xf32>
    %cst_146 = arith.constant 0.000000e+00 : f32
    %547 = vector.shape_cast %474 : vector<8x1xi1> to vector<8x1xi1>
    %548 = vector.broadcast %547 : vector<8x1xi1> to vector<8x32xi1>
    %549 = vector.broadcast %cst_146 : f32 to vector<8x32xf32>
    %550 = arith.select %548, %540, %549 : vector<8x32xi1>, vector<8x32xf32>
    %c0_147 = arith.constant 0 : index
    %c40_148 = arith.constant 40 : index
    %c0_149 = arith.constant 0 : index
    %551 = vector.load %arg7[%c0_147, %c40_148, %c0_149] : memref<1x64x32xf32, #tpu.memory_space<vmem>>, vector<1x8x32xf32>
    %552 = vector.shape_cast %551 : vector<1x8x32xf32> to vector<8x32xf32>
    %553 = vector.shape_cast %513 : vector<8x32xf32> to vector<1x8x32xf32>
    tpu.vector_store %arg7[%c0_147, %c40_148, %c0_149], %553 {strides = array<i32>} : memref<1x64x32xf32, #tpu.memory_space<vmem>>, vector<1x8x32xf32>,
    %c0_150 = arith.constant 0 : index
    %c16_151 = arith.constant 16 : index
    %c0_152 = arith.constant 0 : index
    %554 = vector.load %arg8[%c0_150, %c16_151, %c0_152] : memref<1x64x32xf32, #tpu.memory_space<vmem>>, vector<1x8x32xf32>
    %555 = vector.shape_cast %554 : vector<1x8x32xf32> to vector<8x32xf32>
    %556 = vector.shape_cast %550 : vector<8x32xf32> to vector<1x8x32xf32>
    tpu.vector_store %arg8[%c0_150, %c16_151, %c0_152], %556 {strides = array<i32>} : memref<1x64x32xf32, #tpu.memory_space<vmem>>, vector<1x8x32xf32>,
    %c6_i32 = arith.constant 6 : i32
    %557 = arith.addi %30, %c6_i32 : i32
    %558 = vector.broadcast %557 : i32 to vector<8x1xi32>
    %559 = arith.cmpi slt, %558, %27 : vector<8x1xi32>
    %560 = vector.broadcast %557 : i32 to vector<8x1xi32>
    %561 = arith.cmpi sge, %560, %29 : vector<8x1xi32>
    %c48_153 = arith.constant 48 : index
    %c0_154 = arith.constant 0 : index
    %562 = vector.load %arg13[%c48_153, %c0_154] : memref<64x128xf32, #tpu.memory_space<vmem>>, vector<8x128xf32>
    %c8_155 = arith.constant 8 : index
    %c0_156 = arith.constant 0 : index
    %563 = vector.load %arg14[%c8_155, %c0_156] : memref<64x128xf32, #tpu.memory_space<vmem>>, vector<8x128xf32>
    %cst_157 = arith.constant dense<0.000000e+00> : vector<8x128xf32>
    %564 = tpu.matmul %509, %24, %cst_157 {dimension_numbers = #tpu.dot_dimension_numbers<[1], [0], [0], [1], [0, 0, 1, 1], [], []>} : vector<8x32xf32>, vector<32x128xf32>, vector<8x128xf32> -> vector<8x128xf32>
    %565 = arith.addf %564, %562 : vector<8x128xf32>
    %566 = vector.extract_strided_slice %565 {offsets = [0, 0], sizes = [8, 32], strides = [1, 1]} : vector<8x128xf32> to vector<8x32xf32>
    %567 = arith.negf %566 : vector<8x32xf32>
    %568 = math.exp %567 : vector<8x32xf32>
    %cst_158 = arith.constant 1.000000e+00 : f32
    %569 = vector.broadcast %cst_158 : f32 to vector<8x32xf32>
    %570 = arith.addf %569, %568 : vector<8x32xf32>
    %571 = arith.divf %569, %570 : vector<8x32xf32>
    %572 = vector.extract_strided_slice %565 {offsets = [0, 32], sizes = [8, 32], strides = [1, 1]} : vector<8x128xf32> to vector<8x32xf32>
    %573 = arith.negf %572 : vector<8x32xf32>
    %574 = math.exp %573 : vector<8x32xf32>
    %cst_159 = arith.constant 1.000000e+00 : f32
    %575 = vector.broadcast %cst_159 : f32 to vector<8x32xf32>
    %576 = arith.addf %575, %574 : vector<8x32xf32>
    %577 = arith.divf %575, %576 : vector<8x32xf32>
    %578 = vector.extract_strided_slice %565 {offsets = [0, 64], sizes = [8, 32], strides = [1, 1]} : vector<8x128xf32> to vector<8x32xf32>
    %579 = math.tanh %578 : vector<8x32xf32>
    %580 = vector.extract_strided_slice %565 {offsets = [0, 96], sizes = [8, 32], strides = [1, 1]} : vector<8x128xf32> to vector<8x32xf32>
    %581 = arith.negf %580 : vector<8x32xf32>
    %582 = math.exp %581 : vector<8x32xf32>
    %cst_160 = arith.constant 1.000000e+00 : f32
    %583 = vector.broadcast %cst_160 : f32 to vector<8x32xf32>
    %584 = arith.addf %583, %582 : vector<8x32xf32>
    %585 = arith.divf %583, %584 : vector<8x32xf32>
    %586 = arith.mulf %577, %506 : vector<8x32xf32>
    %587 = arith.mulf %571, %579 : vector<8x32xf32>
    %588 = arith.addf %586, %587 : vector<8x32xf32>
    %589 = math.tanh %588 : vector<8x32xf32>
    %590 = arith.mulf %585, %589 : vector<8x32xf32>
    %591 = vector.shape_cast %559 : vector<8x1xi1> to vector<8x1xi1>
    %592 = vector.broadcast %591 : vector<8x1xi1> to vector<8x32xi1>
    %593 = arith.select %592, %588, %506 : vector<8x32xi1>, vector<8x32xf32>
    %594 = vector.shape_cast %559 : vector<8x1xi1> to vector<8x1xi1>
    %595 = vector.broadcast %594 : vector<8x1xi1> to vector<8x32xi1>
    %596 = arith.select %595, %590, %509 : vector<8x32xi1>, vector<8x32xf32>
    %cst_161 = arith.constant 0.000000e+00 : f32
    %597 = vector.shape_cast %559 : vector<8x1xi1> to vector<8x1xi1>
    %598 = vector.broadcast %597 : vector<8x1xi1> to vector<8x32xi1>
    %599 = vector.broadcast %cst_161 : f32 to vector<8x32xf32>
    %600 = arith.select %598, %590, %599 : vector<8x32xi1>, vector<8x32xf32>
    %cst_162 = arith.constant dense<0.000000e+00> : vector<8x128xf32>
    %601 = tpu.matmul %546, %26, %cst_162 {dimension_numbers = #tpu.dot_dimension_numbers<[1], [0], [0], [1], [0, 0, 1, 1], [], []>} : vector<8x32xf32>, vector<32x128xf32>, vector<8x128xf32> -> vector<8x128xf32>
    %602 = arith.addf %601, %563 : vector<8x128xf32>
    %603 = vector.extract_strided_slice %602 {offsets = [0, 0], sizes = [8, 32], strides = [1, 1]} : vector<8x128xf32> to vector<8x32xf32>
    %604 = arith.negf %603 : vector<8x32xf32>
    %605 = math.exp %604 : vector<8x32xf32>
    %cst_163 = arith.constant 1.000000e+00 : f32
    %606 = vector.broadcast %cst_163 : f32 to vector<8x32xf32>
    %607 = arith.addf %606, %605 : vector<8x32xf32>
    %608 = arith.divf %606, %607 : vector<8x32xf32>
    %609 = vector.extract_strided_slice %602 {offsets = [0, 32], sizes = [8, 32], strides = [1, 1]} : vector<8x128xf32> to vector<8x32xf32>
    %610 = arith.negf %609 : vector<8x32xf32>
    %611 = math.exp %610 : vector<8x32xf32>
    %cst_164 = arith.constant 1.000000e+00 : f32
    %612 = vector.broadcast %cst_164 : f32 to vector<8x32xf32>
    %613 = arith.addf %612, %611 : vector<8x32xf32>
    %614 = arith.divf %612, %613 : vector<8x32xf32>
    %615 = vector.extract_strided_slice %602 {offsets = [0, 64], sizes = [8, 32], strides = [1, 1]} : vector<8x128xf32> to vector<8x32xf32>
    %616 = math.tanh %615 : vector<8x32xf32>
    %617 = vector.extract_strided_slice %602 {offsets = [0, 96], sizes = [8, 32], strides = [1, 1]} : vector<8x128xf32> to vector<8x32xf32>
    %618 = arith.negf %617 : vector<8x32xf32>
    %619 = math.exp %618 : vector<8x32xf32>
    %cst_165 = arith.constant 1.000000e+00 : f32
    %620 = vector.broadcast %cst_165 : f32 to vector<8x32xf32>
    %621 = arith.addf %620, %619 : vector<8x32xf32>
    %622 = arith.divf %620, %621 : vector<8x32xf32>
    %623 = arith.mulf %614, %543 : vector<8x32xf32>
    %624 = arith.mulf %608, %616 : vector<8x32xf32>
    %625 = arith.addf %623, %624 : vector<8x32xf32>
    %626 = math.tanh %625 : vector<8x32xf32>
    %627 = arith.mulf %622, %626 : vector<8x32xf32>
    %628 = vector.shape_cast %561 : vector<8x1xi1> to vector<8x1xi1>
    %629 = vector.broadcast %628 : vector<8x1xi1> to vector<8x32xi1>
    %630 = arith.select %629, %625, %543 : vector<8x32xi1>, vector<8x32xf32>
    %631 = vector.shape_cast %561 : vector<8x1xi1> to vector<8x1xi1>
    %632 = vector.broadcast %631 : vector<8x1xi1> to vector<8x32xi1>
    %633 = arith.select %632, %627, %546 : vector<8x32xi1>, vector<8x32xf32>
    %cst_166 = arith.constant 0.000000e+00 : f32
    %634 = vector.shape_cast %561 : vector<8x1xi1> to vector<8x1xi1>
    %635 = vector.broadcast %634 : vector<8x1xi1> to vector<8x32xi1>
    %636 = vector.broadcast %cst_166 : f32 to vector<8x32xf32>
    %637 = arith.select %635, %627, %636 : vector<8x32xi1>, vector<8x32xf32>
    %c0_167 = arith.constant 0 : index
    %c48_168 = arith.constant 48 : index
    %c0_169 = arith.constant 0 : index
    %638 = vector.load %arg7[%c0_167, %c48_168, %c0_169] : memref<1x64x32xf32, #tpu.memory_space<vmem>>, vector<1x8x32xf32>
    %639 = vector.shape_cast %638 : vector<1x8x32xf32> to vector<8x32xf32>
    %640 = vector.shape_cast %600 : vector<8x32xf32> to vector<1x8x32xf32>
    tpu.vector_store %arg7[%c0_167, %c48_168, %c0_169], %640 {strides = array<i32>} : memref<1x64x32xf32, #tpu.memory_space<vmem>>, vector<1x8x32xf32>,
    %c0_170 = arith.constant 0 : index
    %c8_171 = arith.constant 8 : index
    %c0_172 = arith.constant 0 : index
    %641 = vector.load %arg8[%c0_170, %c8_171, %c0_172] : memref<1x64x32xf32, #tpu.memory_space<vmem>>, vector<1x8x32xf32>
    %642 = vector.shape_cast %641 : vector<1x8x32xf32> to vector<8x32xf32>
    %643 = vector.shape_cast %637 : vector<8x32xf32> to vector<1x8x32xf32>
    tpu.vector_store %arg8[%c0_170, %c8_171, %c0_172], %643 {strides = array<i32>} : memref<1x64x32xf32, #tpu.memory_space<vmem>>, vector<1x8x32xf32>,
    %c7_i32 = arith.constant 7 : i32
    %644 = arith.addi %30, %c7_i32 : i32
    %645 = vector.broadcast %644 : i32 to vector<8x1xi32>
    %646 = arith.cmpi slt, %645, %27 : vector<8x1xi32>
    %647 = vector.broadcast %644 : i32 to vector<8x1xi32>
    %648 = arith.cmpi sge, %647, %29 : vector<8x1xi32>
    %c56_173 = arith.constant 56 : index
    %c0_174 = arith.constant 0 : index
    %649 = vector.load %arg13[%c56_173, %c0_174] : memref<64x128xf32, #tpu.memory_space<vmem>>, vector<8x128xf32>
    %c0_175 = arith.constant 0 : index
    %c0_176 = arith.constant 0 : index
    %650 = vector.load %arg14[%c0_175, %c0_176] : memref<64x128xf32, #tpu.memory_space<vmem>>, vector<8x128xf32>
    %cst_177 = arith.constant dense<0.000000e+00> : vector<8x128xf32>
    %651 = tpu.matmul %596, %24, %cst_177 {dimension_numbers = #tpu.dot_dimension_numbers<[1], [0], [0], [1], [0, 0, 1, 1], [], []>} : vector<8x32xf32>, vector<32x128xf32>, vector<8x128xf32> -> vector<8x128xf32>
    %652 = arith.addf %651, %649 : vector<8x128xf32>
    %653 = vector.extract_strided_slice %652 {offsets = [0, 0], sizes = [8, 32], strides = [1, 1]} : vector<8x128xf32> to vector<8x32xf32>
    %654 = arith.negf %653 : vector<8x32xf32>
    %655 = math.exp %654 : vector<8x32xf32>
    %cst_178 = arith.constant 1.000000e+00 : f32
    %656 = vector.broadcast %cst_178 : f32 to vector<8x32xf32>
    %657 = arith.addf %656, %655 : vector<8x32xf32>
    %658 = arith.divf %656, %657 : vector<8x32xf32>
    %659 = vector.extract_strided_slice %652 {offsets = [0, 32], sizes = [8, 32], strides = [1, 1]} : vector<8x128xf32> to vector<8x32xf32>
    %660 = arith.negf %659 : vector<8x32xf32>
    %661 = math.exp %660 : vector<8x32xf32>
    %cst_179 = arith.constant 1.000000e+00 : f32
    %662 = vector.broadcast %cst_179 : f32 to vector<8x32xf32>
    %663 = arith.addf %662, %661 : vector<8x32xf32>
    %664 = arith.divf %662, %663 : vector<8x32xf32>
    %665 = vector.extract_strided_slice %652 {offsets = [0, 64], sizes = [8, 32], strides = [1, 1]} : vector<8x128xf32> to vector<8x32xf32>
    %666 = math.tanh %665 : vector<8x32xf32>
    %667 = vector.extract_strided_slice %652 {offsets = [0, 96], sizes = [8, 32], strides = [1, 1]} : vector<8x128xf32> to vector<8x32xf32>
    %668 = arith.negf %667 : vector<8x32xf32>
    %669 = math.exp %668 : vector<8x32xf32>
    %cst_180 = arith.constant 1.000000e+00 : f32
    %670 = vector.broadcast %cst_180 : f32 to vector<8x32xf32>
    %671 = arith.addf %670, %669 : vector<8x32xf32>
    %672 = arith.divf %670, %671 : vector<8x32xf32>
    %673 = arith.mulf %664, %593 : vector<8x32xf32>
    %674 = arith.mulf %658, %666 : vector<8x32xf32>
    %675 = arith.addf %673, %674 : vector<8x32xf32>
    %676 = math.tanh %675 : vector<8x32xf32>
    %677 = arith.mulf %672, %676 : vector<8x32xf32>
    %678 = vector.shape_cast %646 : vector<8x1xi1> to vector<8x1xi1>
    %679 = vector.broadcast %678 : vector<8x1xi1> to vector<8x32xi1>
    %680 = arith.select %679, %675, %593 : vector<8x32xi1>, vector<8x32xf32>
    %681 = vector.shape_cast %646 : vector<8x1xi1> to vector<8x1xi1>
    %682 = vector.broadcast %681 : vector<8x1xi1> to vector<8x32xi1>
    %683 = arith.select %682, %677, %596 : vector<8x32xi1>, vector<8x32xf32>
    %cst_181 = arith.constant 0.000000e+00 : f32
    %684 = vector.shape_cast %646 : vector<8x1xi1> to vector<8x1xi1>
    %685 = vector.broadcast %684 : vector<8x1xi1> to vector<8x32xi1>
    %686 = vector.broadcast %cst_181 : f32 to vector<8x32xf32>
    %687 = arith.select %685, %677, %686 : vector<8x32xi1>, vector<8x32xf32>
    %cst_182 = arith.constant dense<0.000000e+00> : vector<8x128xf32>
    %688 = tpu.matmul %633, %26, %cst_182 {dimension_numbers = #tpu.dot_dimension_numbers<[1], [0], [0], [1], [0, 0, 1, 1], [], []>} : vector<8x32xf32>, vector<32x128xf32>, vector<8x128xf32> -> vector<8x128xf32>
    %689 = arith.addf %688, %650 : vector<8x128xf32>
    %690 = vector.extract_strided_slice %689 {offsets = [0, 0], sizes = [8, 32], strides = [1, 1]} : vector<8x128xf32> to vector<8x32xf32>
    %691 = arith.negf %690 : vector<8x32xf32>
    %692 = math.exp %691 : vector<8x32xf32>
    %cst_183 = arith.constant 1.000000e+00 : f32
    %693 = vector.broadcast %cst_183 : f32 to vector<8x32xf32>
    %694 = arith.addf %693, %692 : vector<8x32xf32>
    %695 = arith.divf %693, %694 : vector<8x32xf32>
    %696 = vector.extract_strided_slice %689 {offsets = [0, 32], sizes = [8, 32], strides = [1, 1]} : vector<8x128xf32> to vector<8x32xf32>
    %697 = arith.negf %696 : vector<8x32xf32>
    %698 = math.exp %697 : vector<8x32xf32>
    %cst_184 = arith.constant 1.000000e+00 : f32
    %699 = vector.broadcast %cst_184 : f32 to vector<8x32xf32>
    %700 = arith.addf %699, %698 : vector<8x32xf32>
    %701 = arith.divf %699, %700 : vector<8x32xf32>
    %702 = vector.extract_strided_slice %689 {offsets = [0, 64], sizes = [8, 32], strides = [1, 1]} : vector<8x128xf32> to vector<8x32xf32>
    %703 = math.tanh %702 : vector<8x32xf32>
    %704 = vector.extract_strided_slice %689 {offsets = [0, 96], sizes = [8, 32], strides = [1, 1]} : vector<8x128xf32> to vector<8x32xf32>
    %705 = arith.negf %704 : vector<8x32xf32>
    %706 = math.exp %705 : vector<8x32xf32>
    %cst_185 = arith.constant 1.000000e+00 : f32
    %707 = vector.broadcast %cst_185 : f32 to vector<8x32xf32>
    %708 = arith.addf %707, %706 : vector<8x32xf32>
    %709 = arith.divf %707, %708 : vector<8x32xf32>
    %710 = arith.mulf %701, %630 : vector<8x32xf32>
    %711 = arith.mulf %695, %703 : vector<8x32xf32>
    %712 = arith.addf %710, %711 : vector<8x32xf32>
    %713 = math.tanh %712 : vector<8x32xf32>
    %714 = arith.mulf %709, %713 : vector<8x32xf32>
    %715 = vector.shape_cast %648 : vector<8x1xi1> to vector<8x1xi1>
    %716 = vector.broadcast %715 : vector<8x1xi1> to vector<8x32xi1>
    %717 = arith.select %716, %712, %630 : vector<8x32xi1>, vector<8x32xf32>
    %718 = vector.shape_cast %648 : vector<8x1xi1> to vector<8x1xi1>
    %719 = vector.broadcast %718 : vector<8x1xi1> to vector<8x32xi1>
    %720 = arith.select %719, %714, %633 : vector<8x32xi1>, vector<8x32xf32>
    %cst_186 = arith.constant 0.000000e+00 : f32
    %721 = vector.shape_cast %648 : vector<8x1xi1> to vector<8x1xi1>
    %722 = vector.broadcast %721 : vector<8x1xi1> to vector<8x32xi1>
    %723 = vector.broadcast %cst_186 : f32 to vector<8x32xf32>
    %724 = arith.select %722, %714, %723 : vector<8x32xi1>, vector<8x32xf32>
    %c0_187 = arith.constant 0 : index
    %c56_188 = arith.constant 56 : index
    %c0_189 = arith.constant 0 : index
    %725 = vector.load %arg7[%c0_187, %c56_188, %c0_189] : memref<1x64x32xf32, #tpu.memory_space<vmem>>, vector<1x8x32xf32>
    %726 = vector.shape_cast %725 : vector<1x8x32xf32> to vector<8x32xf32>
    %727 = vector.shape_cast %687 : vector<8x32xf32> to vector<1x8x32xf32>
    tpu.vector_store %arg7[%c0_187, %c56_188, %c0_189], %727 {strides = array<i32>} : memref<1x64x32xf32, #tpu.memory_space<vmem>>, vector<1x8x32xf32>,
    %c0_190 = arith.constant 0 : index
    %c0_191 = arith.constant 0 : index
    %c0_192 = arith.constant 0 : index
    %728 = vector.load %arg8[%c0_190, %c0_191, %c0_192] : memref<1x64x32xf32, #tpu.memory_space<vmem>>, vector<1x8x32xf32>
    %729 = vector.shape_cast %728 : vector<1x8x32xf32> to vector<8x32xf32>
    %730 = vector.shape_cast %724 : vector<8x32xf32> to vector<1x8x32xf32>
    tpu.vector_store %arg8[%c0_190, %c0_191, %c0_192], %730 {strides = array<i32>} : memref<1x64x32xf32, #tpu.memory_space<vmem>>, vector<1x8x32xf32>,
    %c0_193 = arith.constant 0 : index
    %c0_194 = arith.constant 0 : index
    %731 = vector.load %arg9[%c0_193, %c0_194] : memref<8x32xf32, #tpu.memory_space<vmem>>, vector<8x32xf32>
    tpu.vector_store %arg9[%c0_193, %c0_194], %683 {strides = array<i32>} : memref<8x32xf32, #tpu.memory_space<vmem>>, vector<8x32xf32>,
    %c0_195 = arith.constant 0 : index
    %c0_196 = arith.constant 0 : index
    %732 = vector.load %arg10[%c0_195, %c0_196] : memref<8x32xf32, #tpu.memory_space<vmem>>, vector<8x32xf32>
    tpu.vector_store %arg10[%c0_195, %c0_196], %680 {strides = array<i32>} : memref<8x32xf32, #tpu.memory_space<vmem>>, vector<8x32xf32>,
    %c0_197 = arith.constant 0 : index
    %c0_198 = arith.constant 0 : index
    %733 = vector.load %arg11[%c0_197, %c0_198] : memref<8x32xf32, #tpu.memory_space<vmem>>, vector<8x32xf32>
    tpu.vector_store %arg11[%c0_197, %c0_198], %720 {strides = array<i32>} : memref<8x32xf32, #tpu.memory_space<vmem>>, vector<8x32xf32>,
    %c0_199 = arith.constant 0 : index
    %c0_200 = arith.constant 0 : index
    %734 = vector.load %arg12[%c0_199, %c0_200] : memref<8x32xf32, #tpu.memory_space<vmem>>, vector<8x32xf32>
    tpu.vector_store %arg12[%c0_199, %c0_200], %717 {strides = array<i32>} : memref<8x32xf32, #tpu.memory_space<vmem>>, vector<8x32xf32>,
    return
  }
  func.func @transform_0(%arg0: i32) -> (i32, i32) {
    %c0_i32 = arith.constant 0 : i32
    %c0_i32_0 = arith.constant 0 : i32
    %c0_i32_1 = arith.constant 0 : i32
    return %c0_i32, %c0_i32_0 : i32, i32
  }
  func.func @transform_1(%arg0: i32) -> (i32, i32, i32) {
    %c0_i32 = arith.constant 0 : i32
    %c0_i32_0 = arith.constant 0 : i32
    %c0_i32_1 = arith.constant 0 : i32
    return %arg0, %c0_i32, %c0_i32_0 : i32, i32, i32
  }
  func.func @transform_2(%arg0: i32) -> (i32, i32, i32) {
    %c0_i32 = arith.constant 0 : i32
    %0 = arith.subi %c0_i32, %arg0 : i32
    %c0_i32_0 = arith.constant 0 : i32
    %c0_i32_1 = arith.constant 0 : i32
    %c0_i32_2 = arith.constant 0 : i32
    return %0, %c0_i32_0, %c0_i32_1 : i32, i32, i32
  }
  func.func @transform_3(%arg0: i32) -> (i32, i32, i32) {
    %c0_i32 = arith.constant 0 : i32
    %c0_i32_0 = arith.constant 0 : i32
    %c0_i32_1 = arith.constant 0 : i32
    %c0_i32_2 = arith.constant 0 : i32
    return %c0_i32, %c0_i32_0, %c0_i32_1 : i32, i32, i32
  }
  func.func @transform_4(%arg0: i32) -> (i32, i32, i32) {
    %c0_i32 = arith.constant 0 : i32
    %c0_i32_0 = arith.constant 0 : i32
    %c0_i32_1 = arith.constant 0 : i32
    %c0_i32_2 = arith.constant 0 : i32
    return %c0_i32, %c0_i32_0, %c0_i32_1 : i32, i32, i32
  }
  func.func @transform_5(%arg0: i32) -> (i32, i32, i32) {
    %c0_i32 = arith.constant 0 : i32
    %c0_i32_0 = arith.constant 0 : i32
    %c0_i32_1 = arith.constant 0 : i32
    %c0_i32_2 = arith.constant 0 : i32
    return %c0_i32, %c0_i32_0, %c0_i32_1 : i32, i32, i32
  }
  func.func @transform_6(%arg0: i32) -> (i32, i32, i32) {
    %c0_i32 = arith.constant 0 : i32
    %c0_i32_0 = arith.constant 0 : i32
    %c0_i32_1 = arith.constant 0 : i32
    return %arg0, %c0_i32, %c0_i32_0 : i32, i32, i32
  }
  func.func @transform_7(%arg0: i32) -> (i32, i32, i32) {
    %c0_i32 = arith.constant 0 : i32
    %0 = arith.subi %c0_i32, %arg0 : i32
    %c0_i32_0 = arith.constant 0 : i32
    %c0_i32_1 = arith.constant 0 : i32
    %c0_i32_2 = arith.constant 0 : i32
    return %0, %c0_i32_0, %c0_i32_1 : i32, i32, i32
  }
}

</mosaic_0001>

<llo_original>
// kernel: tpu_custom_call.1
$region0: #{tpu_custom_call.1}
  #allocation0 [shape = 'u32[]', space=smem, size = 0x4, offset = 0x4, fixed_abs, tag = 'smem constant byte address 0x4 - core index']
  #allocation1 [shape = 'u32[144,128]{1,0:T(1,128)}', space=vmem, size = 0x12000, scoped, tag = 'internal scratch']
  #allocation2 [shape = 'f32[8,32]{1,0:T(8,128)}', space=vmem, size = 0x1000, scoped, tag = 'scratch operand']
  #allocation3 [shape = 'f32[8,32]{1,0:T(8,128)}', space=vmem, size = 0x1000, scoped, tag = 'scratch operand']
  #allocation4 [shape = 'f32[8,32]{1,0:T(8,128)}', space=vmem, size = 0x1000, scoped, tag = 'scratch operand']
  #allocation5 [shape = 'f32[8,32]{1,0:T(8,128)}', space=vmem, size = 0x1000, scoped, tag = 'scratch operand']
  #allocation6 [shape = 'f32[64,128]{1,0:T(8,128)}', space=vmem, size = 0x8000, scoped, tag = 'scratch operand']
  #allocation7 [shape = 'f32[64,128]{1,0:T(8,128)}', space=vmem, size = 0x8000, scoped, tag = 'scratch operand']
  %s0 = inlined_call_operand.vmem [shape: s32[8,1], index: 0, kind: input, shape index: {}]
  %s1 = inlined_call_operand.vmem [shape: f32[1,64,32], index: 1, kind: input, shape index: {}]
  %s2 = inlined_call_operand.vmem [shape: f32[1,64,32], index: 2, kind: input, shape index: {}]
  %s3 = inlined_call_operand.vmem [shape: f32[2,32,128], index: 3, kind: input, shape index: {}]
  %s4 = inlined_call_operand.vmem [shape: f32[2,32,128], index: 4, kind: input, shape index: {}]
  %s5 = inlined_call_operand.vmem [shape: f32[2,1,128], index: 5, kind: input, shape index: {}]
  %s6 = inlined_call_operand.vmem [shape: f32[1,64,32], index: 6, kind: output, shape index: {0}]
  %s7 = inlined_call_operand.vmem [shape: f32[1,64,32], index: 7, kind: output, shape index: {1}]
  %8 = xla_tuple %s6, %s7
  %s9 = sld [smem:[#allocation0]]
  $region46: #{tpu_custom_call.1} parent=0
    _
  %s11 = ssub.s32 1, %s9
  %s12 = scalar_select 0, %s11, %s9
  // Predicated region
  $region2: #{tpu_custom_call.1} parent=0 // pred_check
    _
  $region3: #{tpu_custom_call.1} parent=0 // pred_check_branch
    %14 = sbr.rel (0) target = $region5
  $region4: #{tpu_custom_call.1} parent=0 // pred_region
    _
  $region5: #{tpu_custom_call.1} parent=0 // pred_fallthru
    _
  // Predicated region
  $region6: #{tpu_custom_call.1} parent=0 // pred_check
    _
  $region7: #{tpu_custom_call.1} parent=0 // pred_check_branch
    %16 = sbr.rel (0) target = $region9
  $region8: #{tpu_custom_call.1} parent=0 // pred_region
    _
  $region9: #{tpu_custom_call.1} parent=0 // pred_fallthru
    _
  // Predicated region
  $region10: #{tpu_custom_call.1} parent=0 // pred_check
    _
  $region11: #{tpu_custom_call.1} parent=0 // pred_check_branch
    %18 = sbr.rel (0) target = $region13
  $region12: #{tpu_custom_call.1} parent=0 // pred_region
    %s19 = ssub.s32 0, 0
    %p20 = scmp.lt.s32.totalorder %s19, 0
    %s21 = scalar_select %p20, %s19, 0
    %s22 = smul.addr %s21, 8
    %s23 = smul.addr %s22, 8
    %s24 = scalar_lea.vmem %s2, %s23
    %s25 = ssub.s32 0, 0
  $region13: #{tpu_custom_call.1} parent=0 // pred_fallthru
    _
  // Predicated region
  $region14: #{tpu_custom_call.1} parent=0 // pred_check
    _
  $region15: #{tpu_custom_call.1} parent=0 // pred_check_branch
    %27 = sbr.rel (0) target = $region17
  $region16: #{tpu_custom_call.1} parent=0 // pred_region
    _
  $region17: #{tpu_custom_call.1} parent=0 // pred_fallthru
    _
  // Predicated region
  $region18: #{tpu_custom_call.1} parent=0 // pred_check
    _
  $region19: #{tpu_custom_call.1} parent=0 // pred_check_branch
    %29 = sbr.rel (0) target = $region21
  $region20: #{tpu_custom_call.1} parent=0 // pred_region
    _
  $region21: #{tpu_custom_call.1} parent=0 // pred_fallthru
    _
  // Predicated region
  $region22: #{tpu_custom_call.1} parent=0 // pred_check
    _
  $region23: #{tpu_custom_call.1} parent=0 // pred_check_branch
    %31 = sbr.rel (0) target = $region25
  $region24: #{tpu_custom_call.1} parent=0 // pred_region
    _
  $region25: #{tpu_custom_call.1} parent=0 // pred_fallthru
    _
  %s32 = ssub.s32 0, 0
  %p33 = scmp.lt.s32.totalorder %s32, 0
  %s34 = scalar_select %p33, %s32, 0
  %s35 = smul.addr %s34, 8
  %s36 = smul.addr %s35, 8
  %s37 = scalar_lea.vmem %s2, %s36
  %s38 = ssub.s32 0, 0
  %p39 = scmp.lt.s32.totalorder %s38, 0
  %s40 = scalar_select %p39, %s38, 0
  %s41 = smul.addr %s40, 8
  %s42 = smul.addr %s41, 8
  %s43 = scalar_lea.vmem %s7, %s42
  %s44 = ssub.s32 0, 0
  %p45 = scmp.lt.s32.totalorder %s44, 0
  %s46 = scalar_select %p45, %s44, 0
  %s47 = smul.addr %s46, 8
  %s48 = smul.addr %s47, 8
  %s49 = scalar_lea.vmem %s2, %s48
  %s50 = ssub.s32 0, 0
  %s51 = ssub.s32 0, 0
  %p52 = scmp.lt.s32.totalorder %s51, 0
  %s53 = scalar_select %p52, %s51, 0
  %s54 = smul.addr %s53, 8
  %s55 = smul.addr %s54, 8
  %s56 = scalar_lea.vmem %s7, %s55
  %s57 = ssub.s32 0, 0
  %p58 = scmp.eq.s32.totalorder 0, 0
  // Predicated region
  $region26: #{tpu_custom_call.1} parent=0 // pred_check
    %p59 = pneg %p58
  $region27: #{tpu_custom_call.1} parent=0 // pred_check_branch
    %61 = sbr.rel (%p59) target = $region29
  $region28: #{tpu_custom_call.1} parent=0 // pred_region
    %vm62 = vcmask 261120
    %63 = vst.msk [vmem:[#allocation2] sm:$0xff] %vm62, 0.0
    %64 = vst.msk [vmem:[#allocation3] sm:$0xff] %vm62, 0.0
    %65 = vst.msk [vmem:[#allocation4] sm:$0xff] %vm62, 0.0
    %66 = vst.msk [vmem:[#allocation5] sm:$0xff] %vm62, 0.0
  $region29: #{tpu_custom_call.1} parent=0 // pred_fallthru
    _
  %v67 = vld [vmem:[%s1] sm:$0xff]
  %v68 = vld [vmem:[%s1 + $0x8] sm:$0xff]
  %v69 = vld [vmem:[%s1 + $0x10] sm:$0xff]
  %v70 = vld [vmem:[%s1 + $0x18] sm:$0xff]
  %v71 = vld [vmem:[%s1 + $0x20] sm:$0xff]
  %v72 = vld [vmem:[%s1 + $0x28] sm:$0xff]
  %v73 = vld [vmem:[%s1 + $0x30] sm:$0xff]
  %v74 = vld [vmem:[%s1 + $0x38] sm:$0xff]
  %v75 = vld [vmem:[%s3] sm:$0xff]
  %v76 = vld [vmem:[%s3 + $0x8] sm:$0xff]
  %v77 = vld [vmem:[%s3 + $0x10] sm:$0xff]
  %v78 = vld [vmem:[%s3 + $0x18] sm:$0xff]
  %v79 = vld [vmem:[%s5] sm:$0x1]
  %v81 = vlaneseq
  %v82 = vshrl.u32 %v81, 7
  %v83 = vsub.s32 0, %v82
  %v84 = vrot.slane %v79, %v83
  %vm86 = vcmask 261120
  %v88 = vsel %vm86, %v67, 0
  %v91 = vsel %vm86, %v68, 0
  %v94 = vsel %vm86, %v69, 0
  %v97 = vsel %vm86, %v70, 0
  %v100 = vsel %vm86, %v71, 0
  %v103 = vsel %vm86, %v72, 0
  %v106 = vsel %vm86, %v73, 0
  %v109 = vsel %vm86, %v74, 0
  %111 = vmatprep.subr.mxu0 0.0
  %112 = vmatpush1.msra.mxu0 0.0
  %113 = vmatprep.subr.mxu0 0.0
  %114 = vmatpush1.msra.mxu0 0.0
  %115 = vmatprep.subr.mxu0 0.0
  %116 = vmatpush1.msra.mxu0 0.0
  %117 = vmatprep.subr.mxu0 0.0
  %118 = vmatpush1.msra.mxu0 0.0
  %119 = vmatprep.subr.mxu0 0.0
  %120 = vmatpush1.msra.mxu0 0.0
  %121 = vmatprep.subr.mxu0 0.0
  %122 = vmatpush1.msra.mxu0 0.0
  %123 = vmatprep.subr.mxu0 0.0
  %124 = vmatpush1.msra.mxu0 0.0
  %125 = vmatprep.subr.mxu0 0.0
  %126 = vmatpush1.msra.mxu0 0.0
  %127 = vmatprep.subr.mxu0 0.0
  %128 = vmatpush1.msra.mxu0 0.0
  %129 = vmatprep.subr.mxu0 0.0
  %130 = vmatpush1.msra.mxu0 0.0
  %131 = vmatprep.subr.mxu0 0.0
  %132 = vmatpush1.msra.mxu0 0.0
  %133 = vmatprep.subr.mxu0 0.0
  %134 = vmatpush1.msra.mxu0 0.0
  %135 = vmatprep.subr.mxu0 0.0
  %136 = vmatpush1.msra.mxu0 %v78
  %137 = vmatprep.subr.mxu0 0.0
  %138 = vmatpush1.msra.mxu0 %v77
  %139 = vmatprep.subr.mxu0 0.0
  %140 = vmatpush1.msra.mxu0 %v76
  %141 = vmatprep.subr.mxu0 0.0
  %142 = vmatpush1.msra.mxu0 %v75
  %143 = vmatprep.subr.mxu0 0.0
  %144 = vmatpush2.msra.mxu0 0.0
  %145 = vmatprep.subr.mxu0 0.0
  %146 = vmatpush2.msra.mxu0 0.0
  %147 = vmatprep.subr.mxu0 0.0
  %148 = vmatpush2.msra.mxu0 0.0
  %149 = vmatprep.subr.mxu0 0.0
  %150 = vmatpush2.msra.mxu0 0.0
  %151 = vmatprep.subr.mxu0 0.0
  %152 = vmatpush2.msra.mxu0 0.0
  %153 = vmatprep.subr.mxu0 0.0
  %154 = vmatpush2.msra.mxu0 0.0
  %155 = vmatprep.subr.mxu0 0.0
  %156 = vmatpush2.msra.mxu0 0.0
  %157 = vmatprep.subr.mxu0 0.0
  %158 = vmatpush2.msra.mxu0 0.0
  %159 = vmatprep.subr.mxu0 0.0
  %160 = vmatpush2.msra.mxu0 0.0
  %161 = vmatprep.subr.mxu0 0.0
  %162 = vmatpush2.msra.mxu0 0.0
  %163 = vmatprep.subr.mxu0 0.0
  %164 = vmatpush2.msra.mxu0 0.0
  %165 = vmatprep.subr.mxu0 0.0
  %166 = vmatpush2.msra.mxu0 0.0
  %167 = vmatprep.subr.mxu0 0.0
  %168 = vmatpush2.msra.mxu0 0.0
  %169 = vmatprep.subr.mxu0 0.0
  %170 = vmatpush2.msra.mxu0 0.0
  %171 = vmatprep.subr.mxu0 0.0
  %172 = vmatpush2.msra.mxu0 0.0
  %173 = vmatprep.subr.mxu0 0.0
  %174 = vmatpush2.msra.mxu0 0.0
  %175 = vmatprep.mubr.f32.mxu0 0.0
  %176 = vmatmul.mubr.f32.gmra.mxu0 %v88
  %v177 = vpop.f32.mrf.mxu0
  %v178 = vadd.f32 %v84, %v177
  %v179 = vpop.f32.mrf.mxu0
  %180 = vmatprep.mubr.f32.mxu0 0.0
  %181 = vmatmul.mubr.f32.gmra.mxu0 %v91
  %v182 = vpop.f32.mrf.mxu0
  %v183 = vadd.f32 %v84, %v182
  %v184 = vpop.f32.mrf.mxu0
  %185 = vmatprep.mubr.f32.mxu0 0.0
  %186 = vmatmul.mubr.f32.gmra.mxu0 %v94
  %v187 = vpop.f32.mrf.mxu0
  %v188 = vadd.f32 %v84, %v187
  %v189 = vpop.f32.mrf.mxu0
  %190 = vmatprep.mubr.f32.mxu0 0.0
  %191 = vmatmul.mubr.f32.gmra.mxu0 %v97
  %v192 = vpop.f32.mrf.mxu0
  %v193 = vadd.f32 %v84, %v192
  %v194 = vpop.f32.mrf.mxu0
  %195 = vmatprep.mubr.f32.mxu0 0.0
  %196 = vmatmul.mubr.f32.gmra.mxu0 %v100
  %v197 = vpop.f32.mrf.mxu0
  %v198 = vadd.f32 %v84, %v197
  %v199 = vpop.f32.mrf.mxu0
  %200 = vmatprep.mubr.f32.mxu0 0.0
  %201 = vmatmul.mubr.f32.gmra.mxu0 %v103
  %v202 = vpop.f32.mrf.mxu0
  %v203 = vadd.f32 %v84, %v202
  %v204 = vpop.f32.mrf.mxu0
  %205 = vmatprep.mubr.f32.mxu0 0.0
  %206 = vmatmul.mubr.f32.gmra.mxu0 %v106
  %v207 = vpop.f32.mrf.mxu0
  %v208 = vadd.f32 %v84, %v207
  %v209 = vpop.f32.mrf.mxu0
  %210 = vmatprep.mubr.f32.mxu0 0.0
  %211 = vmatmul.mubr.f32.gmra.mxu0 %v109
  %v212 = vpop.f32.mrf.mxu0
  %v213 = vadd.f32 %v84, %v212
  %v214 = vpop.f32.mrf.mxu0
  %215 = vdwg.mxu0
  %216 = vst [vmem:[#allocation6] sm:$0xff] %v178
  %217 = vst [vmem:[#allocation6 + $0x8] sm:$0xff] %v183
  %218 = vst [vmem:[#allocation6 + $0x10] sm:$0xff] %v188
  %219 = vst [vmem:[#allocation6 + $0x18] sm:$0xff] %v193
  %220 = vst [vmem:[#allocation6 + $0x20] sm:$0xff] %v198
  %221 = vst [vmem:[#allocation6 + $0x28] sm:$0xff] %v203
  %222 = vst [vmem:[#allocation6 + $0x30] sm:$0xff] %v208
  %223 = vst [vmem:[#allocation6 + $0x38] sm:$0xff] %v213
  %v224 = vld [vmem:[%s49] sm:$0xff]
  %v225 = vld [vmem:[%s49 + $0x8] sm:$0xff]
  %v226 = vld [vmem:[%s49 + $0x10] sm:$0xff]
  %v227 = vld [vmem:[%s49 + $0x18] sm:$0xff]
  %v228 = vld [vmem:[%s49 + $0x20] sm:$0xff]
  %v229 = vld [vmem:[%s49 + $0x28] sm:$0xff]
  %v230 = vld [vmem:[%s49 + $0x30] sm:$0xff]
  %v231 = vld [vmem:[%s49 + $0x38] sm:$0xff]
  %s232 = scalar_lea.vmem %s3, 32
  %v233 = vld [vmem:[%s232] sm:$0xff]
  %v234 = vld [vmem:[%s232 + $0x8] sm:$0xff]
  %v235 = vld [vmem:[%s232 + $0x10] sm:$0xff]
  %v236 = vld [vmem:[%s232 + $0x18] sm:$0xff]
  %s237 = scalar_lea.vmem %s5, 1
  %v238 = vld [vmem:[%s237] sm:$0x1]
  %v240 = vlaneseq
  %v241 = vshrl.u32 %v240, 7
  %v242 = vsub.s32 0, %v241
  %v243 = vrot.slane %v238, %v242
  %v246 = vsel %vm86, %v224, 0
  %v249 = vsel %vm86, %v225, 0
  %v252 = vsel %vm86, %v226, 0
  %v255 = vsel %vm86, %v227, 0
  %v258 = vsel %vm86, %v228, 0
  %v261 = vsel %vm86, %v229, 0
  %v264 = vsel %vm86, %v230, 0
  %v267 = vsel %vm86, %v231, 0
  %269 = vmatprep.subr.mxu0 0.0
  %270 = vmatpush1.msra.mxu0 0.0
  %271 = vmatprep.subr.mxu0 0.0
  %272 = vmatpush1.msra.mxu0 0.0
  %273 = vmatprep.subr.mxu0 0.0
  %274 = vmatpush1.msra.mxu0 0.0
  %275 = vmatprep.subr.mxu0 0.0
  %276 = vmatpush1.msra.mxu0 0.0
  %277 = vmatprep.subr.mxu0 0.0
  %278 = vmatpush1.msra.mxu0 0.0
  %279 = vmatprep.subr.mxu0 0.0
  %280 = vmatpush1.msra.mxu0 0.0
  %281 = vmatprep.subr.mxu0 0.0
  %282 = vmatpush1.msra.mxu0 0.0
  %283 = vmatprep.subr.mxu0 0.0
  %284 = vmatpush1.msra.mxu0 0.0
  %285 = vmatprep.subr.mxu0 0.0
  %286 = vmatpush1.msra.mxu0 0.0
  %287 = vmatprep.subr.mxu0 0.0
  %288 = vmatpush1.msra.mxu0 0.0
  %289 = vmatprep.subr.mxu0 0.0
  %290 = vmatpush1.msra.mxu0 0.0
  %291 = vmatprep.subr.mxu0 0.0
  %292 = vmatpush1.msra.mxu0 0.0
  %293 = vmatprep.subr.mxu0 0.0
  %294 = vmatpush1.msra.mxu0 %v236
  %295 = vmatprep.subr.mxu0 0.0
  %296 = vmatpush1.msra.mxu0 %v235
  %297 = vmatprep.subr.mxu0 0.0
  %298 = vmatpush1.msra.mxu0 %v234
  %299 = vmatprep.subr.mxu0 0.0
  %300 = vmatpush1.msra.mxu0 %v233
  %301 = vmatprep.subr.mxu0 0.0
  %302 = vmatpush2.msra.mxu0 0.0
  %303 = vmatprep.subr.mxu0 0.0
  %304 = vmatpush2.msra.mxu0 0.0
  %305 = vmatprep.subr.mxu0 0.0
  %306 = vmatpush2.msra.mxu0 0.0
  %307 = vmatprep.subr.mxu0 0.0
  %308 = vmatpush2.msra.mxu0 0.0
  %309 = vmatprep.subr.mxu0 0.0
  %310 = vmatpush2.msra.mxu0 0.0
  %311 = vmatprep.subr.mxu0 0.0
  %312 = vmatpush2.msra.mxu0 0.0
  %313 = vmatprep.subr.mxu0 0.0
  %314 = vmatpush2.msra.mxu0 0.0
  %315 = vmatprep.subr.mxu0 0.0
  %316 = vmatpush2.msra.mxu0 0.0
  %317 = vmatprep.subr.mxu0 0.0
  %318 = vmatpush2.msra.mxu0 0.0
  %319 = vmatprep.subr.mxu0 0.0
  %320 = vmatpush2.msra.mxu0 0.0
  %321 = vmatprep.subr.mxu0 0.0
  %322 = vmatpush2.msra.mxu0 0.0
  %323 = vmatprep.subr.mxu0 0.0
  %324 = vmatpush2.msra.mxu0 0.0
  %325 = vmatprep.subr.mxu0 0.0
  %326 = vmatpush2.msra.mxu0 0.0
  %327 = vmatprep.subr.mxu0 0.0
  %328 = vmatpush2.msra.mxu0 0.0
  %329 = vmatprep.subr.mxu0 0.0
  %330 = vmatpush2.msra.mxu0 0.0
  %331 = vmatprep.subr.mxu0 0.0
  %332 = vmatpush2.msra.mxu0 0.0
  %333 = vmatprep.mubr.f32.mxu0 0.0
  %334 = vmatmul.mubr.f32.gmra.mxu0 %v246
  %v335 = vpop.f32.mrf.mxu0
  %v336 = vadd.f32 %v243, %v335
  %v337 = vpop.f32.mrf.mxu0
  %338 = vmatprep.mubr.f32.mxu0 0.0
  %339 = vmatmul.mubr.f32.gmra.mxu0 %v249
  %v340 = vpop.f32.mrf.mxu0
  %v341 = vadd.f32 %v243, %v340
  %v342 = vpop.f32.mrf.mxu0
  %343 = vmatprep.mubr.f32.mxu0 0.0
  %344 = vmatmul.mubr.f32.gmra.mxu0 %v252
  %v345 = vpop.f32.mrf.mxu0
  %v346 = vadd.f32 %v243, %v345
  %v347 = vpop.f32.mrf.mxu0
  %348 = vmatprep.mubr.f32.mxu0 0.0
  %349 = vmatmul.mubr.f32.gmra.mxu0 %v255
  %v350 = vpop.f32.mrf.mxu0
  %v351 = vadd.f32 %v243, %v350
  %v352 = vpop.f32.mrf.mxu0
  %353 = vmatprep.mubr.f32.mxu0 0.0
  %354 = vmatmul.mubr.f32.gmra.mxu0 %v258
  %v355 = vpop.f32.mrf.mxu0
  %v356 = vadd.f32 %v243, %v355
  %v357 = vpop.f32.mrf.mxu0
  %358 = vmatprep.mubr.f32.mxu0 0.0
  %359 = vmatmul.mubr.f32.gmra.mxu0 %v261
  %v360 = vpop.f32.mrf.mxu0
  %v361 = vadd.f32 %v243, %v360
  %v362 = vpop.f32.mrf.mxu0
  %363 = vmatprep.mubr.f32.mxu0 0.0
  %364 = vmatmul.mubr.f32.gmra.mxu0 %v264
  %v365 = vpop.f32.mrf.mxu0
  %v366 = vadd.f32 %v243, %v365
  %v367 = vpop.f32.mrf.mxu0
  %368 = vmatprep.mubr.f32.mxu0 0.0
  %369 = vmatmul.mubr.f32.gmra.mxu0 %v267
  %v370 = vpop.f32.mrf.mxu0
  %v371 = vadd.f32 %v243, %v370
  %v372 = vpop.f32.mrf.mxu0
  %373 = vdwg.mxu0
  %374 = vst [vmem:[#allocation7] sm:$0xff] %v336
  %375 = vst [vmem:[#allocation7 + $0x8] sm:$0xff] %v341
  %376 = vst [vmem:[#allocation7 + $0x10] sm:$0xff] %v346
  %377 = vst [vmem:[#allocation7 + $0x18] sm:$0xff] %v351
  %378 = vst [vmem:[#allocation7 + $0x20] sm:$0xff] %v356
  %379 = vst [vmem:[#allocation7 + $0x28] sm:$0xff] %v361
  %380 = vst [vmem:[#allocation7 + $0x30] sm:$0xff] %v366
  %381 = vst [vmem:[#allocation7 + $0x38] sm:$0xff] %v371
  %v382 = vld [vmem:[%s4] sm:$0xff]
  %v383 = vld [vmem:[%s4 + $0x8] sm:$0xff]
  %v384 = vld [vmem:[%s4 + $0x10] sm:$0xff]
  %v385 = vld [vmem:[%s4 + $0x18] sm:$0xff]
  %s386 = scalar_lea.vmem %s4, 32
  %v387 = vld [vmem:[%s386] sm:$0xff]
  %v388 = vld [vmem:[%s386 + $0x8] sm:$0xff]
  %v389 = vld [vmem:[%s386 + $0x10] sm:$0xff]
  %v390 = vld [vmem:[%s386 + $0x18] sm:$0xff]
  %v391 = vld [vmem:[%s0] sm:$0xff]
  %v392 = vsub.s32 8, %v391
  %s393 = smul.u32 0, 8
  %v394 = vld [vmem:[#allocation2] sm:$0xff]
  %v395 = vld [vmem:[#allocation3] sm:$0xff]
  %v396 = vld [vmem:[#allocation4] sm:$0xff]
  %v397 = vld [vmem:[#allocation5] sm:$0xff]
  %v398 = vstv %s393
  %vm399 = vcmp.lt.s32.totalorder %v398, %v391
  %vm400 = vcmp.ge.s32.totalorder %v398, %v392
  %v401 = vld [vmem:[#allocation6] sm:$0xff]
  %v402 = vld [vmem:[#allocation7 + $0x38] sm:$0xff]
  %v404 = vsel %vm86, %v394, 0
  %406 = vmatprep.subr.mxu0 0.0
  %407 = vmatpush1.msra.mxu0 0.0
  %408 = vmatprep.subr.mxu0 0.0
  %409 = vmatpush1.msra.mxu0 0.0
  %410 = vmatprep.subr.mxu0 0.0
  %411 = vmatpush1.msra.mxu0 0.0
  %412 = vmatprep.subr.mxu0 0.0
  %413 = vmatpush1.msra.mxu0 0.0
  %414 = vmatprep.subr.mxu0 0.0
  %415 = vmatpush1.msra.mxu0 0.0
  %416 = vmatprep.subr.mxu0 0.0
  %417 = vmatpush1.msra.mxu0 0.0
  %418 = vmatprep.subr.mxu0 0.0
  %419 = vmatpush1.msra.mxu0 0.0
  %420 = vmatprep.subr.mxu0 0.0
  %421 = vmatpush1.msra.mxu0 0.0
  %422 = vmatprep.subr.mxu0 0.0
  %423 = vmatpush1.msra.mxu0 0.0
  %424 = vmatprep.subr.mxu0 0.0
  %425 = vmatpush1.msra.mxu0 0.0
  %426 = vmatprep.subr.mxu0 0.0
  %427 = vmatpush1.msra.mxu0 0.0
  %428 = vmatprep.subr.mxu0 0.0
  %429 = vmatpush1.msra.mxu0 0.0
  %430 = vmatprep.subr.mxu0 0.0
  %431 = vmatpush1.msra.mxu0 %v385
  %432 = vmatprep.subr.mxu0 0.0
  %433 = vmatpush1.msra.mxu0 %v384
  %434 = vmatprep.subr.mxu0 0.0
  %435 = vmatpush1.msra.mxu0 %v383
  %436 = vmatprep.subr.mxu0 0.0
  %437 = vmatpush1.msra.mxu0 %v382
  %438 = vmatprep.subr.mxu0 0.0
  %439 = vmatpush2.msra.mxu0 0.0
  %440 = vmatprep.subr.mxu0 0.0
  %441 = vmatpush2.msra.mxu0 0.0
  %442 = vmatprep.subr.mxu0 0.0
  %443 = vmatpush2.msra.mxu0 0.0
  %444 = vmatprep.subr.mxu0 0.0
  %445 = vmatpush2.msra.mxu0 0.0
  %446 = vmatprep.subr.mxu0 0.0
  %447 = vmatpush2.msra.mxu0 0.0
  %448 = vmatprep.subr.mxu0 0.0
  %449 = vmatpush2.msra.mxu0 0.0
  %450 = vmatprep.subr.mxu0 0.0
  %451 = vmatpush2.msra.mxu0 0.0
  %452 = vmatprep.subr.mxu0 0.0
  %453 = vmatpush2.msra.mxu0 0.0
  %454 = vmatprep.subr.mxu0 0.0
  %455 = vmatpush2.msra.mxu0 0.0
  %456 = vmatprep.subr.mxu0 0.0
  %457 = vmatpush2.msra.mxu0 0.0
  %458 = vmatprep.subr.mxu0 0.0
  %459 = vmatpush2.msra.mxu0 0.0
  %460 = vmatprep.subr.mxu0 0.0
  %461 = vmatpush2.msra.mxu0 0.0
  %462 = vmatprep.subr.mxu0 0.0
  %463 = vmatpush2.msra.mxu0 0.0
  %464 = vmatprep.subr.mxu0 0.0
  %465 = vmatpush2.msra.mxu0 0.0
  %466 = vmatprep.subr.mxu0 0.0
  %467 = vmatpush2.msra.mxu0 0.0
  %468 = vmatprep.subr.mxu0 0.0
  %469 = vmatpush2.msra.mxu0 0.0
  %470 = vmatprep.mubr.f32.mxu0 0.0
  %471 = vmatmul.mubr.f32.gmra.mxu0 %v404
  %v472 = vpop.f32.mrf.mxu0
  %v473 = vadd.f32 %v401, %v472
  %v474 = vpop.f32.mrf.mxu0
  %475 = vdwg.mxu0
  %v476 = vxor.u32 %v473, 2147483648
  %v477 = vmul.f32 %v476, 1.442695
  %v478 = vpow.pop %v477
  %v479 = vadd.f32 %v478, 1.0
  %v480 = vrcp.pop %v479
  %v481 = vmul.f32 1.0, %v480
  %v482 = vtanh.pop %v473
  %484 = vrot.lane.b32.xlu0 %v395, 32
  %v485 = vpop.permute.xlu0 %484
  %v487 = vmul.f32 %v481, %v485
  %489 = vrot.lane.b32.xlu0 %v482, 64
  %v490 = vpop.permute.xlu0 %489
  %v492 = vmul.f32 %v481, %v490
  %494 = vrot.lane.b32.xlu0 %v492, 32
  %v495 = vpop.permute.xlu0 %494
  %v497 = vadd.f32 %v487, %v495
  %v498 = vtanh.pop %v497
  %500 = vrot.lane.b32.xlu0 %v498, 64
  %v501 = vpop.permute.xlu0 %500
  %v503 = vmul.f32 %v481, %v501
  %v504 = vsel %vm399, 1, 0
  %505 = vset.pattern.permute.xlu0 0
  %506 = vperm.xlu0 %505, %v504
  %v507 = vpop.permute.xlu0 %506
  %vm508 = vcmp.eq.s32.totalorder %v507, 1
  %v509 = vsel %vm508, %v497, %v485
  %510 = vrot.lane.b32.xlu0 %v394, 96
  %v511 = vpop.permute.xlu0 %510
  %v513 = vsel %vm508, %v503, %v511
  %v514 = vsel %vm508, %v503, 0.0
  %v516 = vsel %vm86, %v396, 0
  %518 = vmatprep.subr.mxu0 0.0
  %519 = vmatpush1.msra.mxu0 0.0
  %520 = vmatprep.subr.mxu0 0.0
  %521 = vmatpush1.msra.mxu0 0.0
  %522 = vmatprep.subr.mxu0 0.0
  %523 = vmatpush1.msra.mxu0 0.0
  %524 = vmatprep.subr.mxu0 0.0
  %525 = vmatpush1.msra.mxu0 0.0
  %526 = vmatprep.subr.mxu0 0.0
  %527 = vmatpush1.msra.mxu0 0.0
  %528 = vmatprep.subr.mxu0 0.0
  %529 = vmatpush1.msra.mxu0 0.0
  %530 = vmatprep.subr.mxu0 0.0
  %531 = vmatpush1.msra.mxu0 0.0
  %532 = vmatprep.subr.mxu0 0.0
  %533 = vmatpush1.msra.mxu0 0.0
  %534 = vmatprep.subr.mxu0 0.0
  %535 = vmatpush1.msra.mxu0 0.0
  %536 = vmatprep.subr.mxu0 0.0
  %537 = vmatpush1.msra.mxu0 0.0
  %538 = vmatprep.subr.mxu0 0.0
  %539 = vmatpush1.msra.mxu0 0.0
  %540 = vmatprep.subr.mxu0 0.0
  %541 = vmatpush1.msra.mxu0 0.0
  %542 = vmatprep.subr.mxu0 0.0
  %543 = vmatpush1.msra.mxu0 %v390
  %544 = vmatprep.subr.mxu0 0.0
  %545 = vmatpush1.msra.mxu0 %v389
  %546 = vmatprep.subr.mxu0 0.0
  %547 = vmatpush1.msra.mxu0 %v388
  %548 = vmatprep.subr.mxu0 0.0
  %549 = vmatpush1.msra.mxu0 %v387
  %550 = vmatprep.subr.mxu0 0.0
  %551 = vmatpush2.msra.mxu0 0.0
  %552 = vmatprep.subr.mxu0 0.0
  %553 = vmatpush2.msra.mxu0 0.0
  %554 = vmatprep.subr.mxu0 0.0
  %555 = vmatpush2.msra.mxu0 0.0
  %556 = vmatprep.subr.mxu0 0.0
  %557 = vmatpush2.msra.mxu0 0.0
  %558 = vmatprep.subr.mxu0 0.0
  %559 = vmatpush2.msra.mxu0 0.0
  %560 = vmatprep.subr.mxu0 0.0
  %561 = vmatpush2.msra.mxu0 0.0
  %562 = vmatprep.subr.mxu0 0.0
  %563 = vmatpush2.msra.mxu0 0.0
  %564 = vmatprep.subr.mxu0 0.0
  %565 = vmatpush2.msra.mxu0 0.0
  %566 = vmatprep.subr.mxu0 0.0
  %567 = vmatpush2.msra.mxu0 0.0
  %568 = vmatprep.subr.mxu0 0.0
  %569 = vmatpush2.msra.mxu0 0.0
  %570 = vmatprep.subr.mxu0 0.0
  %571 = vmatpush2.msra.mxu0 0.0
  %572 = vmatprep.subr.mxu0 0.0
  %573 = vmatpush2.msra.mxu0 0.0
  %574 = vmatprep.subr.mxu0 0.0
  %575 = vmatpush2.msra.mxu0 0.0
  %576 = vmatprep.subr.mxu0 0.0
  %577 = vmatpush2.msra.mxu0 0.0
  %578 = vmatprep.subr.mxu0 0.0
  %579 = vmatpush2.msra.mxu0 0.0
  %580 = vmatprep.subr.mxu0 0.0
  %581 = vmatpush2.msra.mxu0 0.0
  %582 = vmatprep.mubr.f32.mxu0 0.0
  %583 = vmatmul.mubr.f32.gmra.mxu0 %v516
  %v584 = vpop.f32.mrf.mxu0
  %v585 = vadd.f32 %v402, %v584
  %v586 = vpop.f32.mrf.mxu0
  %587 = vdwg.mxu0
  %v588 = vxor.u32 %v585, 2147483648
  %v589 = vmul.f32 %v588, 1.442695
  %v590 = vpow.pop %v589
  %v591 = vadd.f32 %v590, 1.0
  %v592 = vrcp.pop %v591
  %v593 = vmul.f32 1.0, %v592
  %v594 = vtanh.pop %v585
  %596 = vrot.lane.b32.xlu0 %v397, 32
  %v597 = vpop.permute.xlu0 %596
  %v599 = vmul.f32 %v593, %v597
  %601 = vrot.lane.b32.xlu0 %v594, 64
  %v602 = vpop.permute.xlu0 %601
  %v604 = vmul.f32 %v593, %v602
  %606 = vrot.lane.b32.xlu0 %v604, 32
  %v607 = vpop.permute.xlu0 %606
  %v609 = vadd.f32 %v599, %v607
  %v610 = vtanh.pop %v609
  %612 = vrot.lane.b32.xlu0 %v610, 64
  %v613 = vpop.permute.xlu0 %612
  %v615 = vmul.f32 %v593, %v613
  %v616 = vsel %vm400, 1, 0
  %617 = vset.pattern.permute.xlu0 0
  %618 = vperm.xlu0 %617, %v616
  %v619 = vpop.permute.xlu0 %618
  %vm620 = vcmp.eq.s32.totalorder %v619, 1
  %v621 = vsel %vm620, %v609, %v597
  %622 = vrot.lane.b32.xlu0 %v396, 96
  %v623 = vpop.permute.xlu0 %622
  %v625 = vsel %vm620, %v615, %v623
  %v626 = vsel %vm620, %v615, 0.0
  %628 = vrot.lane.b32.xlu0 %v514, 32
  %v629 = vpop.permute.xlu0 %628
  %631 = vst.msk [vmem:[%s6] sm:$0xff] %vm86, %v629
  %633 = vrot.lane.b32.xlu0 %v626, 32
  %v634 = vpop.permute.xlu0 %633
  %636 = vst.msk [vmem:[%s56 + $0x38] sm:$0xff] %vm86, %v634
  %s637 = sadd.s32 %s393, 1
  %v638 = vstv %s637
  %vm639 = vcmp.lt.s32.totalorder %v638, %v391
  %vm640 = vcmp.ge.s32.totalorder %v638, %v392
  %v641 = vld [vmem:[#allocation6 + $0x8] sm:$0xff]
  %v642 = vld [vmem:[#allocation7 + $0x30] sm:$0xff]
  %644 = vrot.lane.b32.xlu0 %v513, 32
  %v645 = vpop.permute.xlu0 %644
  %v646 = vsel %vm86, %v645, 0
  %648 = vmatprep.subr.mxu0 0.0
  %649 = vmatpush1.msra.mxu0 0.0
  %650 = vmatprep.subr.mxu0 0.0
  %651 = vmatpush1.msra.mxu0 0.0
  %652 = vmatprep.subr.mxu0 0.0
  %653 = vmatpush1.msra.mxu0 0.0
  %654 = vmatprep.subr.mxu0 0.0
  %655 = vmatpush1.msra.mxu0 0.0
  %656 = vmatprep.subr.mxu0 0.0
  %657 = vmatpush1.msra.mxu0 0.0
  %658 = vmatprep.subr.mxu0 0.0
  %659 = vmatpush1.msra.mxu0 0.0
  %660 = vmatprep.subr.mxu0 0.0
  %661 = vmatpush1.msra.mxu0 0.0
  %662 = vmatprep.subr.mxu0 0.0
  %663 = vmatpush1.msra.mxu0 0.0
  %664 = vmatprep.subr.mxu0 0.0
  %665 = vmatpush1.msra.mxu0 0.0
  %666 = vmatprep.subr.mxu0 0.0
  %667 = vmatpush1.msra.mxu0 0.0
  %668 = vmatprep.subr.mxu0 0.0
  %669 = vmatpush1.msra.mxu0 0.0
  %670 = vmatprep.subr.mxu0 0.0
  %671 = vmatpush1.msra.mxu0 0.0
  %672 = vmatprep.subr.mxu0 0.0
  %673 = vmatpush1.msra.mxu0 %v385
  %674 = vmatprep.subr.mxu0 0.0
  %675 = vmatpush1.msra.mxu0 %v384
  %676 = vmatprep.subr.mxu0 0.0
  %677 = vmatpush1.msra.mxu0 %v383
  %678 = vmatprep.subr.mxu0 0.0
  %679 = vmatpush1.msra.mxu0 %v382
  %680 = vmatprep.subr.mxu0 0.0
  %681 = vmatpush2.msra.mxu0 0.0
  %682 = vmatprep.subr.mxu0 0.0
  %683 = vmatpush2.msra.mxu0 0.0
  %684 = vmatprep.subr.mxu0 0.0
  %685 = vmatpush2.msra.mxu0 0.0
  %686 = vmatprep.subr.mxu0 0.0
  %687 = vmatpush2.msra.mxu0 0.0
  %688 = vmatprep.subr.mxu0 0.0
  %689 = vmatpush2.msra.mxu0 0.0
  %690 = vmatprep.subr.mxu0 0.0
  %691 = vmatpush2.msra.mxu0 0.0
  %692 = vmatprep.subr.mxu0 0.0
  %693 = vmatpush2.msra.mxu0 0.0
  %694 = vmatprep.subr.mxu0 0.0
  %695 = vmatpush2.msra.mxu0 0.0
  %696 = vmatprep.subr.mxu0 0.0
  %697 = vmatpush2.msra.mxu0 0.0
  %698 = vmatprep.subr.mxu0 0.0
  %699 = vmatpush2.msra.mxu0 0.0
  %700 = vmatprep.subr.mxu0 0.0
  %701 = vmatpush2.msra.mxu0 0.0
  %702 = vmatprep.subr.mxu0 0.0
  %703 = vmatpush2.msra.mxu0 0.0
  %704 = vmatprep.subr.mxu0 0.0
  %705 = vmatpush2.msra.mxu0 0.0
  %706 = vmatprep.subr.mxu0 0.0
  %707 = vmatpush2.msra.mxu0 0.0
  %708 = vmatprep.subr.mxu0 0.0
  %709 = vmatpush2.msra.mxu0 0.0
  %710 = vmatprep.subr.mxu0 0.0
  %711 = vmatpush2.msra.mxu0 0.0
  %712 = vmatprep.mubr.f32.mxu0 0.0
  %713 = vmatmul.mubr.f32.gmra.mxu0 %v646
  %v714 = vpop.f32.mrf.mxu0
  %v715 = vadd.f32 %v641, %v714
  %v716 = vpop.f32.mrf.mxu0
  %717 = vdwg.mxu0
  %v718 = vxor.u32 %v715, 2147483648
  %v719 = vmul.f32 %v718, 1.442695
  %v720 = vpow.pop %v719
  %v721 = vadd.f32 %v720, 1.0
  %v722 = vrcp.pop %v721
  %v723 = vmul.f32 1.0, %v722
  %v724 = vtanh.pop %v715
  %v725 = vmul.f32 %v723, %v509
  %727 = vrot.lane.b32.xlu0 %v724, 64
  %v728 = vpop.permute.xlu0 %727
  %v730 = vmul.f32 %v723, %v728
  %732 = vrot.lane.b32.xlu0 %v730, 32
  %v733 = vpop.permute.xlu0 %732
  %v735 = vadd.f32 %v725, %v733
  %v736 = vtanh.pop %v735
  %738 = vrot.lane.b32.xlu0 %v736, 64
  %v739 = vpop.permute.xlu0 %738
  %v741 = vmul.f32 %v723, %v739
  %v742 = vsel %vm639, 1, 0
  %743 = vset.pattern.permute.xlu0 0
  %744 = vperm.xlu0 %743, %v742
  %v745 = vpop.permute.xlu0 %744
  %vm746 = vcmp.eq.s32.totalorder %v745, 1
  %v747 = vsel %vm746, %v735, %v509
  %v748 = vsel %vm746, %v741, %v513
  %v749 = vsel %vm746, %v741, 0.0
  %751 = vrot.lane.b32.xlu0 %v625, 32
  %v752 = vpop.permute.xlu0 %751
  %v753 = vsel %vm86, %v752, 0
  %755 = vmatprep.subr.mxu0 0.0
  %756 = vmatpush1.msra.mxu0 0.0
  %757 = vmatprep.subr.mxu0 0.0
  %758 = vmatpush1.msra.mxu0 0.0
  %759 = vmatprep.subr.mxu0 0.0
  %760 = vmatpush1.msra.mxu0 0.0
  %761 = vmatprep.subr.mxu0 0.0
  %762 = vmatpush1.msra.mxu0 0.0
  %763 = vmatprep.subr.mxu0 0.0
  %764 = vmatpush1.msra.mxu0 0.0
  %765 = vmatprep.subr.mxu0 0.0
  %766 = vmatpush1.msra.mxu0 0.0
  %767 = vmatprep.subr.mxu0 0.0
  %768 = vmatpush1.msra.mxu0 0.0
  %769 = vmatprep.subr.mxu0 0.0
  %770 = vmatpush1.msra.mxu0 0.0
  %771 = vmatprep.subr.mxu0 0.0
  %772 = vmatpush1.msra.mxu0 0.0
  %773 = vmatprep.subr.mxu0 0.0
  %774 = vmatpush1.msra.mxu0 0.0
  %775 = vmatprep.subr.mxu0 0.0
  %776 = vmatpush1.msra.mxu0 0.0
  %777 = vmatprep.subr.mxu0 0.0
  %778 = vmatpush1.msra.mxu0 0.0
  %779 = vmatprep.subr.mxu0 0.0
  %780 = vmatpush1.msra.mxu0 %v390
  %781 = vmatprep.subr.mxu0 0.0
  %782 = vmatpush1.msra.mxu0 %v389
  %783 = vmatprep.subr.mxu0 0.0
  %784 = vmatpush1.msra.mxu0 %v388
  %785 = vmatprep.subr.mxu0 0.0
  %786 = vmatpush1.msra.mxu0 %v387
  %787 = vmatprep.subr.mxu0 0.0
  %788 = vmatpush2.msra.mxu0 0.0
  %789 = vmatprep.subr.mxu0 0.0
  %790 = vmatpush2.msra.mxu0 0.0
  %791 = vmatprep.subr.mxu0 0.0
  %792 = vmatpush2.msra.mxu0 0.0
  %793 = vmatprep.subr.mxu0 0.0
  %794 = vmatpush2.msra.mxu0 0.0
  %795 = vmatprep.subr.mxu0 0.0
  %796 = vmatpush2.msra.mxu0 0.0
  %797 = vmatprep.subr.mxu0 0.0
  %798 = vmatpush2.msra.mxu0 0.0
  %799 = vmatprep.subr.mxu0 0.0
  %800 = vmatpush2.msra.mxu0 0.0
  %801 = vmatprep.subr.mxu0 0.0
  %802 = vmatpush2.msra.mxu0 0.0
  %803 = vmatprep.subr.mxu0 0.0
  %804 = vmatpush2.msra.mxu0 0.0
  %805 = vmatprep.subr.mxu0 0.0
  %806 = vmatpush2.msra.mxu0 0.0
  %807 = vmatprep.subr.mxu0 0.0
  %808 = vmatpush2.msra.mxu0 0.0
  %809 = vmatprep.subr.mxu0 0.0
  %810 = vmatpush2.msra.mxu0 0.0
  %811 = vmatprep.subr.mxu0 0.0
  %812 = vmatpush2.msra.mxu0 0.0
  %813 = vmatprep.subr.mxu0 0.0
  %814 = vmatpush2.msra.mxu0 0.0
  %815 = vmatprep.subr.mxu0 0.0
  %816 = vmatpush2.msra.mxu0 0.0
  %817 = vmatprep.subr.mxu0 0.0
  %818 = vmatpush2.msra.mxu0 0.0
  %819 = vmatprep.mubr.f32.mxu0 0.0
  %820 = vmatmul.mubr.f32.gmra.mxu0 %v753
  %v821 = vpop.f32.mrf.mxu0
  %v822 = vadd.f32 %v642, %v821
  %v823 = vpop.f32.mrf.mxu0
  %824 = vdwg.mxu0
  %v825 = vxor.u32 %v822, 2147483648
  %v826 = vmul.f32 %v825, 1.442695
  %v827 = vpow.pop %v826
  %v828 = vadd.f32 %v827, 1.0
  %v829 = vrcp.pop %v828
  %v830 = vmul.f32 1.0, %v829
  %v831 = vtanh.pop %v822
  %v832 = vmul.f32 %v830, %v621
  %834 = vrot.lane.b32.xlu0 %v831, 64
  %v835 = vpop.permute.xlu0 %834
  %v837 = vmul.f32 %v830, %v835
  %839 = vrot.lane.b32.xlu0 %v837, 32
  %v840 = vpop.permute.xlu0 %839
  %v842 = vadd.f32 %v832, %v840
  %v843 = vtanh.pop %v842
  %845 = vrot.lane.b32.xlu0 %v843, 64
  %v846 = vpop.permute.xlu0 %845
  %v848 = vmul.f32 %v830, %v846
  %v849 = vsel %vm640, 1, 0
  %850 = vset.pattern.permute.xlu0 0
  %851 = vperm.xlu0 %850, %v849
  %v852 = vpop.permute.xlu0 %851
  %vm853 = vcmp.eq.s32.totalorder %v852, 1
  %v854 = vsel %vm853, %v842, %v621
  %v855 = vsel %vm853, %v848, %v625
  %v856 = vsel %vm853, %v848, 0.0
  %858 = vrot.lane.b32.xlu0 %v749, 32
  %v859 = vpop.permute.xlu0 %858
  %861 = vst.msk [vmem:[%s6 + $0x8] sm:$0xff] %vm86, %v859
  %863 = vrot.lane.b32.xlu0 %v856, 32
  %v864 = vpop.permute.xlu0 %863
  %866 = vst.msk [vmem:[%s56 + $0x30] sm:$0xff] %vm86, %v864
  %s867 = sadd.s32 %s393, 2
  %v868 = vstv %s867
  %vm869 = vcmp.lt.s32.totalorder %v868, %v391
  %vm870 = vcmp.ge.s32.totalorder %v868, %v392
  %v871 = vld [vmem:[#allocation6 + $0x10] sm:$0xff]
  %v872 = vld [vmem:[#allocation7 + $0x28] sm:$0xff]
  %874 = vrot.lane.b32.xlu0 %v748, 32
  %v875 = vpop.permute.xlu0 %874
  %v876 = vsel %vm86, %v875, 0
  %878 = vmatprep.subr.mxu0 0.0
  %879 = vmatpush1.msra.mxu0 0.0
  %880 = vmatprep.subr.mxu0 0.0
  %881 = vmatpush1.msra.mxu0 0.0
  %882 = vmatprep.subr.mxu0 0.0
  %883 = vmatpush1.msra.mxu0 0.0
  %884 = vmatprep.subr.mxu0 0.0
  %885 = vmatpush1.msra.mxu0 0.0
  %886 = vmatprep.subr.mxu0 0.0
  %887 = vmatpush1.msra.mxu0 0.0
  %888 = vmatprep.subr.mxu0 0.0
  %889 = vmatpush1.msra.mxu0 0.0
  %890 = vmatprep.subr.mxu0 0.0
  %891 = vmatpush1.msra.mxu0 0.0
  %892 = vmatprep.subr.mxu0 0.0
  %893 = vmatpush1.msra.mxu0 0.0
  %894 = vmatprep.subr.mxu0 0.0
  %895 = vmatpush1.msra.mxu0 0.0
  %896 = vmatprep.subr.mxu0 0.0
  %897 = vmatpush1.msra.mxu0 0.0
  %898 = vmatprep.subr.mxu0 0.0
  %899 = vmatpush1.msra.mxu0 0.0
  %900 = vmatprep.subr.mxu0 0.0
  %901 = vmatpush1.msra.mxu0 0.0
  %902 = vmatprep.subr.mxu0 0.0
  %903 = vmatpush1.msra.mxu0 %v385
  %904 = vmatprep.subr.mxu0 0.0
  %905 = vmatpush1.msra.mxu0 %v384
  %906 = vmatprep.subr.mxu0 0.0
  %907 = vmatpush1.msra.mxu0 %v383
  %908 = vmatprep.subr.mxu0 0.0
  %909 = vmatpush1.msra.mxu0 %v382
  %910 = vmatprep.subr.mxu0 0.0
  %911 = vmatpush2.msra.mxu0 0.0
  %912 = vmatprep.subr.mxu0 0.0
  %913 = vmatpush2.msra.mxu0 0.0
  %914 = vmatprep.subr.mxu0 0.0
  %915 = vmatpush2.msra.mxu0 0.0
  %916 = vmatprep.subr.mxu0 0.0
  %917 = vmatpush2.msra.mxu0 0.0
  %918 = vmatprep.subr.mxu0 0.0
  %919 = vmatpush2.msra.mxu0 0.0
  %920 = vmatprep.subr.mxu0 0.0
  %921 = vmatpush2.msra.mxu0 0.0
  %922 = vmatprep.subr.mxu0 0.0
  %923 = vmatpush2.msra.mxu0 0.0
  %924 = vmatprep.subr.mxu0 0.0
  %925 = vmatpush2.msra.mxu0 0.0
  %926 = vmatprep.subr.mxu0 0.0
  %927 = vmatpush2.msra.mxu0 0.0
  %928 = vmatprep.subr.mxu0 0.0
  %929 = vmatpush2.msra.mxu0 0.0
  %930 = vmatprep.subr.mxu0 0.0
  %931 = vmatpush2.msra.mxu0 0.0
  %932 = vmatprep.subr.mxu0 0.0
  %933 = vmatpush2.msra.mxu0 0.0
  %934 = vmatprep.subr.mxu0 0.0
  %935 = vmatpush2.msra.mxu0 0.0
  %936 = vmatprep.subr.mxu0 0.0
  %937 = vmatpush2.msra.mxu0 0.0
  %938 = vmatprep.subr.mxu0 0.0
  %939 = vmatpush2.msra.mxu0 0.0
  %940 = vmatprep.subr.mxu0 0.0
  %941 = vmatpush2.msra.mxu0 0.0
  %942 = vmatprep.mubr.f32.mxu0 0.0
  %943 = vmatmul.mubr.f32.gmra.mxu0 %v876
  %v944 = vpop.f32.mrf.mxu0
  %v945 = vadd.f32 %v871, %v944
  %v946 = vpop.f32.mrf.mxu0
  %947 = vdwg.mxu0
  %v948 = vxor.u32 %v945, 2147483648
  %v949 = vmul.f32 %v948, 1.442695
  %v950 = vpow.pop %v949
  %v951 = vadd.f32 %v950, 1.0
  %v952 = vrcp.pop %v951
  %v953 = vmul.f32 1.0, %v952
  %v954 = vtanh.pop %v945
  %v955 = vmul.f32 %v953, %v747
  %957 = vrot.lane.b32.xlu0 %v954, 64
  %v958 = vpop.permute.xlu0 %957
  %v960 = vmul.f32 %v953, %v958
  %962 = vrot.lane.b32.xlu0 %v960, 32
  %v963 = vpop.permute.xlu0 %962
  %v965 = vadd.f32 %v955, %v963
  %v966 = vtanh.pop %v965
  %968 = vrot.lane.b32.xlu0 %v966, 64
  %v969 = vpop.permute.xlu0 %968
  %v971 = vmul.f32 %v953, %v969
  %v972 = vsel %vm869, 1, 0
  %973 = vset.pattern.permute.xlu0 0
  %974 = vperm.xlu0 %973, %v972
  %v975 = vpop.permute.xlu0 %974
  %vm976 = vcmp.eq.s32.totalorder %v975, 1
  %v977 = vsel %vm976, %v965, %v747
  %v978 = vsel %vm976, %v971, %v748
  %v979 = vsel %vm976, %v971, 0.0
  %981 = vrot.lane.b32.xlu0 %v855, 32
  %v982 = vpop.permute.xlu0 %981
  %v983 = vsel %vm86, %v982, 0
  %985 = vmatprep.subr.mxu0 0.0
  %986 = vmatpush1.msra.mxu0 0.0
  %987 = vmatprep.subr.mxu0 0.0
  %988 = vmatpush1.msra.mxu0 0.0
  %989 = vmatprep.subr.mxu0 0.0
  %990 = vmatpush1.msra.mxu0 0.0
  %991 = vmatprep.subr.mxu0 0.0
  %992 = vmatpush1.msra.mxu0 0.0
  %993 = vmatprep.subr.mxu0 0.0
  %994 = vmatpush1.msra.mxu0 0.0
  %995 = vmatprep.subr.mxu0 0.0
  %996 = vmatpush1.msra.mxu0 0.0
  %997 = vmatprep.subr.mxu0 0.0
  %998 = vmatpush1.msra.mxu0 0.0
  %999 = vmatprep.subr.mxu0 0.0
  %1000 = vmatpush1.msra.mxu0 0.0
  %1001 = vmatprep.subr.mxu0 0.0
  %1002 = vmatpush1.msra.mxu0 0.0
  %1003 = vmatprep.subr.mxu0 0.0
  %1004 = vmatpush1.msra.mxu0 0.0
  %1005 = vmatprep.subr.mxu0 0.0
  %1006 = vmatpush1.msra.mxu0 0.0
  %1007 = vmatprep.subr.mxu0 0.0
  %1008 = vmatpush1.msra.mxu0 0.0
  %1009 = vmatprep.subr.mxu0 0.0
  %1010 = vmatpush1.msra.mxu0 %v390
  %1011 = vmatprep.subr.mxu0 0.0
  %1012 = vmatpush1.msra.mxu0 %v389
  %1013 = vmatprep.subr.mxu0 0.0
  %1014 = vmatpush1.msra.mxu0 %v388
  %1015 = vmatprep.subr.mxu0 0.0
  %1016 = vmatpush1.msra.mxu0 %v387
  %1017 = vmatprep.subr.mxu0 0.0
  %1018 = vmatpush2.msra.mxu0 0.0
  %1019 = vmatprep.subr.mxu0 0.0
  %1020 = vmatpush2.msra.mxu0 0.0
  %1021 = vmatprep.subr.mxu0 0.0
  %1022 = vmatpush2.msra.mxu0 0.0
  %1023 = vmatprep.subr.mxu0 0.0
  %1024 = vmatpush2.msra.mxu0 0.0
  %1025 = vmatprep.subr.mxu0 0.0
  %1026 = vmatpush2.msra.mxu0 0.0
  %1027 = vmatprep.subr.mxu0 0.0
  %1028 = vmatpush2.msra.mxu0 0.0
  %1029 = vmatprep.subr.mxu0 0.0
  %1030 = vmatpush2.msra.mxu0 0.0
  %1031 = vmatprep.subr.mxu0 0.0
  %1032 = vmatpush2.msra.mxu0 0.0
  %1033 = vmatprep.subr.mxu0 0.0
  %1034 = vmatpush2.msra.mxu0 0.0
  %1035 = vmatprep.subr.mxu0 0.0
  %1036 = vmatpush2.msra.mxu0 0.0
  %1037 = vmatprep.subr.mxu0 0.0
  %1038 = vmatpush2.msra.mxu0 0.0
  %1039 = vmatprep.subr.mxu0 0.0
  %1040 = vmatpush2.msra.mxu0 0.0
  %1041 = vmatprep.subr.mxu0 0.0
  %1042 = vmatpush2.msra.mxu0 0.0
  %1043 = vmatprep.subr.mxu0 0.0
  %1044 = vmatpush2.msra.mxu0 0.0
  %1045 = vmatprep.subr.mxu0 0.0
  %1046 = vmatpush2.msra.mxu0 0.0
  %1047 = vmatprep.subr.mxu0 0.0
  %1048 = vmatpush2.msra.mxu0 0.0
  %1049 = vmatprep.mubr.f32.mxu0 0.0
  %1050 = vmatmul.mubr.f32.gmra.mxu0 %v983
  %v1051 = vpop.f32.mrf.mxu0
  %v1052 = vadd.f32 %v872, %v1051
  %v1053 = vpop.f32.mrf.mxu0
  %1054 = vdwg.mxu0
  %v1055 = vxor.u32 %v1052, 2147483648
  %v1056 = vmul.f32 %v1055, 1.442695
  %v1057 = vpow.pop %v1056
  %v1058 = vadd.f32 %v1057, 1.0
  %v1059 = vrcp.pop %v1058
  %v1060 = vmul.f32 1.0, %v1059
  %v1061 = vtanh.pop %v1052
  %v1062 = vmul.f32 %v1060, %v854
  %1064 = vrot.lane.b32.xlu0 %v1061, 64
  %v1065 = vpop.permute.xlu0 %1064
  %v1067 = vmul.f32 %v1060, %v1065
  %1069 = vrot.lane.b32.xlu0 %v1067, 32
  %v1070 = vpop.permute.xlu0 %1069
  %v1072 = vadd.f32 %v1062, %v1070
  %v1073 = vtanh.pop %v1072
  %1075 = vrot.lane.b32.xlu0 %v1073, 64
  %v1076 = vpop.permute.xlu0 %1075
  %v1078 = vmul.f32 %v1060, %v1076
  %v1079 = vsel %vm870, 1, 0
  %1080 = vset.pattern.permute.xlu0 0
  %1081 = vperm.xlu0 %1080, %v1079
  %v1082 = vpop.permute.xlu0 %1081
  %vm1083 = vcmp.eq.s32.totalorder %v1082, 1
  %v1084 = vsel %vm1083, %v1072, %v854
  %v1085 = vsel %vm1083, %v1078, %v855
  %v1086 = vsel %vm1083, %v1078, 0.0
  %1088 = vrot.lane.b32.xlu0 %v979, 32
  %v1089 = vpop.permute.xlu0 %1088
  %1091 = vst.msk [vmem:[%s6 + $0x10] sm:$0xff] %vm86, %v1089
  %1093 = vrot.lane.b32.xlu0 %v1086, 32
  %v1094 = vpop.permute.xlu0 %1093
  %1096 = vst.msk [vmem:[%s56 + $0x28] sm:$0xff] %vm86, %v1094
  %s1097 = sadd.s32 %s393, 3
  %v1098 = vstv %s1097
  %vm1099 = vcmp.lt.s32.totalorder %v1098, %v391
  %vm1100 = vcmp.ge.s32.totalorder %v1098, %v392
  %v1101 = vld [vmem:[#allocation6 + $0x18] sm:$0xff]
  %v1102 = vld [vmem:[#allocation7 + $0x20] sm:$0xff]
  %1104 = vrot.lane.b32.xlu0 %v978, 32
  %v1105 = vpop.permute.xlu0 %1104
  %v1106 = vsel %vm86, %v1105, 0
  %1108 = vmatprep.subr.mxu0 0.0
  %1109 = vmatpush1.msra.mxu0 0.0
  %1110 = vmatprep.subr.mxu0 0.0
  %1111 = vmatpush1.msra.mxu0 0.0
  %1112 = vmatprep.subr.mxu0 0.0
  %1113 = vmatpush1.msra.mxu0 0.0
  %1114 = vmatprep.subr.mxu0 0.0
  %1115 = vmatpush1.msra.mxu0 0.0
  %1116 = vmatprep.subr.mxu0 0.0
  %1117 = vmatpush1.msra.mxu0 0.0
  %1118 = vmatprep.subr.mxu0 0.0
  %1119 = vmatpush1.msra.mxu0 0.0
  %1120 = vmatprep.subr.mxu0 0.0
  %1121 = vmatpush1.msra.mxu0 0.0
  %1122 = vmatprep.subr.mxu0 0.0
  %1123 = vmatpush1.msra.mxu0 0.0
  %1124 = vmatprep.subr.mxu0 0.0
  %1125 = vmatpush1.msra.mxu0 0.0
  %1126 = vmatprep.subr.mxu0 0.0
  %1127 = vmatpush1.msra.mxu0 0.0
  %1128 = vmatprep.subr.mxu0 0.0
  %1129 = vmatpush1.msra.mxu0 0.0
  %1130 = vmatprep.subr.mxu0 0.0
  %1131 = vmatpush1.msra.mxu0 0.0
  %1132 = vmatprep.subr.mxu0 0.0
  %1133 = vmatpush1.msra.mxu0 %v385
  %1134 = vmatprep.subr.mxu0 0.0
  %1135 = vmatpush1.msra.mxu0 %v384
  %1136 = vmatprep.subr.mxu0 0.0
  %1137 = vmatpush1.msra.mxu0 %v383
  %1138 = vmatprep.subr.mxu0 0.0
  %1139 = vmatpush1.msra.mxu0 %v382
  %1140 = vmatprep.subr.mxu0 0.0
  %1141 = vmatpush2.msra.mxu0 0.0
  %1142 = vmatprep.subr.mxu0 0.0
  %1143 = vmatpush2.msra.mxu0 0.0
  %1144 = vmatprep.subr.mxu0 0.0
  %1145 = vmatpush2.msra.mxu0 0.0
  %1146 = vmatprep.subr.mxu0 0.0
  %1147 = vmatpush2.msra.mxu0 0.0
  %1148 = vmatprep.subr.mxu0 0.0
  %1149 = vmatpush2.msra.mxu0 0.0
  %1150 = vmatprep.subr.mxu0 0.0
  %1151 = vmatpush2.msra.mxu0 0.0
  %1152 = vmatprep.subr.mxu0 0.0
  %1153 = vmatpush2.msra.mxu0 0.0
  %1154 = vmatprep.subr.mxu0 0.0
  %1155 = vmatpush2.msra.mxu0 0.0
  %1156 = vmatprep.subr.mxu0 0.0
  %1157 = vmatpush2.msra.mxu0 0.0
  %1158 = vmatprep.subr.mxu0 0.0
  %1159 = vmatpush2.msra.mxu0 0.0
  %1160 = vmatprep.subr.mxu0 0.0
  %1161 = vmatpush2.msra.mxu0 0.0
  %1162 = vmatprep.subr.mxu0 0.0
  %1163 = vmatpush2.msra.mxu0 0.0
  %1164 = vmatprep.subr.mxu0 0.0
  %1165 = vmatpush2.msra.mxu0 0.0
  %1166 = vmatprep.subr.mxu0 0.0
  %1167 = vmatpush2.msra.mxu0 0.0
  %1168 = vmatprep.subr.mxu0 0.0
  %1169 = vmatpush2.msra.mxu0 0.0
  %1170 = vmatprep.subr.mxu0 0.0
  %1171 = vmatpush2.msra.mxu0 0.0
  %1172 = vmatprep.mubr.f32.mxu0 0.0
  %1173 = vmatmul.mubr.f32.gmra.mxu0 %v1106
  %v1174 = vpop.f32.mrf.mxu0
  %v1175 = vadd.f32 %v1101, %v1174
  %v1176 = vpop.f32.mrf.mxu0
  %1177 = vdwg.mxu0
  %v1178 = vxor.u32 %v1175, 2147483648
  %v1179 = vmul.f32 %v1178, 1.442695
  %v1180 = vpow.pop %v1179
  %v1181 = vadd.f32 %v1180, 1.0
  %v1182 = vrcp.pop %v1181
  %v1183 = vmul.f32 1.0, %v1182
  %v1184 = vtanh.pop %v1175
  %v1185 = vmul.f32 %v1183, %v977
  %1187 = vrot.lane.b32.xlu0 %v1184, 64
  %v1188 = vpop.permute.xlu0 %1187
  %v1190 = vmul.f32 %v1183, %v1188
  %1192 = vrot.lane.b32.xlu0 %v1190, 32
  %v1193 = vpop.permute.xlu0 %1192
  %v1195 = vadd.f32 %v1185, %v1193
  %v1196 = vtanh.pop %v1195
  %1198 = vrot.lane.b32.xlu0 %v1196, 64
  %v1199 = vpop.permute.xlu0 %1198
  %v1201 = vmul.f32 %v1183, %v1199
  %v1202 = vsel %vm1099, 1, 0
  %1203 = vset.pattern.permute.xlu0 0
  %1204 = vperm.xlu0 %1203, %v1202
  %v1205 = vpop.permute.xlu0 %1204
  %vm1206 = vcmp.eq.s32.totalorder %v1205, 1
  %v1207 = vsel %vm1206, %v1195, %v977
  %v1208 = vsel %vm1206, %v1201, %v978
  %v1209 = vsel %vm1206, %v1201, 0.0
  %1211 = vrot.lane.b32.xlu0 %v1085, 32
  %v1212 = vpop.permute.xlu0 %1211
  %v1213 = vsel %vm86, %v1212, 0
  %1215 = vmatprep.subr.mxu0 0.0
  %1216 = vmatpush1.msra.mxu0 0.0
  %1217 = vmatprep.subr.mxu0 0.0
  %1218 = vmatpush1.msra.mxu0 0.0
  %1219 = vmatprep.subr.mxu0 0.0
  %1220 = vmatpush1.msra.mxu0 0.0
  %1221 = vmatprep.subr.mxu0 0.0
  %1222 = vmatpush1.msra.mxu0 0.0
  %1223 = vmatprep.subr.mxu0 0.0
  %1224 = vmatpush1.msra.mxu0 0.0
  %1225 = vmatprep.subr.mxu0 0.0
  %1226 = vmatpush1.msra.mxu0 0.0
  %1227 = vmatprep.subr.mxu0 0.0
  %1228 = vmatpush1.msra.mxu0 0.0
  %1229 = vmatprep.subr.mxu0 0.0
  %1230 = vmatpush1.msra.mxu0 0.0
  %1231 = vmatprep.subr.mxu0 0.0
  %1232 = vmatpush1.msra.mxu0 0.0
  %1233 = vmatprep.subr.mxu0 0.0
  %1234 = vmatpush1.msra.mxu0 0.0
  %1235 = vmatprep.subr.mxu0 0.0
  %1236 = vmatpush1.msra.mxu0 0.0
  %1237 = vmatprep.subr.mxu0 0.0
  %1238 = vmatpush1.msra.mxu0 0.0
  %1239 = vmatprep.subr.mxu0 0.0
  %1240 = vmatpush1.msra.mxu0 %v390
  %1241 = vmatprep.subr.mxu0 0.0
  %1242 = vmatpush1.msra.mxu0 %v389
  %1243 = vmatprep.subr.mxu0 0.0
  %1244 = vmatpush1.msra.mxu0 %v388
  %1245 = vmatprep.subr.mxu0 0.0
  %1246 = vmatpush1.msra.mxu0 %v387
  %1247 = vmatprep.subr.mxu0 0.0
  %1248 = vmatpush2.msra.mxu0 0.0
  %1249 = vmatprep.subr.mxu0 0.0
  %1250 = vmatpush2.msra.mxu0 0.0
  %1251 = vmatprep.subr.mxu0 0.0
  %1252 = vmatpush2.msra.mxu0 0.0
  %1253 = vmatprep.subr.mxu0 0.0
  %1254 = vmatpush2.msra.mxu0 0.0
  %1255 = vmatprep.subr.mxu0 0.0
  %1256 = vmatpush2.msra.mxu0 0.0
  %1257 = vmatprep.subr.mxu0 0.0
  %1258 = vmatpush2.msra.mxu0 0.0
  %1259 = vmatprep.subr.mxu0 0.0
  %1260 = vmatpush2.msra.mxu0 0.0
  %1261 = vmatprep.subr.mxu0 0.0
  %1262 = vmatpush2.msra.mxu0 0.0
  %1263 = vmatprep.subr.mxu0 0.0
  %1264 = vmatpush2.msra.mxu0 0.0
  %1265 = vmatprep.subr.mxu0 0.0
  %1266 = vmatpush2.msra.mxu0 0.0
  %1267 = vmatprep.subr.mxu0 0.0
  %1268 = vmatpush2.msra.mxu0 0.0
  %1269 = vmatprep.subr.mxu0 0.0
  %1270 = vmatpush2.msra.mxu0 0.0
  %1271 = vmatprep.subr.mxu0 0.0
  %1272 = vmatpush2.msra.mxu0 0.0
  %1273 = vmatprep.subr.mxu0 0.0
  %1274 = vmatpush2.msra.mxu0 0.0
  %1275 = vmatprep.subr.mxu0 0.0
  %1276 = vmatpush2.msra.mxu0 0.0
  %1277 = vmatprep.subr.mxu0 0.0
  %1278 = vmatpush2.msra.mxu0 0.0
  %1279 = vmatprep.mubr.f32.mxu0 0.0
  %1280 = vmatmul.mubr.f32.gmra.mxu0 %v1213
  %v1281 = vpop.f32.mrf.mxu0
  %v1282 = vadd.f32 %v1102, %v1281
  %v1283 = vpop.f32.mrf.mxu0
  %1284 = vdwg.mxu0
  %v1285 = vxor.u32 %v1282, 2147483648
  %v1286 = vmul.f32 %v1285, 1.442695
  %v1287 = vpow.pop %v1286
  %v1288 = vadd.f32 %v1287, 1.0
  %v1289 = vrcp.pop %v1288
  %v1290 = vmul.f32 1.0, %v1289
  %v1291 = vtanh.pop %v1282
  %v1292 = vmul.f32 %v1290, %v1084
  %1294 = vrot.lane.b32.xlu0 %v1291, 64
  %v1295 = vpop.permute.xlu0 %1294
  %v1297 = vmul.f32 %v1290, %v1295
  %1299 = vrot.lane.b32.xlu0 %v1297, 32
  %v1300 = vpop.permute.xlu0 %1299
  %v1302 = vadd.f32 %v1292, %v1300
  %v1303 = vtanh.pop %v1302
  %1305 = vrot.lane.b32.xlu0 %v1303, 64
  %v1306 = vpop.permute.xlu0 %1305
  %v1308 = vmul.f32 %v1290, %v1306
  %v1309 = vsel %vm1100, 1, 0
  %1310 = vset.pattern.permute.xlu0 0
  %1311 = vperm.xlu0 %1310, %v1309
  %v1312 = vpop.permute.xlu0 %1311
  %vm1313 = vcmp.eq.s32.totalorder %v1312, 1
  %v1314 = vsel %vm1313, %v1302, %v1084
  %v1315 = vsel %vm1313, %v1308, %v1085
  %v1316 = vsel %vm1313, %v1308, 0.0
  %1318 = vrot.lane.b32.xlu0 %v1209, 32
  %v1319 = vpop.permute.xlu0 %1318
  %1321 = vst.msk [vmem:[%s6 + $0x18] sm:$0xff] %vm86, %v1319
  %1323 = vrot.lane.b32.xlu0 %v1316, 32
  %v1324 = vpop.permute.xlu0 %1323
  %1326 = vst.msk [vmem:[%s56 + $0x20] sm:$0xff] %vm86, %v1324
  %s1327 = sadd.s32 %s393, 4
  %v1328 = vstv %s1327
  %vm1329 = vcmp.lt.s32.totalorder %v1328, %v391
  %vm1330 = vcmp.ge.s32.totalorder %v1328, %v392
  %v1331 = vld [vmem:[#allocation6 + $0x20] sm:$0xff]
  %v1332 = vld [vmem:[#allocation7 + $0x18] sm:$0xff]
  %1334 = vrot.lane.b32.xlu0 %v1208, 32
  %v1335 = vpop.permute.xlu0 %1334
  %v1336 = vsel %vm86, %v1335, 0
  %1338 = vmatprep.subr.mxu0 0.0
  %1339 = vmatpush1.msra.mxu0 0.0
  %1340 = vmatprep.subr.mxu0 0.0
  %1341 = vmatpush1.msra.mxu0 0.0
  %1342 = vmatprep.subr.mxu0 0.0
  %1343 = vmatpush1.msra.mxu0 0.0
  %1344 = vmatprep.subr.mxu0 0.0
  %1345 = vmatpush1.msra.mxu0 0.0
  %1346 = vmatprep.subr.mxu0 0.0
  %1347 = vmatpush1.msra.mxu0 0.0
  %1348 = vmatprep.subr.mxu0 0.0
  %1349 = vmatpush1.msra.mxu0 0.0
  %1350 = vmatprep.subr.mxu0 0.0
  %1351 = vmatpush1.msra.mxu0 0.0
  %1352 = vmatprep.subr.mxu0 0.0
  %1353 = vmatpush1.msra.mxu0 0.0
  %1354 = vmatprep.subr.mxu0 0.0
  %1355 = vmatpush1.msra.mxu0 0.0
  %1356 = vmatprep.subr.mxu0 0.0
  %1357 = vmatpush1.msra.mxu0 0.0
  %1358 = vmatprep.subr.mxu0 0.0
  %1359 = vmatpush1.msra.mxu0 0.0
  %1360 = vmatprep.subr.mxu0 0.0
  %1361 = vmatpush1.msra.mxu0 0.0
  %1362 = vmatprep.subr.mxu0 0.0
  %1363 = vmatpush1.msra.mxu0 %v385
  %1364 = vmatprep.subr.mxu0 0.0
  %1365 = vmatpush1.msra.mxu0 %v384
  %1366 = vmatprep.subr.mxu0 0.0
  %1367 = vmatpush1.msra.mxu0 %v383
  %1368 = vmatprep.subr.mxu0 0.0
  %1369 = vmatpush1.msra.mxu0 %v382
  %1370 = vmatprep.subr.mxu0 0.0
  %1371 = vmatpush2.msra.mxu0 0.0
  %1372 = vmatprep.subr.mxu0 0.0
  %1373 = vmatpush2.msra.mxu0 0.0
  %1374 = vmatprep.subr.mxu0 0.0
  %1375 = vmatpush2.msra.mxu0 0.0
  %1376 = vmatprep.subr.mxu0 0.0
  %1377 = vmatpush2.msra.mxu0 0.0
  %1378 = vmatprep.subr.mxu0 0.0
  %1379 = vmatpush2.msra.mxu0 0.0
  %1380 = vmatprep.subr.mxu0 0.0
  %1381 = vmatpush2.msra.mxu0 0.0
  %1382 = vmatprep.subr.mxu0 0.0
  %1383 = vmatpush2.msra.mxu0 0.0
  %1384 = vmatprep.subr.mxu0 0.0
  %1385 = vmatpush2.msra.mxu0 0.0
  %1386 = vmatprep.subr.mxu0 0.0
  %1387 = vmatpush2.msra.mxu0 0.0
  %1388 = vmatprep.subr.mxu0 0.0
  %1389 = vmatpush2.msra.mxu0 0.0
  %1390 = vmatprep.subr.mxu0 0.0
  %1391 = vmatpush2.msra.mxu0 0.0
  %1392 = vmatprep.subr.mxu0 0.0
  %1393 = vmatpush2.msra.mxu0 0.0
  %1394 = vmatprep.subr.mxu0 0.0
  %1395 = vmatpush2.msra.mxu0 0.0
  %1396 = vmatprep.subr.mxu0 0.0
  %1397 = vmatpush2.msra.mxu0 0.0
  %1398 = vmatprep.subr.mxu0 0.0
  %1399 = vmatpush2.msra.mxu0 0.0
  %1400 = vmatprep.subr.mxu0 0.0
  %1401 = vmatpush2.msra.mxu0 0.0
  %1402 = vmatprep.mubr.f32.mxu0 0.0
  %1403 = vmatmul.mubr.f32.gmra.mxu0 %v1336
  %v1404 = vpop.f32.mrf.mxu0
  %v1405 = vadd.f32 %v1331, %v1404
  %v1406 = vpop.f32.mrf.mxu0
  %1407 = vdwg.mxu0
  %v1408 = vxor.u32 %v1405, 2147483648
  %v1409 = vmul.f32 %v1408, 1.442695
  %v1410 = vpow.pop %v1409
  %v1411 = vadd.f32 %v1410, 1.0
  %v1412 = vrcp.pop %v1411
  %v1413 = vmul.f32 1.0, %v1412
  %v1414 = vtanh.pop %v1405
  %v1415 = vmul.f32 %v1413, %v1207
  %1417 = vrot.lane.b32.xlu0 %v1414, 64
  %v1418 = vpop.permute.xlu0 %1417
  %v1420 = vmul.f32 %v1413, %v1418
  %1422 = vrot.lane.b32.xlu0 %v1420, 32
  %v1423 = vpop.permute.xlu0 %1422
  %v1425 = vadd.f32 %v1415, %v1423
  %v1426 = vtanh.pop %v1425
  %1428 = vrot.lane.b32.xlu0 %v1426, 64
  %v1429 = vpop.permute.xlu0 %1428
  %v1431 = vmul.f32 %v1413, %v1429
  %v1432 = vsel %vm1329, 1, 0
  %1433 = vset.pattern.permute.xlu0 0
  %1434 = vperm.xlu0 %1433, %v1432
  %v1435 = vpop.permute.xlu0 %1434
  %vm1436 = vcmp.eq.s32.totalorder %v1435, 1
  %v1437 = vsel %vm1436, %v1425, %v1207
  %v1438 = vsel %vm1436, %v1431, %v1208
  %v1439 = vsel %vm1436, %v1431, 0.0
  %1441 = vrot.lane.b32.xlu0 %v1315, 32
  %v1442 = vpop.permute.xlu0 %1441
  %v1443 = vsel %vm86, %v1442, 0
  %1445 = vmatprep.subr.mxu0 0.0
  %1446 = vmatpush1.msra.mxu0 0.0
  %1447 = vmatprep.subr.mxu0 0.0
  %1448 = vmatpush1.msra.mxu0 0.0
  %1449 = vmatprep.subr.mxu0 0.0
  %1450 = vmatpush1.msra.mxu0 0.0
  %1451 = vmatprep.subr.mxu0 0.0
  %1452 = vmatpush1.msra.mxu0 0.0
  %1453 = vmatprep.subr.mxu0 0.0
  %1454 = vmatpush1.msra.mxu0 0.0
  %1455 = vmatprep.subr.mxu0 0.0
  %1456 = vmatpush1.msra.mxu0 0.0
  %1457 = vmatprep.subr.mxu0 0.0
  %1458 = vmatpush1.msra.mxu0 0.0
  %1459 = vmatprep.subr.mxu0 0.0
  %1460 = vmatpush1.msra.mxu0 0.0
  %1461 = vmatprep.subr.mxu0 0.0
  %1462 = vmatpush1.msra.mxu0 0.0
  %1463 = vmatprep.subr.mxu0 0.0
  %1464 = vmatpush1.msra.mxu0 0.0
  %1465 = vmatprep.subr.mxu0 0.0
  %1466 = vmatpush1.msra.mxu0 0.0
  %1467 = vmatprep.subr.mxu0 0.0
  %1468 = vmatpush1.msra.mxu0 0.0
  %1469 = vmatprep.subr.mxu0 0.0
  %1470 = vmatpush1.msra.mxu0 %v390
  %1471 = vmatprep.subr.mxu0 0.0
  %1472 = vmatpush1.msra.mxu0 %v389
  %1473 = vmatprep.subr.mxu0 0.0
  %1474 = vmatpush1.msra.mxu0 %v388
  %1475 = vmatprep.subr.mxu0 0.0
  %1476 = vmatpush1.msra.mxu0 %v387
  %1477 = vmatprep.subr.mxu0 0.0
  %1478 = vmatpush2.msra.mxu0 0.0
  %1479 = vmatprep.subr.mxu0 0.0
  %1480 = vmatpush2.msra.mxu0 0.0
  %1481 = vmatprep.subr.mxu0 0.0
  %1482 = vmatpush2.msra.mxu0 0.0
  %1483 = vmatprep.subr.mxu0 0.0
  %1484 = vmatpush2.msra.mxu0 0.0
  %1485 = vmatprep.subr.mxu0 0.0
  %1486 = vmatpush2.msra.mxu0 0.0
  %1487 = vmatprep.subr.mxu0 0.0
  %1488 = vmatpush2.msra.mxu0 0.0
  %1489 = vmatprep.subr.mxu0 0.0
  %1490 = vmatpush2.msra.mxu0 0.0
  %1491 = vmatprep.subr.mxu0 0.0
  %1492 = vmatpush2.msra.mxu0 0.0
  %1493 = vmatprep.subr.mxu0 0.0
  %1494 = vmatpush2.msra.mxu0 0.0
  %1495 = vmatprep.subr.mxu0 0.0
  %1496 = vmatpush2.msra.mxu0 0.0
  %1497 = vmatprep.subr.mxu0 0.0
  %1498 = vmatpush2.msra.mxu0 0.0
  %1499 = vmatprep.subr.mxu0 0.0
  %1500 = vmatpush2.msra.mxu0 0.0
  %1501 = vmatprep.subr.mxu0 0.0
  %1502 = vmatpush2.msra.mxu0 0.0
  %1503 = vmatprep.subr.mxu0 0.0
  %1504 = vmatpush2.msra.mxu0 0.0
  %1505 = vmatprep.subr.mxu0 0.0
  %1506 = vmatpush2.msra.mxu0 0.0
  %1507 = vmatprep.subr.mxu0 0.0
  %1508 = vmatpush2.msra.mxu0 0.0
  %1509 = vmatprep.mubr.f32.mxu0 0.0
  %1510 = vmatmul.mubr.f32.gmra.mxu0 %v1443
  %v1511 = vpop.f32.mrf.mxu0
  %v1512 = vadd.f32 %v1332, %v1511
  %v1513 = vpop.f32.mrf.mxu0
  %1514 = vdwg.mxu0
  %v1515 = vxor.u32 %v1512, 2147483648
  %v1516 = vmul.f32 %v1515, 1.442695
  %v1517 = vpow.pop %v1516
  %v1518 = vadd.f32 %v1517, 1.0
  %v1519 = vrcp.pop %v1518
  %v1520 = vmul.f32 1.0, %v1519
  %v1521 = vtanh.pop %v1512
  %v1522 = vmul.f32 %v1520, %v1314
  %1524 = vrot.lane.b32.xlu0 %v1521, 64
  %v1525 = vpop.permute.xlu0 %1524
  %v1527 = vmul.f32 %v1520, %v1525
  %1529 = vrot.lane.b32.xlu0 %v1527, 32
  %v1530 = vpop.permute.xlu0 %1529
  %v1532 = vadd.f32 %v1522, %v1530
  %v1533 = vtanh.pop %v1532
  %1535 = vrot.lane.b32.xlu0 %v1533, 64
  %v1536 = vpop.permute.xlu0 %1535
  %v1538 = vmul.f32 %v1520, %v1536
  %v1539 = vsel %vm1330, 1, 0
  %1540 = vset.pattern.permute.xlu0 0
  %1541 = vperm.xlu0 %1540, %v1539
  %v1542 = vpop.permute.xlu0 %1541
  %vm1543 = vcmp.eq.s32.totalorder %v1542, 1
  %v1544 = vsel %vm1543, %v1532, %v1314
  %v1545 = vsel %vm1543, %v1538, %v1315
  %v1546 = vsel %vm1543, %v1538, 0.0
  %1548 = vrot.lane.b32.xlu0 %v1439, 32
  %v1549 = vpop.permute.xlu0 %1548
  %1551 = vst.msk [vmem:[%s6 + $0x20] sm:$0xff] %vm86, %v1549
  %1553 = vrot.lane.b32.xlu0 %v1546, 32
  %v1554 = vpop.permute.xlu0 %1553
  %1556 = vst.msk [vmem:[%s56 + $0x18] sm:$0xff] %vm86, %v1554
  %s1557 = sadd.s32 %s393, 5
  %v1558 = vstv %s1557
  %vm1559 = vcmp.lt.s32.totalorder %v1558, %v391
  %vm1560 = vcmp.ge.s32.totalorder %v1558, %v392
  %v1561 = vld [vmem:[#allocation6 + $0x28] sm:$0xff]
  %v1562 = vld [vmem:[#allocation7 + $0x10] sm:$0xff]
  %1564 = vrot.lane.b32.xlu0 %v1438, 32
  %v1565 = vpop.permute.xlu0 %1564
  %v1566 = vsel %vm86, %v1565, 0
  %1568 = vmatprep.subr.mxu0 0.0
  %1569 = vmatpush1.msra.mxu0 0.0
  %1570 = vmatprep.subr.mxu0 0.0
  %1571 = vmatpush1.msra.mxu0 0.0
  %1572 = vmatprep.subr.mxu0 0.0
  %1573 = vmatpush1.msra.mxu0 0.0
  %1574 = vmatprep.subr.mxu0 0.0
  %1575 = vmatpush1.msra.mxu0 0.0
  %1576 = vmatprep.subr.mxu0 0.0
  %1577 = vmatpush1.msra.mxu0 0.0
  %1578 = vmatprep.subr.mxu0 0.0
  %1579 = vmatpush1.msra.mxu0 0.0
  %1580 = vmatprep.subr.mxu0 0.0
  %1581 = vmatpush1.msra.mxu0 0.0
  %1582 = vmatprep.subr.mxu0 0.0
  %1583 = vmatpush1.msra.mxu0 0.0
  %1584 = vmatprep.subr.mxu0 0.0
  %1585 = vmatpush1.msra.mxu0 0.0
  %1586 = vmatprep.subr.mxu0 0.0
  %1587 = vmatpush1.msra.mxu0 0.0
  %1588 = vmatprep.subr.mxu0 0.0
  %1589 = vmatpush1.msra.mxu0 0.0
  %1590 = vmatprep.subr.mxu0 0.0
  %1591 = vmatpush1.msra.mxu0 0.0
  %1592 = vmatprep.subr.mxu0 0.0
  %1593 = vmatpush1.msra.mxu0 %v385
  %1594 = vmatprep.subr.mxu0 0.0
  %1595 = vmatpush1.msra.mxu0 %v384
  %1596 = vmatprep.subr.mxu0 0.0
  %1597 = vmatpush1.msra.mxu0 %v383
  %1598 = vmatprep.subr.mxu0 0.0
  %1599 = vmatpush1.msra.mxu0 %v382
  %1600 = vmatprep.subr.mxu0 0.0
  %1601 = vmatpush2.msra.mxu0 0.0
  %1602 = vmatprep.subr.mxu0 0.0
  %1603 = vmatpush2.msra.mxu0 0.0
  %1604 = vmatprep.subr.mxu0 0.0
  %1605 = vmatpush2.msra.mxu0 0.0
  %1606 = vmatprep.subr.mxu0 0.0
  %1607 = vmatpush2.msra.mxu0 0.0
  %1608 = vmatprep.subr.mxu0 0.0
  %1609 = vmatpush2.msra.mxu0 0.0
  %1610 = vmatprep.subr.mxu0 0.0
  %1611 = vmatpush2.msra.mxu0 0.0
  %1612 = vmatprep.subr.mxu0 0.0
  %1613 = vmatpush2.msra.mxu0 0.0
  %1614 = vmatprep.subr.mxu0 0.0
  %1615 = vmatpush2.msra.mxu0 0.0
  %1616 = vmatprep.subr.mxu0 0.0
  %1617 = vmatpush2.msra.mxu0 0.0
  %1618 = vmatprep.subr.mxu0 0.0
  %1619 = vmatpush2.msra.mxu0 0.0
  %1620 = vmatprep.subr.mxu0 0.0
  %1621 = vmatpush2.msra.mxu0 0.0
  %1622 = vmatprep.subr.mxu0 0.0
  %1623 = vmatpush2.msra.mxu0 0.0
  %1624 = vmatprep.subr.mxu0 0.0
  %1625 = vmatpush2.msra.mxu0 0.0
  %1626 = vmatprep.subr.mxu0 0.0
  %1627 = vmatpush2.msra.mxu0 0.0
  %1628 = vmatprep.subr.mxu0 0.0
  %1629 = vmatpush2.msra.mxu0 0.0
  %1630 = vmatprep.subr.mxu0 0.0
  %1631 = vmatpush2.msra.mxu0 0.0
  %1632 = vmatprep.mubr.f32.mxu0 0.0
  %1633 = vmatmul.mubr.f32.gmra.mxu0 %v1566
  %v1634 = vpop.f32.mrf.mxu0
  %v1635 = vadd.f32 %v1561, %v1634
  %v1636 = vpop.f32.mrf.mxu0
  %1637 = vdwg.mxu0
  %v1638 = vxor.u32 %v1635, 2147483648
  %v1639 = vmul.f32 %v1638, 1.442695
  %v1640 = vpow.pop %v1639
  %v1641 = vadd.f32 %v1640, 1.0
  %v1642 = vrcp.pop %v1641
  %v1643 = vmul.f32 1.0, %v1642
  %v1644 = vtanh.pop %v1635
  %v1645 = vmul.f32 %v1643, %v1437
  %1647 = vrot.lane.b32.xlu0 %v1644, 64
  %v1648 = vpop.permute.xlu0 %1647
  %v1650 = vmul.f32 %v1643, %v1648
  %1652 = vrot.lane.b32.xlu0 %v1650, 32
  %v1653 = vpop.permute.xlu0 %1652
  %v1655 = vadd.f32 %v1645, %v1653
  %v1656 = vtanh.pop %v1655
  %1658 = vrot.lane.b32.xlu0 %v1656, 64
  %v1659 = vpop.permute.xlu0 %1658
  %v1661 = vmul.f32 %v1643, %v1659
  %v1662 = vsel %vm1559, 1, 0
  %1663 = vset.pattern.permute.xlu0 0
  %1664 = vperm.xlu0 %1663, %v1662
  %v1665 = vpop.permute.xlu0 %1664
  %vm1666 = vcmp.eq.s32.totalorder %v1665, 1
  %v1667 = vsel %vm1666, %v1655, %v1437
  %v1668 = vsel %vm1666, %v1661, %v1438
  %v1669 = vsel %vm1666, %v1661, 0.0
  %1671 = vrot.lane.b32.xlu0 %v1545, 32
  %v1672 = vpop.permute.xlu0 %1671
  %v1673 = vsel %vm86, %v1672, 0
  %1675 = vmatprep.subr.mxu0 0.0
  %1676 = vmatpush1.msra.mxu0 0.0
  %1677 = vmatprep.subr.mxu0 0.0
  %1678 = vmatpush1.msra.mxu0 0.0
  %1679 = vmatprep.subr.mxu0 0.0
  %1680 = vmatpush1.msra.mxu0 0.0
  %1681 = vmatprep.subr.mxu0 0.0
  %1682 = vmatpush1.msra.mxu0 0.0
  %1683 = vmatprep.subr.mxu0 0.0
  %1684 = vmatpush1.msra.mxu0 0.0
  %1685 = vmatprep.subr.mxu0 0.0
  %1686 = vmatpush1.msra.mxu0 0.0
  %1687 = vmatprep.subr.mxu0 0.0
  %1688 = vmatpush1.msra.mxu0 0.0
  %1689 = vmatprep.subr.mxu0 0.0
  %1690 = vmatpush1.msra.mxu0 0.0
  %1691 = vmatprep.subr.mxu0 0.0
  %1692 = vmatpush1.msra.mxu0 0.0
  %1693 = vmatprep.subr.mxu0 0.0
  %1694 = vmatpush1.msra.mxu0 0.0
  %1695 = vmatprep.subr.mxu0 0.0
  %1696 = vmatpush1.msra.mxu0 0.0
  %1697 = vmatprep.subr.mxu0 0.0
  %1698 = vmatpush1.msra.mxu0 0.0
  %1699 = vmatprep.subr.mxu0 0.0
  %1700 = vmatpush1.msra.mxu0 %v390
  %1701 = vmatprep.subr.mxu0 0.0
  %1702 = vmatpush1.msra.mxu0 %v389
  %1703 = vmatprep.subr.mxu0 0.0
  %1704 = vmatpush1.msra.mxu0 %v388
  %1705 = vmatprep.subr.mxu0 0.0
  %1706 = vmatpush1.msra.mxu0 %v387
  %1707 = vmatprep.subr.mxu0 0.0
  %1708 = vmatpush2.msra.mxu0 0.0
  %1709 = vmatprep.subr.mxu0 0.0
  %1710 = vmatpush2.msra.mxu0 0.0
  %1711 = vmatprep.subr.mxu0 0.0
  %1712 = vmatpush2.msra.mxu0 0.0
  %1713 = vmatprep.subr.mxu0 0.0
  %1714 = vmatpush2.msra.mxu0 0.0
  %1715 = vmatprep.subr.mxu0 0.0
  %1716 = vmatpush2.msra.mxu0 0.0
  %1717 = vmatprep.subr.mxu0 0.0
  %1718 = vmatpush2.msra.mxu0 0.0
  %1719 = vmatprep.subr.mxu0 0.0
  %1720 = vmatpush2.msra.mxu0 0.0
  %1721 = vmatprep.subr.mxu0 0.0
  %1722 = vmatpush2.msra.mxu0 0.0
  %1723 = vmatprep.subr.mxu0 0.0
  %1724 = vmatpush2.msra.mxu0 0.0
  %1725 = vmatprep.subr.mxu0 0.0
  %1726 = vmatpush2.msra.mxu0 0.0
  %1727 = vmatprep.subr.mxu0 0.0
  %1728 = vmatpush2.msra.mxu0 0.0
  %1729 = vmatprep.subr.mxu0 0.0
  %1730 = vmatpush2.msra.mxu0 0.0
  %1731 = vmatprep.subr.mxu0 0.0
  %1732 = vmatpush2.msra.mxu0 0.0
  %1733 = vmatprep.subr.mxu0 0.0
  %1734 = vmatpush2.msra.mxu0 0.0
  %1735 = vmatprep.subr.mxu0 0.0
  %1736 = vmatpush2.msra.mxu0 0.0
  %1737 = vmatprep.subr.mxu0 0.0
  %1738 = vmatpush2.msra.mxu0 0.0
  %1739 = vmatprep.mubr.f32.mxu0 0.0
  %1740 = vmatmul.mubr.f32.gmra.mxu0 %v1673
  %v1741 = vpop.f32.mrf.mxu0
  %v1742 = vadd.f32 %v1562, %v1741
  %v1743 = vpop.f32.mrf.mxu0
  %1744 = vdwg.mxu0
  %v1745 = vxor.u32 %v1742, 2147483648
  %v1746 = vmul.f32 %v1745, 1.442695
  %v1747 = vpow.pop %v1746
  %v1748 = vadd.f32 %v1747, 1.0
  %v1749 = vrcp.pop %v1748
  %v1750 = vmul.f32 1.0, %v1749
  %v1751 = vtanh.pop %v1742
  %v1752 = vmul.f32 %v1750, %v1544
  %1754 = vrot.lane.b32.xlu0 %v1751, 64
  %v1755 = vpop.permute.xlu0 %1754
  %v1757 = vmul.f32 %v1750, %v1755
  %1759 = vrot.lane.b32.xlu0 %v1757, 32
  %v1760 = vpop.permute.xlu0 %1759
  %v1762 = vadd.f32 %v1752, %v1760
  %v1763 = vtanh.pop %v1762
  %1765 = vrot.lane.b32.xlu0 %v1763, 64
  %v1766 = vpop.permute.xlu0 %1765
  %v1768 = vmul.f32 %v1750, %v1766
  %v1769 = vsel %vm1560, 1, 0
  %1770 = vset.pattern.permute.xlu0 0
  %1771 = vperm.xlu0 %1770, %v1769
  %v1772 = vpop.permute.xlu0 %1771
  %vm1773 = vcmp.eq.s32.totalorder %v1772, 1
  %v1774 = vsel %vm1773, %v1762, %v1544
  %v1775 = vsel %vm1773, %v1768, %v1545
  %v1776 = vsel %vm1773, %v1768, 0.0
  %1778 = vrot.lane.b32.xlu0 %v1669, 32
  %v1779 = vpop.permute.xlu0 %1778
  %1781 = vst.msk [vmem:[%s6 + $0x28] sm:$0xff] %vm86, %v1779
  %1783 = vrot.lane.b32.xlu0 %v1776, 32
  %v1784 = vpop.permute.xlu0 %1783
  %1786 = vst.msk [vmem:[%s56 + $0x10] sm:$0xff] %vm86, %v1784
  %s1787 = sadd.s32 %s393, 6
  %v1788 = vstv %s1787
  %vm1789 = vcmp.lt.s32.totalorder %v1788, %v391
  %vm1790 = vcmp.ge.s32.totalorder %v1788, %v392
  %v1791 = vld [vmem:[#allocation6 + $0x30] sm:$0xff]
  %v1792 = vld [vmem:[#allocation7 + $0x8] sm:$0xff]
  %1794 = vrot.lane.b32.xlu0 %v1668, 32
  %v1795 = vpop.permute.xlu0 %1794
  %v1796 = vsel %vm86, %v1795, 0
  %1798 = vmatprep.subr.mxu0 0.0
  %1799 = vmatpush1.msra.mxu0 0.0
  %1800 = vmatprep.subr.mxu0 0.0
  %1801 = vmatpush1.msra.mxu0 0.0
  %1802 = vmatprep.subr.mxu0 0.0
  %1803 = vmatpush1.msra.mxu0 0.0
  %1804 = vmatprep.subr.mxu0 0.0
  %1805 = vmatpush1.msra.mxu0 0.0
  %1806 = vmatprep.subr.mxu0 0.0
  %1807 = vmatpush1.msra.mxu0 0.0
  %1808 = vmatprep.subr.mxu0 0.0
  %1809 = vmatpush1.msra.mxu0 0.0
  %1810 = vmatprep.subr.mxu0 0.0
  %1811 = vmatpush1.msra.mxu0 0.0
  %1812 = vmatprep.subr.mxu0 0.0
  %1813 = vmatpush1.msra.mxu0 0.0
  %1814 = vmatprep.subr.mxu0 0.0
  %1815 = vmatpush1.msra.mxu0 0.0
  %1816 = vmatprep.subr.mxu0 0.0
  %1817 = vmatpush1.msra.mxu0 0.0
  %1818 = vmatprep.subr.mxu0 0.0
  %1819 = vmatpush1.msra.mxu0 0.0
  %1820 = vmatprep.subr.mxu0 0.0
  %1821 = vmatpush1.msra.mxu0 0.0
  %1822 = vmatprep.subr.mxu0 0.0
  %1823 = vmatpush1.msra.mxu0 %v385
  %1824 = vmatprep.subr.mxu0 0.0
  %1825 = vmatpush1.msra.mxu0 %v384
  %1826 = vmatprep.subr.mxu0 0.0
  %1827 = vmatpush1.msra.mxu0 %v383
  %1828 = vmatprep.subr.mxu0 0.0
  %1829 = vmatpush1.msra.mxu0 %v382
  %1830 = vmatprep.subr.mxu0 0.0
  %1831 = vmatpush2.msra.mxu0 0.0
  %1832 = vmatprep.subr.mxu0 0.0
  %1833 = vmatpush2.msra.mxu0 0.0
  %1834 = vmatprep.subr.mxu0 0.0
  %1835 = vmatpush2.msra.mxu0 0.0
  %1836 = vmatprep.subr.mxu0 0.0
  %1837 = vmatpush2.msra.mxu0 0.0
  %1838 = vmatprep.subr.mxu0 0.0
  %1839 = vmatpush2.msra.mxu0 0.0
  %1840 = vmatprep.subr.mxu0 0.0
  %1841 = vmatpush2.msra.mxu0 0.0
  %1842 = vmatprep.subr.mxu0 0.0
  %1843 = vmatpush2.msra.mxu0 0.0
  %1844 = vmatprep.subr.mxu0 0.0
  %1845 = vmatpush2.msra.mxu0 0.0
  %1846 = vmatprep.subr.mxu0 0.0
  %1847 = vmatpush2.msra.mxu0 0.0
  %1848 = vmatprep.subr.mxu0 0.0
  %1849 = vmatpush2.msra.mxu0 0.0
  %1850 = vmatprep.subr.mxu0 0.0
  %1851 = vmatpush2.msra.mxu0 0.0
  %1852 = vmatprep.subr.mxu0 0.0
  %1853 = vmatpush2.msra.mxu0 0.0
  %1854 = vmatprep.subr.mxu0 0.0
  %1855 = vmatpush2.msra.mxu0 0.0
  %1856 = vmatprep.subr.mxu0 0.0
  %1857 = vmatpush2.msra.mxu0 0.0
  %1858 = vmatprep.subr.mxu0 0.0
  %1859 = vmatpush2.msra.mxu0 0.0
  %1860 = vmatprep.subr.mxu0 0.0
  %1861 = vmatpush2.msra.mxu0 0.0
  %1862 = vmatprep.mubr.f32.mxu0 0.0
  %1863 = vmatmul.mubr.f32.gmra.mxu0 %v1796
  %v1864 = vpop.f32.mrf.mxu0
  %v1865 = vadd.f32 %v1791, %v1864
  %v1866 = vpop.f32.mrf.mxu0
  %1867 = vdwg.mxu0
  %v1868 = vxor.u32 %v1865, 2147483648
  %v1869 = vmul.f32 %v1868, 1.442695
  %v1870 = vpow.pop %v1869
  %v1871 = vadd.f32 %v1870, 1.0
  %v1872 = vrcp.pop %v1871
  %v1873 = vmul.f32 1.0, %v1872
  %v1874 = vtanh.pop %v1865
  %v1875 = vmul.f32 %v1873, %v1667
  %1877 = vrot.lane.b32.xlu0 %v1874, 64
  %v1878 = vpop.permute.xlu0 %1877
  %v1880 = vmul.f32 %v1873, %v1878
  %1882 = vrot.lane.b32.xlu0 %v1880, 32
  %v1883 = vpop.permute.xlu0 %1882
  %v1885 = vadd.f32 %v1875, %v1883
  %v1886 = vtanh.pop %v1885
  %1888 = vrot.lane.b32.xlu0 %v1886, 64
  %v1889 = vpop.permute.xlu0 %1888
  %v1891 = vmul.f32 %v1873, %v1889
  %v1892 = vsel %vm1789, 1, 0
  %1893 = vset.pattern.permute.xlu0 0
  %1894 = vperm.xlu0 %1893, %v1892
  %v1895 = vpop.permute.xlu0 %1894
  %vm1896 = vcmp.eq.s32.totalorder %v1895, 1
  %v1897 = vsel %vm1896, %v1885, %v1667
  %v1898 = vsel %vm1896, %v1891, %v1668
  %v1899 = vsel %vm1896, %v1891, 0.0
  %1901 = vrot.lane.b32.xlu0 %v1775, 32
  %v1902 = vpop.permute.xlu0 %1901
  %v1903 = vsel %vm86, %v1902, 0
  %1905 = vmatprep.subr.mxu0 0.0
  %1906 = vmatpush1.msra.mxu0 0.0
  %1907 = vmatprep.subr.mxu0 0.0
  %1908 = vmatpush1.msra.mxu0 0.0
  %1909 = vmatprep.subr.mxu0 0.0
  %1910 = vmatpush1.msra.mxu0 0.0
  %1911 = vmatprep.subr.mxu0 0.0
  %1912 = vmatpush1.msra.mxu0 0.0
  %1913 = vmatprep.subr.mxu0 0.0
  %1914 = vmatpush1.msra.mxu0 0.0
  %1915 = vmatprep.subr.mxu0 0.0
  %1916 = vmatpush1.msra.mxu0 0.0
  %1917 = vmatprep.subr.mxu0 0.0
  %1918 = vmatpush1.msra.mxu0 0.0
  %1919 = vmatprep.subr.mxu0 0.0
  %1920 = vmatpush1.msra.mxu0 0.0
  %1921 = vmatprep.subr.mxu0 0.0
  %1922 = vmatpush1.msra.mxu0 0.0
  %1923 = vmatprep.subr.mxu0 0.0
  %1924 = vmatpush1.msra.mxu0 0.0
  %1925 = vmatprep.subr.mxu0 0.0
  %1926 = vmatpush1.msra.mxu0 0.0
  %1927 = vmatprep.subr.mxu0 0.0
  %1928 = vmatpush1.msra.mxu0 0.0
  %1929 = vmatprep.subr.mxu0 0.0
  %1930 = vmatpush1.msra.mxu0 %v390
  %1931 = vmatprep.subr.mxu0 0.0
  %1932 = vmatpush1.msra.mxu0 %v389
  %1933 = vmatprep.subr.mxu0 0.0
  %1934 = vmatpush1.msra.mxu0 %v388
  %1935 = vmatprep.subr.mxu0 0.0
  %1936 = vmatpush1.msra.mxu0 %v387
  %1937 = vmatprep.subr.mxu0 0.0
  %1938 = vmatpush2.msra.mxu0 0.0
  %1939 = vmatprep.subr.mxu0 0.0
  %1940 = vmatpush2.msra.mxu0 0.0
  %1941 = vmatprep.subr.mxu0 0.0
  %1942 = vmatpush2.msra.mxu0 0.0
  %1943 = vmatprep.subr.mxu0 0.0
  %1944 = vmatpush2.msra.mxu0 0.0
  %1945 = vmatprep.subr.mxu0 0.0
  %1946 = vmatpush2.msra.mxu0 0.0
  %1947 = vmatprep.subr.mxu0 0.0
  %1948 = vmatpush2.msra.mxu0 0.0
  %1949 = vmatprep.subr.mxu0 0.0
  %1950 = vmatpush2.msra.mxu0 0.0
  %1951 = vmatprep.subr.mxu0 0.0
  %1952 = vmatpush2.msra.mxu0 0.0
  %1953 = vmatprep.subr.mxu0 0.0
  %1954 = vmatpush2.msra.mxu0 0.0
  %1955 = vmatprep.subr.mxu0 0.0
  %1956 = vmatpush2.msra.mxu0 0.0
  %1957 = vmatprep.subr.mxu0 0.0
  %1958 = vmatpush2.msra.mxu0 0.0
  %1959 = vmatprep.subr.mxu0 0.0
  %1960 = vmatpush2.msra.mxu0 0.0
  %1961 = vmatprep.subr.mxu0 0.0
  %1962 = vmatpush2.msra.mxu0 0.0
  %1963 = vmatprep.subr.mxu0 0.0
  %1964 = vmatpush2.msra.mxu0 0.0
  %1965 = vmatprep.subr.mxu0 0.0
  %1966 = vmatpush2.msra.mxu0 0.0
  %1967 = vmatprep.subr.mxu0 0.0
  %1968 = vmatpush2.msra.mxu0 0.0
  %1969 = vmatprep.mubr.f32.mxu0 0.0
  %1970 = vmatmul.mubr.f32.gmra.mxu0 %v1903
  %v1971 = vpop.f32.mrf.mxu0
  %v1972 = vadd.f32 %v1792, %v1971
  %v1973 = vpop.f32.mrf.mxu0
  %1974 = vdwg.mxu0
  %v1975 = vxor.u32 %v1972, 2147483648
  %v1976 = vmul.f32 %v1975, 1.442695
  %v1977 = vpow.pop %v1976
  %v1978 = vadd.f32 %v1977, 1.0
  %v1979 = vrcp.pop %v1978
  %v1980 = vmul.f32 1.0, %v1979
  %v1981 = vtanh.pop %v1972
  %v1982 = vmul.f32 %v1980, %v1774
  %1984 = vrot.lane.b32.xlu0 %v1981, 64
  %v1985 = vpop.permute.xlu0 %1984
  %v1987 = vmul.f32 %v1980, %v1985
  %1989 = vrot.lane.b32.xlu0 %v1987, 32
  %v1990 = vpop.permute.xlu0 %1989
  %v1992 = vadd.f32 %v1982, %v1990
  %v1993 = vtanh.pop %v1992
  %1995 = vrot.lane.b32.xlu0 %v1993, 64
  %v1996 = vpop.permute.xlu0 %1995
  %v1998 = vmul.f32 %v1980, %v1996
  %v1999 = vsel %vm1790, 1, 0
  %2000 = vset.pattern.permute.xlu0 0
  %2001 = vperm.xlu0 %2000, %v1999
  %v2002 = vpop.permute.xlu0 %2001
  %vm2003 = vcmp.eq.s32.totalorder %v2002, 1
  %v2004 = vsel %vm2003, %v1992, %v1774
  %v2005 = vsel %vm2003, %v1998, %v1775
  %v2006 = vsel %vm2003, %v1998, 0.0
  %2008 = vrot.lane.b32.xlu0 %v1899, 32
  %v2009 = vpop.permute.xlu0 %2008
  %2011 = vst.msk [vmem:[%s6 + $0x30] sm:$0xff] %vm86, %v2009
  %2013 = vrot.lane.b32.xlu0 %v2006, 32
  %v2014 = vpop.permute.xlu0 %2013
  %2016 = vst.msk [vmem:[%s56 + $0x8] sm:$0xff] %vm86, %v2014
  %s2017 = sadd.s32 %s393, 7
  %v2018 = vstv %s2017
  %vm2019 = vcmp.lt.s32.totalorder %v2018, %v391
  %vm2020 = vcmp.ge.s32.totalorder %v2018, %v392
  %v2021 = vld [vmem:[#allocation6 + $0x38] sm:$0xff]
  %v2022 = vld [vmem:[#allocation7] sm:$0xff]
  %2024 = vrot.lane.b32.xlu0 %v1898, 32
  %v2025 = vpop.permute.xlu0 %2024
  %v2026 = vsel %vm86, %v2025, 0
  %2028 = vmatprep.subr.mxu0 0.0
  %2029 = vmatpush1.msra.mxu0 0.0
  %2030 = vmatprep.subr.mxu0 0.0
  %2031 = vmatpush1.msra.mxu0 0.0
  %2032 = vmatprep.subr.mxu0 0.0
  %2033 = vmatpush1.msra.mxu0 0.0
  %2034 = vmatprep.subr.mxu0 0.0
  %2035 = vmatpush1.msra.mxu0 0.0
  %2036 = vmatprep.subr.mxu0 0.0
  %2037 = vmatpush1.msra.mxu0 0.0
  %2038 = vmatprep.subr.mxu0 0.0
  %2039 = vmatpush1.msra.mxu0 0.0
  %2040 = vmatprep.subr.mxu0 0.0
  %2041 = vmatpush1.msra.mxu0 0.0
  %2042 = vmatprep.subr.mxu0 0.0
  %2043 = vmatpush1.msra.mxu0 0.0
  %2044 = vmatprep.subr.mxu0 0.0
  %2045 = vmatpush1.msra.mxu0 0.0
  %2046 = vmatprep.subr.mxu0 0.0
  %2047 = vmatpush1.msra.mxu0 0.0
  %2048 = vmatprep.subr.mxu0 0.0
  %2049 = vmatpush1.msra.mxu0 0.0
  %2050 = vmatprep.subr.mxu0 0.0
  %2051 = vmatpush1.msra.mxu0 0.0
  %2052 = vmatprep.subr.mxu0 0.0
  %2053 = vmatpush1.msra.mxu0 %v385
  %2054 = vmatprep.subr.mxu0 0.0
  %2055 = vmatpush1.msra.mxu0 %v384
  %2056 = vmatprep.subr.mxu0 0.0
  %2057 = vmatpush1.msra.mxu0 %v383
  %2058 = vmatprep.subr.mxu0 0.0
  %2059 = vmatpush1.msra.mxu0 %v382
  %2060 = vmatprep.subr.mxu0 0.0
  %2061 = vmatpush2.msra.mxu0 0.0
  %2062 = vmatprep.subr.mxu0 0.0
  %2063 = vmatpush2.msra.mxu0 0.0
  %2064 = vmatprep.subr.mxu0 0.0
  %2065 = vmatpush2.msra.mxu0 0.0
  %2066 = vmatprep.subr.mxu0 0.0
  %2067 = vmatpush2.msra.mxu0 0.0
  %2068 = vmatprep.subr.mxu0 0.0
  %2069 = vmatpush2.msra.mxu0 0.0
  %2070 = vmatprep.subr.mxu0 0.0
  %2071 = vmatpush2.msra.mxu0 0.0
  %2072 = vmatprep.subr.mxu0 0.0
  %2073 = vmatpush2.msra.mxu0 0.0
  %2074 = vmatprep.subr.mxu0 0.0
  %2075 = vmatpush2.msra.mxu0 0.0
  %2076 = vmatprep.subr.mxu0 0.0
  %2077 = vmatpush2.msra.mxu0 0.0
  %2078 = vmatprep.subr.mxu0 0.0
  %2079 = vmatpush2.msra.mxu0 0.0
  %2080 = vmatprep.subr.mxu0 0.0
  %2081 = vmatpush2.msra.mxu0 0.0
  %2082 = vmatprep.subr.mxu0 0.0
  %2083 = vmatpush2.msra.mxu0 0.0
  %2084 = vmatprep.subr.mxu0 0.0
  %2085 = vmatpush2.msra.mxu0 0.0
  %2086 = vmatprep.subr.mxu0 0.0
  %2087 = vmatpush2.msra.mxu0 0.0
  %2088 = vmatprep.subr.mxu0 0.0
  %2089 = vmatpush2.msra.mxu0 0.0
  %2090 = vmatprep.subr.mxu0 0.0
  %2091 = vmatpush2.msra.mxu0 0.0
  %2092 = vmatprep.mubr.f32.mxu0 0.0
  %2093 = vmatmul.mubr.f32.gmra.mxu0 %v2026
  %v2094 = vpop.f32.mrf.mxu0
  %v2095 = vadd.f32 %v2021, %v2094
  %v2096 = vpop.f32.mrf.mxu0
  %2097 = vdwg.mxu0
  %v2098 = vxor.u32 %v2095, 2147483648
  %v2099 = vmul.f32 %v2098, 1.442695
  %v2100 = vpow.pop %v2099
  %v2101 = vadd.f32 %v2100, 1.0
  %v2102 = vrcp.pop %v2101
  %v2103 = vmul.f32 1.0, %v2102
  %v2104 = vtanh.pop %v2095
  %v2105 = vmul.f32 %v2103, %v1897
  %2107 = vrot.lane.b32.xlu0 %v2104, 64
  %v2108 = vpop.permute.xlu0 %2107
  %v2110 = vmul.f32 %v2103, %v2108
  %2112 = vrot.lane.b32.xlu0 %v2110, 32
  %v2113 = vpop.permute.xlu0 %2112
  %v2115 = vadd.f32 %v2105, %v2113
  %v2116 = vtanh.pop %v2115
  %2118 = vrot.lane.b32.xlu0 %v2116, 64
  %v2119 = vpop.permute.xlu0 %2118
  %v2121 = vmul.f32 %v2103, %v2119
  %v2122 = vsel %vm2019, 1, 0
  %2123 = vset.pattern.permute.xlu0 0
  %2124 = vperm.xlu0 %2123, %v2122
  %v2125 = vpop.permute.xlu0 %2124
  %vm2126 = vcmp.eq.s32.totalorder %v2125, 1
  %v2127 = vsel %vm2126, %v2115, %v1897
  %v2128 = vsel %vm2126, %v2121, %v1898
  %v2129 = vsel %vm2126, %v2121, 0.0
  %2131 = vrot.lane.b32.xlu0 %v2005, 32
  %v2132 = vpop.permute.xlu0 %2131
  %v2133 = vsel %vm86, %v2132, 0
  %2135 = vmatprep.subr.mxu0 0.0
  %2136 = vmatpush1.msra.mxu0 0.0
  %2137 = vmatprep.subr.mxu0 0.0
  %2138 = vmatpush1.msra.mxu0 0.0
  %2139 = vmatprep.subr.mxu0 0.0
  %2140 = vmatpush1.msra.mxu0 0.0
  %2141 = vmatprep.subr.mxu0 0.0
  %2142 = vmatpush1.msra.mxu0 0.0
  %2143 = vmatprep.subr.mxu0 0.0
  %2144 = vmatpush1.msra.mxu0 0.0
  %2145 = vmatprep.subr.mxu0 0.0
  %2146 = vmatpush1.msra.mxu0 0.0
  %2147 = vmatprep.subr.mxu0 0.0
  %2148 = vmatpush1.msra.mxu0 0.0
  %2149 = vmatprep.subr.mxu0 0.0
  %2150 = vmatpush1.msra.mxu0 0.0
  %2151 = vmatprep.subr.mxu0 0.0
  %2152 = vmatpush1.msra.mxu0 0.0
  %2153 = vmatprep.subr.mxu0 0.0
  %2154 = vmatpush1.msra.mxu0 0.0
  %2155 = vmatprep.subr.mxu0 0.0
  %2156 = vmatpush1.msra.mxu0 0.0
  %2157 = vmatprep.subr.mxu0 0.0
  %2158 = vmatpush1.msra.mxu0 0.0
  %2159 = vmatprep.subr.mxu0 0.0
  %2160 = vmatpush1.msra.mxu0 %v390
  %2161 = vmatprep.subr.mxu0 0.0
  %2162 = vmatpush1.msra.mxu0 %v389
  %2163 = vmatprep.subr.mxu0 0.0
  %2164 = vmatpush1.msra.mxu0 %v388
  %2165 = vmatprep.subr.mxu0 0.0
  %2166 = vmatpush1.msra.mxu0 %v387
  %2167 = vmatprep.subr.mxu0 0.0
  %2168 = vmatpush2.msra.mxu0 0.0
  %2169 = vmatprep.subr.mxu0 0.0
  %2170 = vmatpush2.msra.mxu0 0.0
  %2171 = vmatprep.subr.mxu0 0.0
  %2172 = vmatpush2.msra.mxu0 0.0
  %2173 = vmatprep.subr.mxu0 0.0
  %2174 = vmatpush2.msra.mxu0 0.0
  %2175 = vmatprep.subr.mxu0 0.0
  %2176 = vmatpush2.msra.mxu0 0.0
  %2177 = vmatprep.subr.mxu0 0.0
  %2178 = vmatpush2.msra.mxu0 0.0
  %2179 = vmatprep.subr.mxu0 0.0
  %2180 = vmatpush2.msra.mxu0 0.0
  %2181 = vmatprep.subr.mxu0 0.0
  %2182 = vmatpush2.msra.mxu0 0.0
  %2183 = vmatprep.subr.mxu0 0.0
  %2184 = vmatpush2.msra.mxu0 0.0
  %2185 = vmatprep.subr.mxu0 0.0
  %2186 = vmatpush2.msra.mxu0 0.0
  %2187 = vmatprep.subr.mxu0 0.0
  %2188 = vmatpush2.msra.mxu0 0.0
  %2189 = vmatprep.subr.mxu0 0.0
  %2190 = vmatpush2.msra.mxu0 0.0
  %2191 = vmatprep.subr.mxu0 0.0
  %2192 = vmatpush2.msra.mxu0 0.0
  %2193 = vmatprep.subr.mxu0 0.0
  %2194 = vmatpush2.msra.mxu0 0.0
  %2195 = vmatprep.subr.mxu0 0.0
  %2196 = vmatpush2.msra.mxu0 0.0
  %2197 = vmatprep.subr.mxu0 0.0
  %2198 = vmatpush2.msra.mxu0 0.0
  %2199 = vmatprep.mubr.f32.mxu0 0.0
  %2200 = vmatmul.mubr.f32.gmra.mxu0 %v2133
  %v2201 = vpop.f32.mrf.mxu0
  %v2202 = vadd.f32 %v2022, %v2201
  %v2203 = vpop.f32.mrf.mxu0
  %2204 = vdwg.mxu0
  %v2205 = vxor.u32 %v2202, 2147483648
  %v2206 = vmul.f32 %v2205, 1.442695
  %v2207 = vpow.pop %v2206
  %v2208 = vadd.f32 %v2207, 1.0
  %v2209 = vrcp.pop %v2208
  %v2210 = vmul.f32 1.0, %v2209
  %v2211 = vtanh.pop %v2202
  %v2212 = vmul.f32 %v2210, %v2004
  %2214 = vrot.lane.b32.xlu0 %v2211, 64
  %v2215 = vpop.permute.xlu0 %2214
  %v2217 = vmul.f32 %v2210, %v2215
  %2219 = vrot.lane.b32.xlu0 %v2217, 32
  %v2220 = vpop.permute.xlu0 %2219
  %v2222 = vadd.f32 %v2212, %v2220
  %v2223 = vtanh.pop %v2222
  %2225 = vrot.lane.b32.xlu0 %v2223, 64
  %v2226 = vpop.permute.xlu0 %2225
  %v2228 = vmul.f32 %v2210, %v2226
  %v2229 = vsel %vm2020, 1, 0
  %2230 = vset.pattern.permute.xlu0 0
  %2231 = vperm.xlu0 %2230, %v2229
  %v2232 = vpop.permute.xlu0 %2231
  %vm2233 = vcmp.eq.s32.totalorder %v2232, 1
  %v2234 = vsel %vm2233, %v2222, %v2004
  %v2235 = vsel %vm2233, %v2228, %v2005
  %v2236 = vsel %vm2233, %v2228, 0.0
  %2238 = vrot.lane.b32.xlu0 %v2129, 32
  %v2239 = vpop.permute.xlu0 %2238
  %2241 = vst.msk [vmem:[%s6 + $0x38] sm:$0xff] %vm86, %v2239
  %2243 = vrot.lane.b32.xlu0 %v2236, 32
  %v2244 = vpop.permute.xlu0 %2243
  %2246 = vst.msk [vmem:[%s56] sm:$0xff] %vm86, %v2244
  %2248 = vrot.lane.b32.xlu0 %v2128, 32
  %v2249 = vpop.permute.xlu0 %2248
  %2251 = vst.msk [vmem:[#allocation2] sm:$0xff] %vm86, %v2249
  %2253 = vrot.lane.b32.xlu0 %v2127, 96
  %v2254 = vpop.permute.xlu0 %2253
  %2256 = vst.msk [vmem:[#allocation3] sm:$0xff] %vm86, %v2254
  %2258 = vrot.lane.b32.xlu0 %v2235, 32
  %v2259 = vpop.permute.xlu0 %2258
  %2261 = vst.msk [vmem:[#allocation4] sm:$0xff] %vm86, %v2259
  %2263 = vrot.lane.b32.xlu0 %v2234, 96
  %v2264 = vpop.permute.xlu0 %2263
  %2266 = vst.msk [vmem:[#allocation5] sm:$0xff] %vm86, %v2264
  %s2267 = ssub.s32 0, 0
  %p2268 = scmp.lt.s32.totalorder %s2267, 0
  %s2269 = scalar_select %p2268, %s2267, 0
  %s2270 = smul.addr %s2269, 8
  %s2271 = smul.addr %s2270, 8
  %s2272 = scalar_lea.vmem %s7, %s2271
  // Predicated region
  $region30: #{tpu_custom_call.1} parent=0 // pred_check
    _
  $region31: #{tpu_custom_call.1} parent=0 // pred_check_branch
    %2274 = sbr.rel (0) target = $region33
  $region32: #{tpu_custom_call.1} parent=0 // pred_region
    _
  $region33: #{tpu_custom_call.1} parent=0 // pred_fallthru
    _
  // Predicated region
  $region34: #{tpu_custom_call.1} parent=0 // pred_check
    _
  $region35: #{tpu_custom_call.1} parent=0 // pred_check_branch
    %2276 = sbr.rel (0) target = $region37
  $region36: #{tpu_custom_call.1} parent=0 // pred_region
    %s2277 = ssub.s32 0, 0
  $region37: #{tpu_custom_call.1} parent=0 // pred_fallthru
    _
  // Predicated region
  $region38: #{tpu_custom_call.1} parent=0 // pred_check
    _
  $region39: #{tpu_custom_call.1} parent=0 // pred_check_branch
    %2279 = sbr.rel (0) target = $region41
  $region40: #{tpu_custom_call.1} parent=0 // pred_region
    _
  $region41: #{tpu_custom_call.1} parent=0 // pred_fallthru
    _
  // Predicated region
  $region42: #{tpu_custom_call.1} parent=0 // pred_check
    _
  $region43: #{tpu_custom_call.1} parent=0 // pred_check_branch
    %2281 = sbr.rel (0) target = $region45
  $region44: #{tpu_custom_call.1} parent=0 // pred_region
    %s2282 = ssub.s32 0, 0
    %p2283 = scmp.lt.s32.totalorder %s2282, 0
    %s2284 = scalar_select %p2283, %s2282, 0
    %s2285 = smul.addr %s2284, 8
    %s2286 = smul.addr %s2285, 8
    %s2287 = scalar_lea.vmem %s7, %s2286
  $region45: #{tpu_custom_call.1} parent=0 // pred_fallthru
    _

</llo_original>
